<compile_context>
chip_gen: v6e
topology: v6e:2x2x1
jax: 0.10.0
libtpu: 0.0.40
codegen_flags: <defaults>
</compile_context>

<pallas_src>
import jax
import jax.numpy as jnp
from jax.experimental import pallas as pl
from jax.experimental.pallas import tpu as pltpu


# ---------------------------------------------------------------- kernel ----

def _mm(a, w_bf16):
    """bf16 MXU matmul with f32 accumulation (weight already bf16)."""
    return jnp.dot(a.astype(jnp.bfloat16), w_bf16,
                   preferred_element_type=jnp.float32)


def _dccm_gnn_kernel(x_ref, gcomb_ref, asum_ref, invdeg_ref, ea_ref,
                     psum_ref, invcnt_ref,
                     win_ref, bin_ref,
                     wnod_ref, bnod_ref, wmi_ref, wmj_ref, wme_ref, bmsg_ref,
                     lng_ref, lnb_ref,
                     wo1_ref, bo1_ref, wo2_ref, bo2_ref,
                     wp1_ref, bp1_ref, wp2_ref, bp2_ref,
                     wr1_ref, br1_ref, wr2_ref, br2_ref,
                     graph_ref, resfeat_ref, pcat_ref):
    """Fully fused forward: input_proj -> L x EdgeGNNLayer -> output_proj
    -> global_mean_pool -> protein projector, plus residue projector.

    All activations (including residue_emb) stay VMEM-resident; the only HBM
    writes are the two module outputs."""
    H = win_ref.shape[1]

    # ---- input projection + ReLU (x pre-cast to bf16 host-side) ----------
    h = jnp.maximum(_mm(x_ref[...], win_ref[...]) + bin_ref[...], 0.0)      # (N, H)

    gcomb = gcomb_ref[...]       # (E, 2N) bf16: [onehot(dst) | onehot(src)]
    asum = asum_ref[...]         # (N, E)  bf16: onehot(dst)^T (scatter-add)
    inv_deg = invdeg_ref[...]    # (N, 1)  f32, 0 for nodes w/o incoming edges

    # ---- hoisted K=edge_dim matmul: edge contribution for ALL layers -----
    # (E, De) @ (De, L*H) -> (E, L*H): keeps the badly-shaped K=8 contraction
    # off the per-layer MXU critical path.
    e_all = jnp.dot(ea_ref[...], wme_ref[...],
                    preferred_element_type=jnp.float32)

    n_layers = wnod_ref.shape[0]
    n = h.shape[0]
    for l in range(n_layers):                      # static unroll (L small)
        # node_lin
        xl = _mm(h, wnod_ref[l]) + bnod_ref[l]                              # (N, H)
        xl_b = xl.astype(jnp.bfloat16)             # cast once, reused twice
        # Reassociated message_lin: project at node granularity, then gather
        # + add both endpoint contributions with ONE combined one-hot matmul.
        p_i = jnp.dot(xl_b, wmi_ref[l], preferred_element_type=jnp.float32)
        p_j = jnp.dot(xl_b, wmj_ref[l], preferred_element_type=jnp.float32)
        pcat_ref[pl.ds(0, n), :] = p_i.astype(jnp.bfloat16)
        pcat_ref[pl.ds(n, n), :] = p_j.astype(jnp.bfloat16)
        msg = jnp.dot(gcomb, pcat_ref[...],
                      preferred_element_type=jnp.float32)                   # (E, H)
        msg = jnp.maximum(msg + e_all[:, l * H:(l + 1) * H] + bmsg_ref[l], 0.0)
        # mean aggregation over incoming edges (0/1 sum matmul * 1/deg)
        agg = jnp.dot(asum, msg.astype(jnp.bfloat16),
                      preferred_element_type=jnp.float32) * inv_deg         # (N, H)
        # residual + LayerNorm
        y = agg + xl
        mu = jnp.mean(y, axis=-1, keepdims=True)
        var = jnp.mean((y - mu) ** 2, axis=-1, keepdims=True)
        h = (y - mu) * jax.lax.rsqrt(var + 1e-5) * lng_ref[l] + lnb_ref[l]
        # TODO(synk): nn.Dropout(0.1) is identity in eval mode; train-mode
        # stochastic dropout is not implemented.

    # ---- output_proj: Linear -> ReLU -> Dropout(id) -> Linear (lane-padded) ----
    t = jnp.maximum(_mm(h, wo1_ref[...]) + bo1_ref[...], 0.0)
    remb = _mm(t, wo2_ref[...]) + bo2_ref[...]                              # (N, Dout)

    # ---- fused heads: global_mean_pool + protein projector; residue proj ----
    remb_b = remb.astype(jnp.bfloat16)
    gemb = jnp.dot(psum_ref[...], remb_b,
                   preferred_element_type=jnp.float32) * invcnt_ref[...]    # (G, Dout)
    ph = jnp.maximum(_mm(gemb, wp1_ref[...]) + bp1_ref[...], 0.0)
    graph_ref[...] = _mm(ph, wp2_ref[...]) + bp2_ref[...]
    rh = jnp.maximum(jnp.dot(remb_b, wr1_ref[...],
                             preferred_element_type=jnp.float32) + br1_ref[...],
                     0.0)
    resfeat_ref[...] = _mm(rh, wr2_ref[...]) + br2_ref[...]


# ----------------------------------------------------------- call helpers ---

def _vmem_spec():
    # whole-array resident in VMEM, no grid / pipeline machinery
    return pl.BlockSpec(memory_space=pltpu.MemorySpace.VMEM)


def _w(a):
    """Weight -> bf16 (MXU-native)."""
    return a.astype(jnp.bfloat16)


def _b(a):
    """Bias -> (1, dim) f32 row for in-kernel broadcast."""
    return a.reshape(1, -1).astype(jnp.float32)


def _pad_cols(a, target):
    return jnp.pad(a, ((0, 0), (0, target - a.shape[1])))


def _pad_rows(a, target):
    return jnp.pad(a, ((0, target - a.shape[0]), (0, 0)))


# ------------------------------------------------------- host-side helpers --

def build_graph_operators(edge_index, batch, num_nodes, num_graphs):
    """Dense one-hot gather / scatter / pool operators built from indices."""
    src = edge_index[0]
    dst = edge_index[1]
    oh_dst = jax.nn.one_hot(dst, num_nodes, dtype=jnp.float32)          # (E, N)
    oh_src = jax.nn.one_hot(src, num_nodes, dtype=jnp.float32)          # (E, N)
    # combined gather operator: [onehot(dst) | onehot(src)]  (E, 2N)
    g_comb = jnp.concatenate([oh_dst, oh_src], axis=1).astype(jnp.bfloat16)
    a_sum = jnp.transpose(oh_dst).astype(jnp.bfloat16)                  # (N, E)
    deg = jnp.sum(oh_dst, axis=0)[:, None]                              # (N, 1)
    inv_deg = jnp.where(deg > 0, 1.0 / jnp.maximum(deg, 1.0), 0.0)
    p_onehot = jax.nn.one_hot(batch, num_graphs, dtype=jnp.float32)     # (N, G)
    p_sum = jnp.transpose(p_onehot).astype(jnp.bfloat16)                # (G, N)
    cnt = jnp.sum(p_onehot, axis=0)[:, None]                            # (G, 1)
    inv_cnt = jnp.where(cnt > 0, 1.0 / jnp.maximum(cnt, 1.0), 0.0)
    return g_comb, a_sum, inv_deg, p_sum, inv_cnt


def fold_bn(w1, b1, g, beta, rm, rv, eps=1e-5):
    """Fold eval-mode BatchNorm1d into the preceding Linear."""
    # TODO(synk): PyTorch train-mode BN would use batch statistics; eval-mode
    # running statistics are folded here.
    s = g / jnp.sqrt(rv + eps)
    return w1 * s[None, :], b1 * s + (beta - rm * s)


# --------------------------------------------------------------- params -----

def _nrm(key, shape, scale=0.05):
    return scale * jax.random.normal(key, shape, dtype=jnp.float32)


def init_projector(key, in_dim, inner_dim, out_dim):
    # MoBYMLP(num_layers=2): Identity -> Linear -> BatchNorm1d -> ReLU -> Linear
    k1, k2, k3, k4 = jax.random.split(key, 4)
    return {
        'w1': _nrm(k1, (in_dim, inner_dim)),
        'b1': jnp.zeros((inner_dim,), jnp.float32),
        'bn_g': jnp.ones((inner_dim,), jnp.float32),
        'bn_b': jnp.zeros((inner_dim,), jnp.float32),
        'bn_rm': 0.1 * jax.random.normal(k3, (inner_dim,), dtype=jnp.float32),
        'bn_rv': 1.0 + 0.1 * jnp.abs(jax.random.normal(k4, (inner_dim,),
                                                       dtype=jnp.float32)),
        'w2': _nrm(k2, (inner_dim, out_dim)),
        'b2': jnp.zeros((out_dim,), jnp.float32),
    }


def init_params(key, node_in_dim, edge_dim, hidden_dim, output_dim,
                protein_inner, protein_out, residue_inner, residue_out,
                num_layers):
    keys = iter(jax.random.split(key, 8 + 5 * num_layers))
    p = {
        'w_in': _nrm(next(keys), (node_in_dim, hidden_dim)),
        'b_in': jnp.zeros((hidden_dim,), jnp.float32),
        'layers': [],
    }
    for _ in range(num_layers):
        # NOTE: EdgeGNNLayer.edge_lin exists in the module but is unused in
        # forward(), so it is omitted here.
        p['layers'].append({
            'w_node': _nrm(next(keys), (hidden_dim, hidden_dim)),
            'b_node': jnp.zeros((hidden_dim,), jnp.float32),
            # message_lin weight split into [x_i | x_j | edge_attr] blocks
            'w_msg_i': _nrm(next(keys), (hidden_dim, hidden_dim)),
            'w_msg_j': _nrm(next(keys), (hidden_dim, hidden_dim)),
            'w_msg_e': _nrm(next(keys), (edge_dim, hidden_dim)),
            'b_msg': jnp.zeros((hidden_dim,), jnp.float32),
            'ln_g': jnp.ones((hidden_dim,), jnp.float32),
            'ln_b': jnp.zeros((hidden_dim,), jnp.float32),
        })
    h2 = hidden_dim // 2
    p['w_out1'] = _nrm(next(keys), (hidden_dim, h2))
    p['b_out1'] = jnp.zeros((h2,), jnp.float32)
    p['w_out2'] = _nrm(next(keys), (h2, output_dim))
    p['b_out2'] = jnp.zeros((output_dim,), jnp.float32)
    p['proj_protein'] = init_projector(next(keys), output_dim,
                                       protein_inner, protein_out)
    p['proj_residue'] = init_projector(next(keys), output_dim,
                                       residue_inner, residue_out)
    return p


def _stack_layers(layers):
    wnod = _w(jnp.stack([l['w_node'] for l in layers]))            # (L, H, H) bf16
    bnod = jnp.stack([l['b_node'] for l in layers])[:, None, :]    # (L, 1, H) f32
    wmi = _w(jnp.stack([l['w_msg_i'] for l in layers]))
    wmj = _w(jnp.stack([l['w_msg_j'] for l in layers]))
    # fold the K=edge_dim matmul of ALL layers into one (De, L*H) operand
    wme_all = _w(jnp.concatenate([l['w_msg_e'] for l in layers], axis=1))
    bmsg = jnp.stack([l['b_msg'] for l in layers])[:, None, :]
    lng = jnp.stack([l['ln_g'] for l in layers])[:, None, :]
    lnb = jnp.stack([l['ln_b'] for l in layers])[:, None, :]
    return wnod, bnod, wmi, wmj, wme_all, bmsg, lng, lnb


# --------------------------------------------------------------- forward ----

def dccm_gnn_forward(params, x, edge_index, edge_attr, batch, num_graphs):
    """Equivalent of DCCM_GNN.forward(data, return_embedding=False) (eval mode)."""
    n_nodes, node_in = x.shape
    n_edges, edge_dim = edge_attr.shape
    hidden = params['w_in'].shape[1]
    out_dim = params['w_out2'].shape[1]
    n_layers = len(params['layers'])

    g_comb, a_sum, inv_deg, p_sum, inv_cnt = build_graph_operators(
        edge_index, batch, n_nodes, num_graphs)
    wnod, bnod, wmi, wmj, wme_all, bmsg, lng, lnb = _stack_layers(params['layers'])

    # output_proj hidden width padded to a full lane width (exact zero-pad)
    h2 = params['w_out1'].shape[1]
    h2p = max(128, ((h2 + 127) // 128) * 128)
    w_out1 = _w(_pad_cols(params['w_out1'], h2p))
    b_out1 = _pad_cols(_b(params['b_out1']), h2p)
    w_out2 = _w(_pad_rows(params['w_out2'], h2p))

    pp, pr = params['proj_protein'], params['proj_residue']
    wp1, bp1 = fold_bn(pp['w1'], pp['b1'], pp['bn_g'], pp['bn_b'],
                       pp['bn_rm'], pp['bn_rv'])
    wr1, br1 = fold_bn(pr['w1'], pr['b1'], pr['bn_g'], pr['bn_b'],
                       pr['bn_rm'], pr['bn_rv'])

    inputs = (
        x.astype(jnp.bfloat16), g_comb, a_sum, inv_deg,
        edge_attr.astype(jnp.bfloat16), p_sum, inv_cnt,
        _w(params['w_in']), _b(params['b_in']),
        wnod, bnod, wmi, wmj, wme_all, bmsg, lng, lnb,
        w_out1, b_out1, w_out2, _b(params['b_out2']),
        _w(wp1), _b(bp1), _w(pp['w2']), _b(pp['b2']),
        _w(wr1), _b(br1), _w(pr['w2']), _b(pr['b2']),
    )

    prot_out = pp['w2'].shape[1]
    res_out = pr['w2'].shape[1]
    p_inner = pp['w1'].shape[1]
    r_inner = pr['w1'].shape[1]

    out_shapes = (
        jax.ShapeDtypeStruct((num_graphs, prot_out), jnp.float32),
        jax.ShapeDtypeStruct((n_nodes, res_out), jnp.float32),
    )

    # advisory cost estimate for the XLA scheduler (free hint)
    flops = (2 * n_nodes * node_in * hidden
             + 2 * n_edges * edge_dim * n_layers * hidden
             + n_layers * (3 * 2 * n_nodes * hidden * hidden
                           + 2 * n_edges * 2 * n_nodes * hidden
                           + 2 * n_nodes * n_edges * hidden)
             + 2 * n_nodes * hidden * h2p + 2 * n_nodes * h2p * out_dim
             + 2 * num_graphs * n_nodes * out_dim
             + 2 * num_graphs * out_dim * p_inner
             + 2 * num_graphs * p_inner * prot_out
             + 2 * n_nodes * out_dim * r_inner
             + 2 * n_nodes * r_inner * res_out)
    bytes_accessed = sum(int(a.size) * a.dtype.itemsize for a in inputs)
    bytes_accessed += num_graphs * prot_out * 4 + n_nodes * res_out * 4

    graph_feature, residue_feature = pl.pallas_call(
        _dccm_gnn_kernel,
        out_shape=out_shapes,
        in_specs=[_vmem_spec() for _ in inputs],
        out_specs=(_vmem_spec(), _vmem_spec()),
        scratch_shapes=[pltpu.VMEM((2 * n_nodes, hidden), jnp.bfloat16)],
        compiler_params=pltpu.CompilerParams(
            vmem_limit_bytes=32 * 1024 * 1024),   # > v5e's 16 MiB scoped default
        cost_estimate=pl.CostEstimate(
            flops=int(flops),
            transcendentals=int(n_nodes * n_layers),
            bytes_accessed=int(bytes_accessed)),
    )(*inputs)

    return graph_feature, residue_feature


# ------------------------------------------------------------------ main ----

if __name__ == "__main__":
    # Small, lane-dense config consistent with the module defaults
    # (node_input_dim, hidden_dim, output_dim, projector dims shrunk to 128).
    N_NODES, N_EDGES, N_GRAPHS = 16, 48, 2
    NODE_IN_DIM, EDGE_DIM = 128, 8
    HIDDEN_DIM, OUTPUT_DIM = 128, 128
    PROT_INNER, PROT_OUT = 128, 128
    RES_INNER, RES_OUT = 128, 128
    NUM_LAYERS = 3

    key = jax.random.PRNGKey(0)
    kx, ke, kea, kp = jax.random.split(key, 4)

    # node features
    x = jax.random.normal(kx, (N_NODES, NODE_IN_DIM), dtype=jnp.float32)

    # two graphs: nodes 0..7 belong to graph 0, nodes 8..15 to graph 1
    batch = jnp.concatenate([jnp.zeros((N_NODES // 2,), jnp.int32),
                             jnp.ones((N_NODES - N_NODES // 2,), jnp.int32)])

    # random intra-graph edges (PyG convention: row 0 = source, row 1 = target)
    half = N_EDGES // 2
    src0 = jax.random.randint(jax.random.fold_in(ke, 0), (half,), 0,
                              N_NODES // 2, dtype=jnp.int32)
    dst0 = jax.random.randint(jax.random.fold_in(ke, 1), (half,), 0,
                              N_NODES // 2, dtype=jnp.int32)
    src1 = jax.random.randint(jax.random.fold_in(ke, 2), (half,), N_NODES // 2,
                              N_NODES, dtype=jnp.int32)
    dst1 = jax.random.randint(jax.random.fold_in(ke, 3), (half,), N_NODES // 2,
                              N_NODES, dtype=jnp.int32)
    edge_index = jnp.stack([jnp.concatenate([src0, src1]),
                            jnp.concatenate([dst0, dst1])])
    edge_attr = jax.random.normal(kea, (N_EDGES, EDGE_DIM), dtype=jnp.float32)

    params = init_params(kp, NODE_IN_DIM, EDGE_DIM, HIDDEN_DIM, OUTPUT_DIM,
                         PROT_INNER, PROT_OUT, RES_INNER, RES_OUT, NUM_LAYERS)

    graph_feature, residue_feature = dccm_gnn_forward(
        params, x, edge_index, edge_attr, batch, N_GRAPHS)
    jax.block_until_ready((graph_feature, residue_feature))

    assert graph_feature.shape == (N_GRAPHS, PROT_OUT)
    assert residue_feature.shape == (N_NODES, RES_OUT)
    assert bool(jnp.all(jnp.isfinite(graph_feature)))
    assert bool(jnp.all(jnp.isfinite(residue_feature)))
    print("KERNEL_OK")
</pallas_src>

<mosaic_0001>
module attributes {stable_mosaic.version = 11 : i64} {
  func.func @_dccm_gnn_kernel(%arg0: memref<16x128xbf16, #tpu.memory_space<vmem>>, %arg1: memref<48x32xbf16, #tpu.memory_space<vmem>>, %arg2: memref<16x48xbf16, #tpu.memory_space<vmem>>, %arg3: memref<16x1xf32, #tpu.memory_space<vmem>>, %arg4: memref<48x8xbf16, #tpu.memory_space<vmem>>, %arg5: memref<2x16xbf16, #tpu.memory_space<vmem>>, %arg6: memref<2x1xf32, #tpu.memory_space<vmem>>, %arg7: memref<128x128xbf16, #tpu.memory_space<vmem>>, %arg8: memref<1x128xf32, #tpu.memory_space<vmem>>, %arg9: memref<3x128x128xbf16, #tpu.memory_space<vmem>>, %arg10: memref<3x1x128xf32, #tpu.memory_space<vmem>>, %arg11: memref<3x128x128xbf16, #tpu.memory_space<vmem>>, %arg12: memref<3x128x128xbf16, #tpu.memory_space<vmem>>, %arg13: memref<8x384xbf16, #tpu.memory_space<vmem>>, %arg14: memref<3x1x128xf32, #tpu.memory_space<vmem>>, %arg15: memref<3x1x128xf32, #tpu.memory_space<vmem>>, %arg16: memref<3x1x128xf32, #tpu.memory_space<vmem>>, %arg17: memref<128x128xbf16, #tpu.memory_space<vmem>>, %arg18: memref<1x128xf32, #tpu.memory_space<vmem>>, %arg19: memref<128x128xbf16, #tpu.memory_space<vmem>>, %arg20: memref<1x128xf32, #tpu.memory_space<vmem>>, %arg21: memref<128x128xbf16, #tpu.memory_space<vmem>>, %arg22: memref<1x128xf32, #tpu.memory_space<vmem>>, %arg23: memref<128x128xbf16, #tpu.memory_space<vmem>>, %arg24: memref<1x128xf32, #tpu.memory_space<vmem>>, %arg25: memref<128x128xbf16, #tpu.memory_space<vmem>>, %arg26: memref<1x128xf32, #tpu.memory_space<vmem>>, %arg27: memref<128x128xbf16, #tpu.memory_space<vmem>>, %arg28: memref<1x128xf32, #tpu.memory_space<vmem>>, %arg29: memref<2x128xf32, #tpu.memory_space<vmem>>, %arg30: memref<16x128xf32, #tpu.memory_space<vmem>>, %arg31: memref<32x128xbf16, #tpu.memory_space<vmem>>) attributes {dimension_semantics = [], scalar_prefetch = 0 : i64, scratch_operands = 1 : i64, tpu.core_type = #tpu.core_type<tc>} {
    %c0 = arith.constant 0 : index
    %c0_0 = arith.constant 0 : index
    %0 = vector.load %arg0[%c0, %c0_0] : memref<16x128xbf16, #tpu.memory_space<vmem>>, vector<16x128xbf16>
    %c0_1 = arith.constant 0 : index
    %c0_2 = arith.constant 0 : index
    %1 = vector.load %arg7[%c0_1, %c0_2] : memref<128x128xbf16, #tpu.memory_space<vmem>>, vector<128x128xbf16>
    %cst = arith.constant dense<0.000000e+00> : vector<16x128xf32>
    %2 = tpu.matmul %0, %1, %cst {dimension_numbers = #tpu.dot_dimension_numbers<[1], [0], [0], [1], [0, 0, 1, 1], [], []>} : vector<16x128xbf16>, vector<128x128xbf16>, vector<16x128xf32> -> vector<16x128xf32>
    %c0_3 = arith.constant 0 : index
    %c0_4 = arith.constant 0 : index
    %3 = vector.load %arg8[%c0_3, %c0_4] : memref<1x128xf32, #tpu.memory_space<vmem>>, vector<1x128xf32>
    %4 = vector.broadcast %3 : vector<1x128xf32> to vector<16x128xf32>
    %5 = arith.addf %2, %4 : vector<16x128xf32>
    %cst_5 = arith.constant 0.000000e+00 : f32
    %6 = vector.broadcast %cst_5 : f32 to vector<16x128xf32>
    %7 = arith.maximumf %5, %6 : vector<16x128xf32>
    %c0_6 = arith.constant 0 : index
    %c0_7 = arith.constant 0 : index
    %8 = vector.load %arg1[%c0_6, %c0_7] : memref<48x32xbf16, #tpu.memory_space<vmem>>, vector<48x32xbf16>
    %c0_8 = arith.constant 0 : index
    %c0_9 = arith.constant 0 : index
    %9 = vector.load %arg2[%c0_8, %c0_9] : memref<16x48xbf16, #tpu.memory_space<vmem>>, vector<16x48xbf16>
    %c0_10 = arith.constant 0 : index
    %c0_11 = arith.constant 0 : index
    %10 = vector.load %arg3[%c0_10, %c0_11] : memref<16x1xf32, #tpu.memory_space<vmem>>, vector<16x1xf32>
    %c0_12 = arith.constant 0 : index
    %c0_13 = arith.constant 0 : index
    %11 = vector.load %arg4[%c0_12, %c0_13] : memref<48x8xbf16, #tpu.memory_space<vmem>>, vector<48x8xbf16>
    %c0_14 = arith.constant 0 : index
    %c0_15 = arith.constant 0 : index
    %12 = vector.load %arg13[%c0_14, %c0_15] : memref<8x384xbf16, #tpu.memory_space<vmem>>, vector<8x384xbf16>
    %cst_16 = arith.constant dense<0.000000e+00> : vector<48x384xf32>
    %13 = tpu.matmul %11, %12, %cst_16 {dimension_numbers = #tpu.dot_dimension_numbers<[1], [0], [0], [1], [0, 0, 1, 1], [], []>} : vector<48x8xbf16>, vector<8x384xbf16>, vector<48x384xf32> -> vector<48x384xf32>
    %c0_17 = arith.constant 0 : index
    %c0_18 = arith.constant 0 : index
    %c0_19 = arith.constant 0 : index
    %14 = vector.load %arg9[%c0_17, %c0_18, %c0_19] : memref<3x128x128xbf16, #tpu.memory_space<vmem>>, vector<1x128x128xbf16>
    %15 = vector.shape_cast %14 : vector<1x128x128xbf16> to vector<128x128xbf16>
    %16 = arith.truncf %7 : vector<16x128xf32> to vector<16x128xbf16>
    %cst_20 = arith.constant dense<0.000000e+00> : vector<16x128xf32>
    %17 = tpu.matmul %16, %15, %cst_20 {dimension_numbers = #tpu.dot_dimension_numbers<[1], [0], [0], [1], [0, 0, 1, 1], [], []>} : vector<16x128xbf16>, vector<128x128xbf16>, vector<16x128xf32> -> vector<16x128xf32>
    %c0_21 = arith.constant 0 : index
    %c0_22 = arith.constant 0 : index
    %c0_23 = arith.constant 0 : index
    %18 = vector.load %arg10[%c0_21, %c0_22, %c0_23] : memref<3x1x128xf32, #tpu.memory_space<vmem>>, vector<1x1x128xf32>
    %19 = vector.shape_cast %18 : vector<1x1x128xf32> to vector<1x128xf32>
    %20 = vector.broadcast %19 : vector<1x128xf32> to vector<16x128xf32>
    %21 = arith.addf %17, %20 : vector<16x128xf32>
    %22 = arith.truncf %21 : vector<16x128xf32> to vector<16x128xbf16>
    %c0_24 = arith.constant 0 : index
    %c0_25 = arith.constant 0 : index
    %c0_26 = arith.constant 0 : index
    %23 = vector.load %arg11[%c0_24, %c0_25, %c0_26] : memref<3x128x128xbf16, #tpu.memory_space<vmem>>, vector<1x128x128xbf16>
    %24 = vector.shape_cast %23 : vector<1x128x128xbf16> to vector<128x128xbf16>
    %cst_27 = arith.constant dense<0.000000e+00> : vector<16x128xf32>
    %25 = tpu.matmul %22, %24, %cst_27 {dimension_numbers = #tpu.dot_dimension_numbers<[1], [0], [0], [1], [0, 0, 1, 1], [], []>} : vector<16x128xbf16>, vector<128x128xbf16>, vector<16x128xf32> -> vector<16x128xf32>
    %c0_28 = arith.constant 0 : index
    %c0_29 = arith.constant 0 : index
    %c0_30 = arith.constant 0 : index
    %26 = vector.load %arg12[%c0_28, %c0_29, %c0_30] : memref<3x128x128xbf16, #tpu.memory_space<vmem>>, vector<1x128x128xbf16>
    %27 = vector.shape_cast %26 : vector<1x128x128xbf16> to vector<128x128xbf16>
    %cst_31 = arith.constant dense<0.000000e+00> : vector<16x128xf32>
    %28 = tpu.matmul %22, %27, %cst_31 {dimension_numbers = #tpu.dot_dimension_numbers<[1], [0], [0], [1], [0, 0, 1, 1], [], []>} : vector<16x128xbf16>, vector<128x128xbf16>, vector<16x128xf32> -> vector<16x128xf32>
    %29 = arith.truncf %25 : vector<16x128xf32> to vector<16x128xbf16>
    %c0_32 = arith.constant 0 : index
    %c0_33 = arith.constant 0 : index
    %30 = vector.load %arg31[%c0_32, %c0_33] : memref<32x128xbf16, #tpu.memory_space<vmem>>, vector<16x128xbf16>
    tpu.vector_store %arg31[%c0_32, %c0_33], %29 {strides = array<i32>} : memref<32x128xbf16, #tpu.memory_space<vmem>>, vector<16x128xbf16>,
    %31 = arith.truncf %28 : vector<16x128xf32> to vector<16x128xbf16>
    %c16 = arith.constant 16 : index
    %c0_34 = arith.constant 0 : index
    %32 = vector.load %arg31[%c16, %c0_34] : memref<32x128xbf16, #tpu.memory_space<vmem>>, vector<16x128xbf16>
    tpu.vector_store %arg31[%c16, %c0_34], %31 {strides = array<i32>} : memref<32x128xbf16, #tpu.memory_space<vmem>>, vector<16x128xbf16>,
    %c0_35 = arith.constant 0 : index
    %c0_36 = arith.constant 0 : index
    %33 = vector.load %arg31[%c0_35, %c0_36] : memref<32x128xbf16, #tpu.memory_space<vmem>>, vector<32x128xbf16>
    %cst_37 = arith.constant dense<0.000000e+00> : vector<48x128xf32>
    %34 = tpu.matmul %8, %33, %cst_37 {dimension_numbers = #tpu.dot_dimension_numbers<[1], [0], [0], [1], [0, 0, 1, 1], [], []>} : vector<48x32xbf16>, vector<32x128xbf16>, vector<48x128xf32> -> vector<48x128xf32>
    %35 = vector.extract_strided_slice %13 {offsets = [0, 0], sizes = [48, 128], strides = [1, 1]} : vector<48x384xf32> to vector<48x128xf32>
    %36 = arith.addf %34, %35 : vector<48x128xf32>
    %c0_38 = arith.constant 0 : index
    %c0_39 = arith.constant 0 : index
    %c0_40 = arith.constant 0 : index
    %37 = vector.load %arg14[%c0_38, %c0_39, %c0_40] : memref<3x1x128xf32, #tpu.memory_space<vmem>>, vector<1x1x128xf32>
    %38 = vector.shape_cast %37 : vector<1x1x128xf32> to vector<1x128xf32>
    %39 = vector.broadcast %38 : vector<1x128xf32> to vector<48x128xf32>
    %40 = arith.addf %36, %39 : vector<48x128xf32>
    %cst_41 = arith.constant 0.000000e+00 : f32
    %41 = vector.broadcast %cst_41 : f32 to vector<48x128xf32>
    %42 = arith.maximumf %40, %41 : vector<48x128xf32>
    %43 = arith.truncf %42 : vector<48x128xf32> to vector<48x128xbf16>
    %cst_42 = arith.constant dense<0.000000e+00> : vector<16x128xf32>
    %44 = tpu.matmul %9, %43, %cst_42 {dimension_numbers = #tpu.dot_dimension_numbers<[1], [0], [0], [1], [0, 0, 1, 1], [], []>} : vector<16x48xbf16>, vector<48x128xbf16>, vector<16x128xf32> -> vector<16x128xf32>
    %45 = vector.broadcast %10 : vector<16x1xf32> to vector<16x128xf32>
    %46 = arith.mulf %44, %45 : vector<16x128xf32>
    %47 = arith.addf %46, %21 : vector<16x128xf32>
    %cst_43 = arith.constant dense<0.000000e+00> : vector<16xf32>
    %48 = vector.multi_reduction <add>, %47, %cst_43 [1] : vector<16x128xf32> to vector<16xf32>
    %49 = vector.shape_cast %48 : vector<16xf32> to vector<16x1xf32>
    %cst_44 = arith.constant 1.280000e+02 : f32
    %50 = vector.broadcast %cst_44 : f32 to vector<16x1xf32>
    %51 = arith.divf %49, %50 : vector<16x1xf32>
    %52 = vector.broadcast %51 : vector<16x1xf32> to vector<16x128xf32>
    %53 = arith.subf %47, %52 : vector<16x128xf32>
    %54 = arith.mulf %53, %53 : vector<16x128xf32>
    %cst_45 = arith.constant dense<0.000000e+00> : vector<16xf32>
    %55 = vector.multi_reduction <add>, %54, %cst_45 [1] : vector<16x128xf32> to vector<16xf32>
    %56 = vector.shape_cast %55 : vector<16xf32> to vector<16x1xf32>
    %cst_46 = arith.constant 1.280000e+02 : f32
    %57 = vector.broadcast %cst_46 : f32 to vector<16x1xf32>
    %58 = arith.divf %56, %57 : vector<16x1xf32>
    %59 = vector.broadcast %51 : vector<16x1xf32> to vector<16x128xf32>
    %60 = arith.subf %47, %59 : vector<16x128xf32>
    %cst_47 = arith.constant 9.99999974E-6 : f32
    %61 = vector.broadcast %cst_47 : f32 to vector<16x1xf32>
    %62 = arith.addf %58, %61 : vector<16x1xf32>
    %63 = math.rsqrt %62 : vector<16x1xf32>
    %64 = vector.broadcast %63 : vector<16x1xf32> to vector<16x128xf32>
    %65 = arith.mulf %60, %64 : vector<16x128xf32>
    %c0_48 = arith.constant 0 : index
    %c0_49 = arith.constant 0 : index
    %c0_50 = arith.constant 0 : index
    %66 = vector.load %arg15[%c0_48, %c0_49, %c0_50] : memref<3x1x128xf32, #tpu.memory_space<vmem>>, vector<1x1x128xf32>
    %67 = vector.shape_cast %66 : vector<1x1x128xf32> to vector<1x128xf32>
    %68 = vector.broadcast %67 : vector<1x128xf32> to vector<16x128xf32>
    %69 = arith.mulf %65, %68 : vector<16x128xf32>
    %c0_51 = arith.constant 0 : index
    %c0_52 = arith.constant 0 : index
    %c0_53 = arith.constant 0 : index
    %70 = vector.load %arg16[%c0_51, %c0_52, %c0_53] : memref<3x1x128xf32, #tpu.memory_space<vmem>>, vector<1x1x128xf32>
    %71 = vector.shape_cast %70 : vector<1x1x128xf32> to vector<1x128xf32>
    %72 = vector.broadcast %71 : vector<1x128xf32> to vector<16x128xf32>
    %73 = arith.addf %69, %72 : vector<16x128xf32>
    %c1 = arith.constant 1 : index
    %c0_54 = arith.constant 0 : index
    %c0_55 = arith.constant 0 : index
    %74 = vector.load %arg9[%c1, %c0_54, %c0_55] : memref<3x128x128xbf16, #tpu.memory_space<vmem>>, vector<1x128x128xbf16>
    %75 = vector.shape_cast %74 : vector<1x128x128xbf16> to vector<128x128xbf16>
    %76 = arith.truncf %73 : vector<16x128xf32> to vector<16x128xbf16>
    %cst_56 = arith.constant dense<0.000000e+00> : vector<16x128xf32>
    %77 = tpu.matmul %76, %75, %cst_56 {dimension_numbers = #tpu.dot_dimension_numbers<[1], [0], [0], [1], [0, 0, 1, 1], [], []>} : vector<16x128xbf16>, vector<128x128xbf16>, vector<16x128xf32> -> vector<16x128xf32>
    %c1_57 = arith.constant 1 : index
    %c0_58 = arith.constant 0 : index
    %c0_59 = arith.constant 0 : index
    %78 = vector.load %arg10[%c1_57, %c0_58, %c0_59] : memref<3x1x128xf32, #tpu.memory_space<vmem>>, vector<1x1x128xf32>
    %79 = vector.shape_cast %78 : vector<1x1x128xf32> to vector<1x128xf32>
    %80 = vector.broadcast %79 : vector<1x128xf32> to vector<16x128xf32>
    %81 = arith.addf %77, %80 : vector<16x128xf32>
    %82 = arith.truncf %81 : vector<16x128xf32> to vector<16x128xbf16>
    %c1_60 = arith.constant 1 : index
    %c0_61 = arith.constant 0 : index
    %c0_62 = arith.constant 0 : index
    %83 = vector.load %arg11[%c1_60, %c0_61, %c0_62] : memref<3x128x128xbf16, #tpu.memory_space<vmem>>, vector<1x128x128xbf16>
    %84 = vector.shape_cast %83 : vector<1x128x128xbf16> to vector<128x128xbf16>
    %cst_63 = arith.constant dense<0.000000e+00> : vector<16x128xf32>
    %85 = tpu.matmul %82, %84, %cst_63 {dimension_numbers = #tpu.dot_dimension_numbers<[1], [0], [0], [1], [0, 0, 1, 1], [], []>} : vector<16x128xbf16>, vector<128x128xbf16>, vector<16x128xf32> -> vector<16x128xf32>
    %c1_64 = arith.constant 1 : index
    %c0_65 = arith.constant 0 : index
    %c0_66 = arith.constant 0 : index
    %86 = vector.load %arg12[%c1_64, %c0_65, %c0_66] : memref<3x128x128xbf16, #tpu.memory_space<vmem>>, vector<1x128x128xbf16>
    %87 = vector.shape_cast %86 : vector<1x128x128xbf16> to vector<128x128xbf16>
    %cst_67 = arith.constant dense<0.000000e+00> : vector<16x128xf32>
    %88 = tpu.matmul %82, %87, %cst_67 {dimension_numbers = #tpu.dot_dimension_numbers<[1], [0], [0], [1], [0, 0, 1, 1], [], []>} : vector<16x128xbf16>, vector<128x128xbf16>, vector<16x128xf32> -> vector<16x128xf32>
    %89 = arith.truncf %85 : vector<16x128xf32> to vector<16x128xbf16>
    %c0_68 = arith.constant 0 : index
    %c0_69 = arith.constant 0 : index
    %90 = vector.load %arg31[%c0_68, %c0_69] : memref<32x128xbf16, #tpu.memory_space<vmem>>, vector<16x128xbf16>
    tpu.vector_store %arg31[%c0_68, %c0_69], %89 {strides = array<i32>} : memref<32x128xbf16, #tpu.memory_space<vmem>>, vector<16x128xbf16>,
    %91 = arith.truncf %88 : vector<16x128xf32> to vector<16x128xbf16>
    %c16_70 = arith.constant 16 : index
    %c0_71 = arith.constant 0 : index
    %92 = vector.load %arg31[%c16_70, %c0_71] : memref<32x128xbf16, #tpu.memory_space<vmem>>, vector<16x128xbf16>
    tpu.vector_store %arg31[%c16_70, %c0_71], %91 {strides = array<i32>} : memref<32x128xbf16, #tpu.memory_space<vmem>>, vector<16x128xbf16>,
    %c0_72 = arith.constant 0 : index
    %c0_73 = arith.constant 0 : index
    %93 = vector.load %arg31[%c0_72, %c0_73] : memref<32x128xbf16, #tpu.memory_space<vmem>>, vector<32x128xbf16>
    %cst_74 = arith.constant dense<0.000000e+00> : vector<48x128xf32>
    %94 = tpu.matmul %8, %93, %cst_74 {dimension_numbers = #tpu.dot_dimension_numbers<[1], [0], [0], [1], [0, 0, 1, 1], [], []>} : vector<48x32xbf16>, vector<32x128xbf16>, vector<48x128xf32> -> vector<48x128xf32>
    %95 = vector.extract_strided_slice %13 {offsets = [0, 128], sizes = [48, 128], strides = [1, 1]} : vector<48x384xf32> to vector<48x128xf32>
    %96 = arith.addf %94, %95 : vector<48x128xf32>
    %c1_75 = arith.constant 1 : index
    %c0_76 = arith.constant 0 : index
    %c0_77 = arith.constant 0 : index
    %97 = vector.load %arg14[%c1_75, %c0_76, %c0_77] : memref<3x1x128xf32, #tpu.memory_space<vmem>>, vector<1x1x128xf32>
    %98 = vector.shape_cast %97 : vector<1x1x128xf32> to vector<1x128xf32>
    %99 = vector.broadcast %98 : vector<1x128xf32> to vector<48x128xf32>
    %100 = arith.addf %96, %99 : vector<48x128xf32>
    %cst_78 = arith.constant 0.000000e+00 : f32
    %101 = vector.broadcast %cst_78 : f32 to vector<48x128xf32>
    %102 = arith.maximumf %100, %101 : vector<48x128xf32>
    %103 = arith.truncf %102 : vector<48x128xf32> to vector<48x128xbf16>
    %cst_79 = arith.constant dense<0.000000e+00> : vector<16x128xf32>
    %104 = tpu.matmul %9, %103, %cst_79 {dimension_numbers = #tpu.dot_dimension_numbers<[1], [0], [0], [1], [0, 0, 1, 1], [], []>} : vector<16x48xbf16>, vector<48x128xbf16>, vector<16x128xf32> -> vector<16x128xf32>
    %105 = vector.broadcast %10 : vector<16x1xf32> to vector<16x128xf32>
    %106 = arith.mulf %104, %105 : vector<16x128xf32>
    %107 = arith.addf %106, %81 : vector<16x128xf32>
    %cst_80 = arith.constant dense<0.000000e+00> : vector<16xf32>
    %108 = vector.multi_reduction <add>, %107, %cst_80 [1] : vector<16x128xf32> to vector<16xf32>
    %109 = vector.shape_cast %108 : vector<16xf32> to vector<16x1xf32>
    %cst_81 = arith.constant 1.280000e+02 : f32
    %110 = vector.broadcast %cst_81 : f32 to vector<16x1xf32>
    %111 = arith.divf %109, %110 : vector<16x1xf32>
    %112 = vector.broadcast %111 : vector<16x1xf32> to vector<16x128xf32>
    %113 = arith.subf %107, %112 : vector<16x128xf32>
    %114 = arith.mulf %113, %113 : vector<16x128xf32>
    %cst_82 = arith.constant dense<0.000000e+00> : vector<16xf32>
    %115 = vector.multi_reduction <add>, %114, %cst_82 [1] : vector<16x128xf32> to vector<16xf32>
    %116 = vector.shape_cast %115 : vector<16xf32> to vector<16x1xf32>
    %cst_83 = arith.constant 1.280000e+02 : f32
    %117 = vector.broadcast %cst_83 : f32 to vector<16x1xf32>
    %118 = arith.divf %116, %117 : vector<16x1xf32>
    %119 = vector.broadcast %111 : vector<16x1xf32> to vector<16x128xf32>
    %120 = arith.subf %107, %119 : vector<16x128xf32>
    %cst_84 = arith.constant 9.99999974E-6 : f32
    %121 = vector.broadcast %cst_84 : f32 to vector<16x1xf32>
    %122 = arith.addf %118, %121 : vector<16x1xf32>
    %123 = math.rsqrt %122 : vector<16x1xf32>
    %124 = vector.broadcast %123 : vector<16x1xf32> to vector<16x128xf32>
    %125 = arith.mulf %120, %124 : vector<16x128xf32>
    %c1_85 = arith.constant 1 : index
    %c0_86 = arith.constant 0 : index
    %c0_87 = arith.constant 0 : index
    %126 = vector.load %arg15[%c1_85, %c0_86, %c0_87] : memref<3x1x128xf32, #tpu.memory_space<vmem>>, vector<1x1x128xf32>
    %127 = vector.shape_cast %126 : vector<1x1x128xf32> to vector<1x128xf32>
    %128 = vector.broadcast %127 : vector<1x128xf32> to vector<16x128xf32>
    %129 = arith.mulf %125, %128 : vector<16x128xf32>
    %c1_88 = arith.constant 1 : index
    %c0_89 = arith.constant 0 : index
    %c0_90 = arith.constant 0 : index
    %130 = vector.load %arg16[%c1_88, %c0_89, %c0_90] : memref<3x1x128xf32, #tpu.memory_space<vmem>>, vector<1x1x128xf32>
    %131 = vector.shape_cast %130 : vector<1x1x128xf32> to vector<1x128xf32>
    %132 = vector.broadcast %131 : vector<1x128xf32> to vector<16x128xf32>
    %133 = arith.addf %129, %132 : vector<16x128xf32>
    %c2 = arith.constant 2 : index
    %c0_91 = arith.constant 0 : index
    %c0_92 = arith.constant 0 : index
    %134 = vector.load %arg9[%c2, %c0_91, %c0_92] : memref<3x128x128xbf16, #tpu.memory_space<vmem>>, vector<1x128x128xbf16>
    %135 = vector.shape_cast %134 : vector<1x128x128xbf16> to vector<128x128xbf16>
    %136 = arith.truncf %133 : vector<16x128xf32> to vector<16x128xbf16>
    %cst_93 = arith.constant dense<0.000000e+00> : vector<16x128xf32>
    %137 = tpu.matmul %136, %135, %cst_93 {dimension_numbers = #tpu.dot_dimension_numbers<[1], [0], [0], [1], [0, 0, 1, 1], [], []>} : vector<16x128xbf16>, vector<128x128xbf16>, vector<16x128xf32> -> vector<16x128xf32>
    %c2_94 = arith.constant 2 : index
    %c0_95 = arith.constant 0 : index
    %c0_96 = arith.constant 0 : index
    %138 = vector.load %arg10[%c2_94, %c0_95, %c0_96] : memref<3x1x128xf32, #tpu.memory_space<vmem>>, vector<1x1x128xf32>
    %139 = vector.shape_cast %138 : vector<1x1x128xf32> to vector<1x128xf32>
    %140 = vector.broadcast %139 : vector<1x128xf32> to vector<16x128xf32>
    %141 = arith.addf %137, %140 : vector<16x128xf32>
    %142 = arith.truncf %141 : vector<16x128xf32> to vector<16x128xbf16>
    %c2_97 = arith.constant 2 : index
    %c0_98 = arith.constant 0 : index
    %c0_99 = arith.constant 0 : index
    %143 = vector.load %arg11[%c2_97, %c0_98, %c0_99] : memref<3x128x128xbf16, #tpu.memory_space<vmem>>, vector<1x128x128xbf16>
    %144 = vector.shape_cast %143 : vector<1x128x128xbf16> to vector<128x128xbf16>
    %cst_100 = arith.constant dense<0.000000e+00> : vector<16x128xf32>
    %145 = tpu.matmul %142, %144, %cst_100 {dimension_numbers = #tpu.dot_dimension_numbers<[1], [0], [0], [1], [0, 0, 1, 1], [], []>} : vector<16x128xbf16>, vector<128x128xbf16>, vector<16x128xf32> -> vector<16x128xf32>
    %c2_101 = arith.constant 2 : index
    %c0_102 = arith.constant 0 : index
    %c0_103 = arith.constant 0 : index
    %146 = vector.load %arg12[%c2_101, %c0_102, %c0_103] : memref<3x128x128xbf16, #tpu.memory_space<vmem>>, vector<1x128x128xbf16>
    %147 = vector.shape_cast %146 : vector<1x128x128xbf16> to vector<128x128xbf16>
    %cst_104 = arith.constant dense<0.000000e+00> : vector<16x128xf32>
    %148 = tpu.matmul %142, %147, %cst_104 {dimension_numbers = #tpu.dot_dimension_numbers<[1], [0], [0], [1], [0, 0, 1, 1], [], []>} : vector<16x128xbf16>, vector<128x128xbf16>, vector<16x128xf32> -> vector<16x128xf32>
    %149 = arith.truncf %145 : vector<16x128xf32> to vector<16x128xbf16>
    %c0_105 = arith.constant 0 : index
    %c0_106 = arith.constant 0 : index
    %150 = vector.load %arg31[%c0_105, %c0_106] : memref<32x128xbf16, #tpu.memory_space<vmem>>, vector<16x128xbf16>
    tpu.vector_store %arg31[%c0_105, %c0_106], %149 {strides = array<i32>} : memref<32x128xbf16, #tpu.memory_space<vmem>>, vector<16x128xbf16>,
    %151 = arith.truncf %148 : vector<16x128xf32> to vector<16x128xbf16>
    %c16_107 = arith.constant 16 : index
    %c0_108 = arith.constant 0 : index
    %152 = vector.load %arg31[%c16_107, %c0_108] : memref<32x128xbf16, #tpu.memory_space<vmem>>, vector<16x128xbf16>
    tpu.vector_store %arg31[%c16_107, %c0_108], %151 {strides = array<i32>} : memref<32x128xbf16, #tpu.memory_space<vmem>>, vector<16x128xbf16>,
    %c0_109 = arith.constant 0 : index
    %c0_110 = arith.constant 0 : index
    %153 = vector.load %arg31[%c0_109, %c0_110] : memref<32x128xbf16, #tpu.memory_space<vmem>>, vector<32x128xbf16>
    %cst_111 = arith.constant dense<0.000000e+00> : vector<48x128xf32>
    %154 = tpu.matmul %8, %153, %cst_111 {dimension_numbers = #tpu.dot_dimension_numbers<[1], [0], [0], [1], [0, 0, 1, 1], [], []>} : vector<48x32xbf16>, vector<32x128xbf16>, vector<48x128xf32> -> vector<48x128xf32>
    %155 = vector.extract_strided_slice %13 {offsets = [0, 256], sizes = [48, 128], strides = [1, 1]} : vector<48x384xf32> to vector<48x128xf32>
    %156 = arith.addf %154, %155 : vector<48x128xf32>
    %c2_112 = arith.constant 2 : index
    %c0_113 = arith.constant 0 : index
    %c0_114 = arith.constant 0 : index
    %157 = vector.load %arg14[%c2_112, %c0_113, %c0_114] : memref<3x1x128xf32, #tpu.memory_space<vmem>>, vector<1x1x128xf32>
    %158 = vector.shape_cast %157 : vector<1x1x128xf32> to vector<1x128xf32>
    %159 = vector.broadcast %158 : vector<1x128xf32> to vector<48x128xf32>
    %160 = arith.addf %156, %159 : vector<48x128xf32>
    %cst_115 = arith.constant 0.000000e+00 : f32
    %161 = vector.broadcast %cst_115 : f32 to vector<48x128xf32>
    %162 = arith.maximumf %160, %161 : vector<48x128xf32>
    %163 = arith.truncf %162 : vector<48x128xf32> to vector<48x128xbf16>
    %cst_116 = arith.constant dense<0.000000e+00> : vector<16x128xf32>
    %164 = tpu.matmul %9, %163, %cst_116 {dimension_numbers = #tpu.dot_dimension_numbers<[1], [0], [0], [1], [0, 0, 1, 1], [], []>} : vector<16x48xbf16>, vector<48x128xbf16>, vector<16x128xf32> -> vector<16x128xf32>
    %165 = vector.broadcast %10 : vector<16x1xf32> to vector<16x128xf32>
    %166 = arith.mulf %164, %165 : vector<16x128xf32>
    %167 = arith.addf %166, %141 : vector<16x128xf32>
    %cst_117 = arith.constant dense<0.000000e+00> : vector<16xf32>
    %168 = vector.multi_reduction <add>, %167, %cst_117 [1] : vector<16x128xf32> to vector<16xf32>
    %169 = vector.shape_cast %168 : vector<16xf32> to vector<16x1xf32>
    %cst_118 = arith.constant 1.280000e+02 : f32
    %170 = vector.broadcast %cst_118 : f32 to vector<16x1xf32>
    %171 = arith.divf %169, %170 : vector<16x1xf32>
    %172 = vector.broadcast %171 : vector<16x1xf32> to vector<16x128xf32>
    %173 = arith.subf %167, %172 : vector<16x128xf32>
    %174 = arith.mulf %173, %173 : vector<16x128xf32>
    %cst_119 = arith.constant dense<0.000000e+00> : vector<16xf32>
    %175 = vector.multi_reduction <add>, %174, %cst_119 [1] : vector<16x128xf32> to vector<16xf32>
    %176 = vector.shape_cast %175 : vector<16xf32> to vector<16x1xf32>
    %cst_120 = arith.constant 1.280000e+02 : f32
    %177 = vector.broadcast %cst_120 : f32 to vector<16x1xf32>
    %178 = arith.divf %176, %177 : vector<16x1xf32>
    %179 = vector.broadcast %171 : vector<16x1xf32> to vector<16x128xf32>
    %180 = arith.subf %167, %179 : vector<16x128xf32>
    %cst_121 = arith.constant 9.99999974E-6 : f32
    %181 = vector.broadcast %cst_121 : f32 to vector<16x1xf32>
    %182 = arith.addf %178, %181 : vector<16x1xf32>
    %183 = math.rsqrt %182 : vector<16x1xf32>
    %184 = vector.broadcast %183 : vector<16x1xf32> to vector<16x128xf32>
    %185 = arith.mulf %180, %184 : vector<16x128xf32>
    %c2_122 = arith.constant 2 : index
    %c0_123 = arith.constant 0 : index
    %c0_124 = arith.constant 0 : index
    %186 = vector.load %arg15[%c2_122, %c0_123, %c0_124] : memref<3x1x128xf32, #tpu.memory_space<vmem>>, vector<1x1x128xf32>
    %187 = vector.shape_cast %186 : vector<1x1x128xf32> to vector<1x128xf32>
    %188 = vector.broadcast %187 : vector<1x128xf32> to vector<16x128xf32>
    %189 = arith.mulf %185, %188 : vector<16x128xf32>
    %c2_125 = arith.constant 2 : index
    %c0_126 = arith.constant 0 : index
    %c0_127 = arith.constant 0 : index
    %190 = vector.load %arg16[%c2_125, %c0_126, %c0_127] : memref<3x1x128xf32, #tpu.memory_space<vmem>>, vector<1x1x128xf32>
    %191 = vector.shape_cast %190 : vector<1x1x128xf32> to vector<1x128xf32>
    %192 = vector.broadcast %191 : vector<1x128xf32> to vector<16x128xf32>
    %193 = arith.addf %189, %192 : vector<16x128xf32>
    %c0_128 = arith.constant 0 : index
    %c0_129 = arith.constant 0 : index
    %194 = vector.load %arg17[%c0_128, %c0_129] : memref<128x128xbf16, #tpu.memory_space<vmem>>, vector<128x128xbf16>
    %195 = arith.truncf %193 : vector<16x128xf32> to vector<16x128xbf16>
    %cst_130 = arith.constant dense<0.000000e+00> : vector<16x128xf32>
    %196 = tpu.matmul %195, %194, %cst_130 {dimension_numbers = #tpu.dot_dimension_numbers<[1], [0], [0], [1], [0, 0, 1, 1], [], []>} : vector<16x128xbf16>, vector<128x128xbf16>, vector<16x128xf32> -> vector<16x128xf32>
    %c0_131 = arith.constant 0 : index
    %c0_132 = arith.constant 0 : index
    %197 = vector.load %arg18[%c0_131, %c0_132] : memref<1x128xf32, #tpu.memory_space<vmem>>, vector<1x128xf32>
    %198 = vector.broadcast %197 : vector<1x128xf32> to vector<16x128xf32>
    %199 = arith.addf %196, %198 : vector<16x128xf32>
    %cst_133 = arith.constant 0.000000e+00 : f32
    %200 = vector.broadcast %cst_133 : f32 to vector<16x128xf32>
    %201 = arith.maximumf %199, %200 : vector<16x128xf32>
    %c0_134 = arith.constant 0 : index
    %c0_135 = arith.constant 0 : index
    %202 = vector.load %arg19[%c0_134, %c0_135] : memref<128x128xbf16, #tpu.memory_space<vmem>>, vector<128x128xbf16>
    %203 = arith.truncf %201 : vector<16x128xf32> to vector<16x128xbf16>
    %cst_136 = arith.constant dense<0.000000e+00> : vector<16x128xf32>
    %204 = tpu.matmul %203, %202, %cst_136 {dimension_numbers = #tpu.dot_dimension_numbers<[1], [0], [0], [1], [0, 0, 1, 1], [], []>} : vector<16x128xbf16>, vector<128x128xbf16>, vector<16x128xf32> -> vector<16x128xf32>
    %c0_137 = arith.constant 0 : index
    %c0_138 = arith.constant 0 : index
    %205 = vector.load %arg20[%c0_137, %c0_138] : memref<1x128xf32, #tpu.memory_space<vmem>>, vector<1x128xf32>
    %206 = vector.broadcast %205 : vector<1x128xf32> to vector<16x128xf32>
    %207 = arith.addf %204, %206 : vector<16x128xf32>
    %208 = arith.truncf %207 : vector<16x128xf32> to vector<16x128xbf16>
    %c0_139 = arith.constant 0 : index
    %c0_140 = arith.constant 0 : index
    %209 = vector.load %arg5[%c0_139, %c0_140] : memref<2x16xbf16, #tpu.memory_space<vmem>>, vector<2x16xbf16>
    %cst_141 = arith.constant dense<0.000000e+00> : vector<2x128xf32>
    %210 = tpu.matmul %209, %208, %cst_141 {dimension_numbers = #tpu.dot_dimension_numbers<[1], [0], [0], [1], [0, 0, 1, 1], [], []>} : vector<2x16xbf16>, vector<16x128xbf16>, vector<2x128xf32> -> vector<2x128xf32>
    %c0_142 = arith.constant 0 : index
    %c0_143 = arith.constant 0 : index
    %211 = vector.load %arg6[%c0_142, %c0_143] : memref<2x1xf32, #tpu.memory_space<vmem>>, vector<2x1xf32>
    %212 = vector.broadcast %211 : vector<2x1xf32> to vector<2x128xf32>
    %213 = arith.mulf %210, %212 : vector<2x128xf32>
    %c0_144 = arith.constant 0 : index
    %c0_145 = arith.constant 0 : index
    %214 = vector.load %arg21[%c0_144, %c0_145] : memref<128x128xbf16, #tpu.memory_space<vmem>>, vector<128x128xbf16>
    %215 = arith.truncf %213 : vector<2x128xf32> to vector<2x128xbf16>
    %cst_146 = arith.constant dense<0.000000e+00> : vector<2x128xf32>
    %216 = tpu.matmul %215, %214, %cst_146 {dimension_numbers = #tpu.dot_dimension_numbers<[1], [0], [0], [1], [0, 0, 1, 1], [], []>} : vector<2x128xbf16>, vector<128x128xbf16>, vector<2x128xf32> -> vector<2x128xf32>
    %c0_147 = arith.constant 0 : index
    %c0_148 = arith.constant 0 : index
    %217 = vector.load %arg22[%c0_147, %c0_148] : memref<1x128xf32, #tpu.memory_space<vmem>>, vector<1x128xf32>
    %218 = vector.broadcast %217 : vector<1x128xf32> to vector<2x128xf32>
    %219 = arith.addf %216, %218 : vector<2x128xf32>
    %cst_149 = arith.constant 0.000000e+00 : f32
    %220 = vector.broadcast %cst_149 : f32 to vector<2x128xf32>
    %221 = arith.maximumf %219, %220 : vector<2x128xf32>
    %c0_150 = arith.constant 0 : index
    %c0_151 = arith.constant 0 : index
    %222 = vector.load %arg23[%c0_150, %c0_151] : memref<128x128xbf16, #tpu.memory_space<vmem>>, vector<128x128xbf16>
    %223 = arith.truncf %221 : vector<2x128xf32> to vector<2x128xbf16>
    %cst_152 = arith.constant dense<0.000000e+00> : vector<2x128xf32>
    %224 = tpu.matmul %223, %222, %cst_152 {dimension_numbers = #tpu.dot_dimension_numbers<[1], [0], [0], [1], [0, 0, 1, 1], [], []>} : vector<2x128xbf16>, vector<128x128xbf16>, vector<2x128xf32> -> vector<2x128xf32>
    %c0_153 = arith.constant 0 : index
    %c0_154 = arith.constant 0 : index
    %225 = vector.load %arg24[%c0_153, %c0_154] : memref<1x128xf32, #tpu.memory_space<vmem>>, vector<1x128xf32>
    %226 = vector.broadcast %225 : vector<1x128xf32> to vector<2x128xf32>
    %227 = arith.addf %224, %226 : vector<2x128xf32>
    %c0_155 = arith.constant 0 : index
    %c0_156 = arith.constant 0 : index
    %228 = vector.load %arg29[%c0_155, %c0_156] : memref<2x128xf32, #tpu.memory_space<vmem>>, vector<2x128xf32>
    tpu.vector_store %arg29[%c0_155, %c0_156], %227 {strides = array<i32>} : memref<2x128xf32, #tpu.memory_space<vmem>>, vector<2x128xf32>,
    %c0_157 = arith.constant 0 : index
    %c0_158 = arith.constant 0 : index
    %229 = vector.load %arg25[%c0_157, %c0_158] : memref<128x128xbf16, #tpu.memory_space<vmem>>, vector<128x128xbf16>
    %cst_159 = arith.constant dense<0.000000e+00> : vector<16x128xf32>
    %230 = tpu.matmul %208, %229, %cst_159 {dimension_numbers = #tpu.dot_dimension_numbers<[1], [0], [0], [1], [0, 0, 1, 1], [], []>} : vector<16x128xbf16>, vector<128x128xbf16>, vector<16x128xf32> -> vector<16x128xf32>
    %c0_160 = arith.constant 0 : index
    %c0_161 = arith.constant 0 : index
    %231 = vector.load %arg26[%c0_160, %c0_161] : memref<1x128xf32, #tpu.memory_space<vmem>>, vector<1x128xf32>
    %232 = vector.broadcast %231 : vector<1x128xf32> to vector<16x128xf32>
    %233 = arith.addf %230, %232 : vector<16x128xf32>
    %cst_162 = arith.constant 0.000000e+00 : f32
    %234 = vector.broadcast %cst_162 : f32 to vector<16x128xf32>
    %235 = arith.maximumf %233, %234 : vector<16x128xf32>
    %c0_163 = arith.constant 0 : index
    %c0_164 = arith.constant 0 : index
    %236 = vector.load %arg27[%c0_163, %c0_164] : memref<128x128xbf16, #tpu.memory_space<vmem>>, vector<128x128xbf16>
    %237 = arith.truncf %235 : vector<16x128xf32> to vector<16x128xbf16>
    %cst_165 = arith.constant dense<0.000000e+00> : vector<16x128xf32>
    %238 = tpu.matmul %237, %236, %cst_165 {dimension_numbers = #tpu.dot_dimension_numbers<[1], [0], [0], [1], [0, 0, 1, 1], [], []>} : vector<16x128xbf16>, vector<128x128xbf16>, vector<16x128xf32> -> vector<16x128xf32>
    %c0_166 = arith.constant 0 : index
    %c0_167 = arith.constant 0 : index
    %239 = vector.load %arg28[%c0_166, %c0_167] : memref<1x128xf32, #tpu.memory_space<vmem>>, vector<1x128xf32>
    %240 = vector.broadcast %239 : vector<1x128xf32> to vector<16x128xf32>
    %241 = arith.addf %238, %240 : vector<16x128xf32>
    %c0_168 = arith.constant 0 : index
    %c0_169 = arith.constant 0 : index
    %242 = vector.load %arg30[%c0_168, %c0_169] : memref<16x128xf32, #tpu.memory_space<vmem>>, vector<16x128xf32>
    tpu.vector_store %arg30[%c0_168, %c0_169], %241 {strides = array<i32>} : memref<16x128xf32, #tpu.memory_space<vmem>>, vector<16x128xf32>,
    return
  }
}

</mosaic_0001>

<llo_original>
// kernel: tpu_custom_call.1
$region0: #{tpu_custom_call.1}
  #allocation0 [shape = 'u32[]', space=smem, size = 0x4, offset = 0x4, fixed_abs, tag = 'smem constant byte address 0x4 - core index']
  #allocation1 [shape = 'u32[144,128]{1,0:T(1,128)}', space=vmem, size = 0x12000, scoped, tag = 'internal scratch']
  #allocation2 [shape = 'bf16[32,128]{1,0:T(8,128)(2,1)}', space=vmem, size = 0x2000, scoped, tag = 'scratch operand']
  %s0 = inlined_call_operand.smem [shape: u32[31], index: -1, kind: input, shape index: {}]
  %s1 = sld [smem:[%s0]]
  %s2 = scalar_lea.smem %s0, 1
  %s3 = sld [smem:[%s2]]
  %s4 = scalar_lea.smem %s0, 2
  %s5 = sld [smem:[%s4]]
  %s6 = scalar_lea.smem %s0, 3
  %s7 = sld [smem:[%s6]]
  %s8 = scalar_lea.smem %s0, 4
  %s9 = sld [smem:[%s8]]
  %s10 = scalar_lea.smem %s0, 5
  %s11 = sld [smem:[%s10]]
  %s12 = scalar_lea.smem %s0, 6
  %s13 = sld [smem:[%s12]]
  %s14 = scalar_lea.smem %s0, 7
  %s15 = sld [smem:[%s14]]
  %s16 = scalar_lea.smem %s0, 8
  %s17 = sld [smem:[%s16]]
  %s18 = scalar_lea.smem %s0, 9
  %s19 = sld [smem:[%s18]]
  %s20 = scalar_lea.smem %s0, 10
  %s21 = sld [smem:[%s20]]
  %s22 = scalar_lea.smem %s0, 11
  %s23 = sld [smem:[%s22]]
  %s24 = scalar_lea.smem %s0, 12
  %s25 = sld [smem:[%s24]]
  %s26 = scalar_lea.smem %s0, 13
  %s27 = sld [smem:[%s26]]
  %s28 = scalar_lea.smem %s0, 14
  %s29 = sld [smem:[%s28]]
  %s30 = scalar_lea.smem %s0, 15
  %s31 = sld [smem:[%s30]]
  %s32 = scalar_lea.smem %s0, 16
  %s33 = sld [smem:[%s32]]
  %s34 = scalar_lea.smem %s0, 17
  %s35 = sld [smem:[%s34]]
  %s36 = scalar_lea.smem %s0, 18
  %s37 = sld [smem:[%s36]]
  %s38 = scalar_lea.smem %s0, 19
  %s39 = sld [smem:[%s38]]
  %s40 = scalar_lea.smem %s0, 20
  %s41 = sld [smem:[%s40]]
  %s42 = scalar_lea.smem %s0, 21
  %s43 = sld [smem:[%s42]]
  %s44 = scalar_lea.smem %s0, 22
  %s45 = sld [smem:[%s44]]
  %s46 = scalar_lea.smem %s0, 23
  %s47 = sld [smem:[%s46]]
  %s48 = scalar_lea.smem %s0, 24
  %s49 = sld [smem:[%s48]]
  %s50 = scalar_lea.smem %s0, 25
  %s51 = sld [smem:[%s50]]
  %s52 = scalar_lea.smem %s0, 26
  %s53 = sld [smem:[%s52]]
  %s54 = scalar_lea.smem %s0, 27
  %s55 = sld [smem:[%s54]]
  %s56 = scalar_lea.smem %s0, 28
  %s57 = sld [smem:[%s56]]
  %s58 = scalar_lea.smem %s0, 29
  %s59 = sld [smem:[%s58]]
  %s60 = scalar_lea.smem %s0, 30
  %s61 = sld [smem:[%s60]]
  %62 = xla_tuple %s59, %s61
  %s63 = sld [smem:[#allocation0]]
  $region214: #{tpu_custom_call.1} parent=0
    _
  %s65 = ssub.s32 1, %s63
  %s66 = scalar_select 0, %s65, %s63
  $region1: #{tpu_custom_call.1} parent=0
    #allocation3 [shape = 'u8[4096]{0}', space=vmem, size = 0x1000, scoped, tag = 'input window, operand 0, single buffered']
    #allocation4 [shape = 's32[1]{0}', space=sflag, size = 0x4, scoped, tag = 'scoped memory for tpu_custom_call.1']
    #allocation5 [shape = 's32[1]{0}', space=sflag, size = 0x4, scoped, tag = 'scoped memory for tpu_custom_call.1']
    #allocation6 [shape = 'u8[4096]{0}', space=vmem, size = 0x1000, scoped, tag = 'input window, operand 2, single buffered']
    #allocation7 [shape = 's32[1]{0}', space=sflag, size = 0x4, scoped, tag = 'scoped memory for tpu_custom_call.1']
    #allocation8 [shape = 'u8[512]{0}', space=vmem, size = 0x400, scoped, tag = 'input window, operand 5, single buffered']
    #allocation9 [shape = 'u8[512]{0}', space=vmem, size = 0x400, scoped, tag = 'input window, operand 8, single buffered']
    #allocation10 [shape = 's32[1]{0}', space=sflag, size = 0x4, scoped, tag = 'scoped memory for tpu_custom_call.1']
    #allocation11 [shape = 'u8[98304]{0}', space=vmem, size = 0x18000, scoped, tag = 'input window, operand 9, single buffered']
    #allocation12 [shape = 'u8[1536]{0}', space=vmem, size = 0x800, scoped, tag = 'input window, operand 10, single buffered']
    #allocation13 [shape = 's32[1]{0}', space=sflag, size = 0x4, scoped, tag = 'scoped memory for tpu_custom_call.1']
    #allocation14 [shape = 'u8[98304]{0}', space=vmem, size = 0x18000, scoped, tag = 'input window, operand 11, single buffered']
    #allocation15 [shape = 'u8[98304]{0}', space=vmem, size = 0x18000, scoped, tag = 'input window, operand 12, single buffered']
    #allocation16 [shape = 's32[1]{0}', space=sflag, size = 0x4, scoped, tag = 'scoped memory for tpu_custom_call.1']
    #allocation17 [shape = 'u8[6144]{0}', space=vmem, size = 0x1800, scoped, tag = 'input window, operand 13, single buffered']
    #allocation18 [shape = 'u8[1536]{0}', space=vmem, size = 0x800, scoped, tag = 'input window, operand 14, single buffered']
    #allocation19 [shape = 's32[1]{0}', space=sflag, size = 0x4, scoped, tag = 'scoped memory for tpu_custom_call.1']
    #allocation20 [shape = 'u8[1536]{0}', space=vmem, size = 0x800, scoped, tag = 'input window, operand 15, single buffered']
    #allocation21 [shape = 'u8[1536]{0}', space=vmem, size = 0x800, scoped, tag = 'input window, operand 16, single buffered']
    #allocation22 [shape = 's32[1]{0}', space=sflag, size = 0x4, scoped, tag = 'scoped memory for tpu_custom_call.1']
    #allocation23 [shape = 'u8[32768]{0}', space=vmem, size = 0x8000, scoped, tag = 'input window, operand 17, single buffered']
    #allocation24 [shape = 'u8[512]{0}', space=vmem, size = 0x400, scoped, tag = 'input window, operand 18, single buffered']
    #allocation25 [shape = 's32[1]{0}', space=sflag, size = 0x4, scoped, tag = 'scoped memory for tpu_custom_call.1']
    #allocation26 [shape = 'u8[32768]{0}', space=vmem, size = 0x8000, scoped, tag = 'input window, operand 19, single buffered']
    #allocation27 [shape = 'u8[512]{0}', space=vmem, size = 0x400, scoped, tag = 'input window, operand 20, single buffered']
    #allocation28 [shape = 's32[1]{0}', space=sflag, size = 0x4, scoped, tag = 'scoped memory for tpu_custom_call.1']
    #allocation29 [shape = 'u8[32768]{0}', space=vmem, size = 0x8000, scoped, tag = 'input window, operand 21, single buffered']
    #allocation30 [shape = 'u8[512]{0}', space=vmem, size = 0x400, scoped, tag = 'input window, operand 22, single buffered']
    #allocation31 [shape = 's32[1]{0}', space=sflag, size = 0x4, scoped, tag = 'scoped memory for tpu_custom_call.1']
    #allocation32 [shape = 'u8[32768]{0}', space=vmem, size = 0x8000, scoped, tag = 'input window, operand 25, single buffered']
    #allocation33 [shape = 'u8[32768]{0}', space=vmem, size = 0x8000, scoped, tag = 'input window, operand 27, single buffered']
    #allocation34 [shape = 's32[1]{0}', space=sflag, size = 0x4, scoped, tag = 'scoped memory for tpu_custom_call.1']
    #allocation35 [shape = 'u8[1024]{0}', space=vmem, size = 0x400, scoped, tag = 'output window, operand 0, single buffered']
    #allocation36 [shape = 'u8[8192]{0}', space=vmem, size = 0x2000, scoped, tag = 'output window, operand 1, single buffered']
    #allocation37 [shape = 's32[1]{0}', space=sflag, size = 0x4, scoped, tag = 'scoped memory for tpu_custom_call.1']
    %67 = vsyncpa [#allocation4], 0
    %68 = vsyncpa [#allocation7], 0
    %69 = vsyncpa [#allocation10], 0
    %70 = vsyncpa [#allocation13], 0
    %71 = vsyncpa [#allocation16], 0
    %72 = vsyncpa [#allocation19], 0
    %73 = vsyncpa [#allocation22], 0
    %74 = vsyncpa [#allocation25], 0
    %75 = vsyncpa [#allocation28], 0
    %76 = vsyncpa [#allocation31], 0
    %77 = vsyncpa [#allocation34], 0
    %78 = vsyncpa [#allocation5], 0
    %79 = vsyncpa [#allocation37], 0
    // Predicated region
    $region2: #{tpu_custom_call.1} parent=1 // pred_check
      _
    $region3: #{tpu_custom_call.1} parent=1 // pred_check_branch
      %81 = sbr.rel (0) target = $region5
    $region4: #{tpu_custom_call.1} parent=1 // pred_region
      %s83 = ssub.s32 128, 128
      %84 = vsyncadd [#allocation4], %s83
      %s85 = sshll.u32 [#allocation3], 4
      %s86 = int_to_ptr.vmem [resolvable:$true] %s85
      %91 = dma.hbm_to_vmem [thread:$0]  %s1, 128, %s86, [#allocation4], 64, 64, 4
    $region5: #{tpu_custom_call.1} parent=1 // pred_fallthru
      _
    // Predicated region
    $region6: #{tpu_custom_call.1} parent=1 // pred_check
      _
    $region7: #{tpu_custom_call.1} parent=1 // pred_check_branch
      %93 = sbr.rel (0) target = $region9
    $region8: #{tpu_custom_call.1} parent=1 // pred_region
      _
    $region9: #{tpu_custom_call.1} parent=1 // pred_fallthru
      _
    // Predicated region
    $region10: #{tpu_custom_call.1} parent=1 // pred_check
      _
    $region11: #{tpu_custom_call.1} parent=1 // pred_check_branch
      %95 = sbr.rel (0) target = $region13
    $region12: #{tpu_custom_call.1} parent=1 // pred_region
      %s97 = ssub.s32 128, 128
      %98 = vsyncadd [#allocation7], %s97
      %s99 = sshll.u32 [#allocation6], 4
      %s100 = int_to_ptr.vmem [resolvable:$true] %s99
      %105 = dma.hbm_to_vmem [thread:$0]  %s5, 128, %s100, [#allocation7], 64, 64, 4
    $region13: #{tpu_custom_call.1} parent=1 // pred_fallthru
      _
    // Predicated region
    $region14: #{tpu_custom_call.1} parent=1 // pred_check
      _
    $region15: #{tpu_custom_call.1} parent=1 // pred_check_branch
      %107 = sbr.rel (0) target = $region17
    $region16: #{tpu_custom_call.1} parent=1 // pred_region
      _
    $region17: #{tpu_custom_call.1} parent=1 // pred_fallthru
      _
    // Predicated region
    $region18: #{tpu_custom_call.1} parent=1 // pred_check
      _
    $region19: #{tpu_custom_call.1} parent=1 // pred_check_branch
      %109 = sbr.rel (0) target = $region21
    $region20: #{tpu_custom_call.1} parent=1 // pred_region
      _
    $region21: #{tpu_custom_call.1} parent=1 // pred_fallthru
      _
    // Predicated region
    $region22: #{tpu_custom_call.1} parent=1 // pred_check
      _
    $region23: #{tpu_custom_call.1} parent=1 // pred_check_branch
      %111 = sbr.rel (0) target = $region25
    $region24: #{tpu_custom_call.1} parent=1 // pred_region
      %s113 = ssub.s32 16, 16
      %114 = vsyncadd [#allocation7], %s113
      %s116 = sshll.u32 [#allocation8], 4
      %s117 = int_to_ptr.vmem [resolvable:$true] %s116
      %119 = dma.hbm_to_vmem [thread:$0]  %s11, 16, %s117, [#allocation7]
    $region25: #{tpu_custom_call.1} parent=1 // pred_fallthru
      _
    // Predicated region
    $region26: #{tpu_custom_call.1} parent=1 // pred_check
      _
    $region27: #{tpu_custom_call.1} parent=1 // pred_check_branch
      %121 = sbr.rel (0) target = $region29
    $region28: #{tpu_custom_call.1} parent=1 // pred_region
      _
    $region29: #{tpu_custom_call.1} parent=1 // pred_fallthru
      _
    // Predicated region
    $region30: #{tpu_custom_call.1} parent=1 // pred_check
      _
    $region31: #{tpu_custom_call.1} parent=1 // pred_check_branch
      %123 = sbr.rel (0) target = $region33
    $region32: #{tpu_custom_call.1} parent=1 // pred_region
      _
    $region33: #{tpu_custom_call.1} parent=1 // pred_fallthru
      _
    // Predicated region
    $region34: #{tpu_custom_call.1} parent=1 // pred_check
      _
    $region35: #{tpu_custom_call.1} parent=1 // pred_check_branch
      %125 = sbr.rel (0) target = $region37
    $region36: #{tpu_custom_call.1} parent=1 // pred_region
      %s127 = ssub.s32 16, 16
      %128 = vsyncadd [#allocation10], %s127
      %s130 = sshll.u32 [#allocation9], 4
      %s131 = int_to_ptr.vmem [resolvable:$true] %s130
      %133 = dma.hbm_to_vmem [thread:$0]  %s17, 16, %s131, [#allocation10]
    $region37: #{tpu_custom_call.1} parent=1 // pred_fallthru
      _
    // Predicated region
    $region38: #{tpu_custom_call.1} parent=1 // pred_check
      _
    $region39: #{tpu_custom_call.1} parent=1 // pred_check_branch
      %135 = sbr.rel (0) target = $region41
    $region40: #{tpu_custom_call.1} parent=1 // pred_region
      %s137 = ssub.s32 3072, 3072
      %138 = vsyncadd [#allocation10], %s137
      %s139 = sshll.u32 [#allocation11], 4
      %s140 = int_to_ptr.vmem [resolvable:$true] %s139
      %145 = dma.hbm_to_vmem [thread:$0]  %s19, 3072, %s140, [#allocation10], 64, 64, 4
    $region41: #{tpu_custom_call.1} parent=1 // pred_fallthru
      _
    // Predicated region
    $region42: #{tpu_custom_call.1} parent=1 // pred_check
      _
    $region43: #{tpu_custom_call.1} parent=1 // pred_check_branch
      %147 = sbr.rel (0) target = $region45
    $region44: #{tpu_custom_call.1} parent=1 // pred_region
      %s149 = ssub.s32 48, 48
      %150 = vsyncadd [#allocation13], %s149
      %s151 = sshll.u32 [#allocation12], 4
      %s152 = int_to_ptr.vmem [resolvable:$true] %s151
      %157 = dma.hbm_to_vmem [thread:$0]  %s21, 48, %s152, [#allocation13], 16, 16, 1
    $region45: #{tpu_custom_call.1} parent=1 // pred_fallthru
      _
    // Predicated region
    $region46: #{tpu_custom_call.1} parent=1 // pred_check
      _
    $region47: #{tpu_custom_call.1} parent=1 // pred_check_branch
      %159 = sbr.rel (0) target = $region49
    $region48: #{tpu_custom_call.1} parent=1 // pred_region
      %s161 = ssub.s32 3072, 3072
      %162 = vsyncadd [#allocation13], %s161
      %s163 = sshll.u32 [#allocation14], 4
      %s164 = int_to_ptr.vmem [resolvable:$true] %s163
      %169 = dma.hbm_to_vmem [thread:$0]  %s23, 3072, %s164, [#allocation13], 64, 64, 4
    $region49: #{tpu_custom_call.1} parent=1 // pred_fallthru
      _
    // Predicated region
    $region50: #{tpu_custom_call.1} parent=1 // pred_check
      _
    $region51: #{tpu_custom_call.1} parent=1 // pred_check_branch
      %171 = sbr.rel (0) target = $region53
    $region52: #{tpu_custom_call.1} parent=1 // pred_region
      %s173 = ssub.s32 3072, 3072
      %174 = vsyncadd [#allocation16], %s173
      %s175 = sshll.u32 [#allocation15], 4
      %s176 = int_to_ptr.vmem [resolvable:$true] %s175
      %181 = dma.hbm_to_vmem [thread:$0]  %s25, 3072, %s176, [#allocation16], 64, 64, 4
    $region53: #{tpu_custom_call.1} parent=1 // pred_fallthru
      _
    // Predicated region
    $region54: #{tpu_custom_call.1} parent=1 // pred_check
      _
    $region55: #{tpu_custom_call.1} parent=1 // pred_check_branch
      %183 = sbr.rel (0) target = $region57
    $region56: #{tpu_custom_call.1} parent=1 // pred_region
      %s185 = ssub.s32 192, 192
      %186 = vsyncadd [#allocation16], %s185
      %s188 = sshll.u32 [#allocation17], 4
      %s189 = int_to_ptr.vmem [resolvable:$true] %s188
      %191 = dma.hbm_to_vmem [thread:$0]  %s27, 192, %s189, [#allocation16]
    $region57: #{tpu_custom_call.1} parent=1 // pred_fallthru
      _
    // Predicated region
    $region58: #{tpu_custom_call.1} parent=1 // pred_check
      _
    $region59: #{tpu_custom_call.1} parent=1 // pred_check_branch
      %193 = sbr.rel (0) target = $region61
    $region60: #{tpu_custom_call.1} parent=1 // pred_region
      %s195 = ssub.s32 48, 48
      %196 = vsyncadd [#allocation19], %s195
      %s197 = sshll.u32 [#allocation18], 4
      %s198 = int_to_ptr.vmem [resolvable:$true] %s197
      %203 = dma.hbm_to_vmem [thread:$0]  %s29, 48, %s198, [#allocation19], 16, 16, 1
    $region61: #{tpu_custom_call.1} parent=1 // pred_fallthru
      _
    // Predicated region
    $region62: #{tpu_custom_call.1} parent=1 // pred_check
      _
    $region63: #{tpu_custom_call.1} parent=1 // pred_check_branch
      %205 = sbr.rel (0) target = $region65
    $region64: #{tpu_custom_call.1} parent=1 // pred_region
      %s207 = ssub.s32 48, 48
      %208 = vsyncadd [#allocation19], %s207
      %s209 = sshll.u32 [#allocation20], 4
      %s210 = int_to_ptr.vmem [resolvable:$true] %s209
      %215 = dma.hbm_to_vmem [thread:$0]  %s31, 48, %s210, [#allocation19], 16, 16, 1
    $region65: #{tpu_custom_call.1} parent=1 // pred_fallthru
      _
    // Predicated region
    $region66: #{tpu_custom_call.1} parent=1 // pred_check
      _
    $region67: #{tpu_custom_call.1} parent=1 // pred_check_branch
      %217 = sbr.rel (0) target = $region69
    $region68: #{tpu_custom_call.1} parent=1 // pred_region
      %s219 = ssub.s32 48, 48
      %220 = vsyncadd [#allocation22], %s219
      %s221 = sshll.u32 [#allocation21], 4
      %s222 = int_to_ptr.vmem [resolvable:$true] %s221
      %227 = dma.hbm_to_vmem [thread:$0]  %s33, 48, %s222, [#allocation22], 16, 16, 1
    $region69: #{tpu_custom_call.1} parent=1 // pred_fallthru
      _
    // Predicated region
    $region70: #{tpu_custom_call.1} parent=1 // pred_check
      _
    $region71: #{tpu_custom_call.1} parent=1 // pred_check_branch
      %229 = sbr.rel (0) target = $region73
    $region72: #{tpu_custom_call.1} parent=1 // pred_region
      %s231 = ssub.s32 1024, 1024
      %232 = vsyncadd [#allocation22], %s231
      %s233 = sshll.u32 [#allocation23], 4
      %s234 = int_to_ptr.vmem [resolvable:$true] %s233
      %239 = dma.hbm_to_vmem [thread:$0]  %s35, 1024, %s234, [#allocation22], 64, 64, 4
    $region73: #{tpu_custom_call.1} parent=1 // pred_fallthru
      _
    // Predicated region
    $region74: #{tpu_custom_call.1} parent=1 // pred_check
      _
    $region75: #{tpu_custom_call.1} parent=1 // pred_check_branch
      %241 = sbr.rel (0) target = $region77
    $region76: #{tpu_custom_call.1} parent=1 // pred_region
      %s243 = ssub.s32 16, 16
      %244 = vsyncadd [#allocation25], %s243
      %s246 = sshll.u32 [#allocation24], 4
      %s247 = int_to_ptr.vmem [resolvable:$true] %s246
      %249 = dma.hbm_to_vmem [thread:$0]  %s37, 16, %s247, [#allocation25]
    $region77: #{tpu_custom_call.1} parent=1 // pred_fallthru
      _
    // Predicated region
    $region78: #{tpu_custom_call.1} parent=1 // pred_check
      _
    $region79: #{tpu_custom_call.1} parent=1 // pred_check_branch
      %251 = sbr.rel (0) target = $region81
    $region80: #{tpu_custom_call.1} parent=1 // pred_region
      %s253 = ssub.s32 1024, 1024
      %254 = vsyncadd [#allocation25], %s253
      %s255 = sshll.u32 [#allocation26], 4
      %s256 = int_to_ptr.vmem [resolvable:$true] %s255
      %261 = dma.hbm_to_vmem [thread:$0]  %s39, 1024, %s256, [#allocation25], 64, 64, 4
    $region81: #{tpu_custom_call.1} parent=1 // pred_fallthru
      _
    // Predicated region
    $region82: #{tpu_custom_call.1} parent=1 // pred_check
      _
    $region83: #{tpu_custom_call.1} parent=1 // pred_check_branch
      %263 = sbr.rel (0) target = $region85
    $region84: #{tpu_custom_call.1} parent=1 // pred_region
      %s265 = ssub.s32 16, 16
      %266 = vsyncadd [#allocation28], %s265
      %s268 = sshll.u32 [#allocation27], 4
      %s269 = int_to_ptr.vmem [resolvable:$true] %s268
      %271 = dma.hbm_to_vmem [thread:$0]  %s41, 16, %s269, [#allocation28]
    $region85: #{tpu_custom_call.1} parent=1 // pred_fallthru
      _
    // Predicated region
    $region86: #{tpu_custom_call.1} parent=1 // pred_check
      _
    $region87: #{tpu_custom_call.1} parent=1 // pred_check_branch
      %273 = sbr.rel (0) target = $region89
    $region88: #{tpu_custom_call.1} parent=1 // pred_region
      %s275 = ssub.s32 1024, 1024
      %276 = vsyncadd [#allocation28], %s275
      %s277 = sshll.u32 [#allocation29], 4
      %s278 = int_to_ptr.vmem [resolvable:$true] %s277
      %283 = dma.hbm_to_vmem [thread:$0]  %s43, 1024, %s278, [#allocation28], 64, 64, 4
    $region89: #{tpu_custom_call.1} parent=1 // pred_fallthru
      _
    // Predicated region
    $region90: #{tpu_custom_call.1} parent=1 // pred_check
      _
    $region91: #{tpu_custom_call.1} parent=1 // pred_check_branch
      %285 = sbr.rel (0) target = $region93
    $region92: #{tpu_custom_call.1} parent=1 // pred_region
      %s287 = ssub.s32 16, 16
      %288 = vsyncadd [#allocation31], %s287
      %s290 = sshll.u32 [#allocation30], 4
      %s291 = int_to_ptr.vmem [resolvable:$true] %s290
      %293 = dma.hbm_to_vmem [thread:$0]  %s45, 16, %s291, [#allocation31]
    $region93: #{tpu_custom_call.1} parent=1 // pred_fallthru
      _
    // Predicated region
    $region94: #{tpu_custom_call.1} parent=1 // pred_check
      _
    $region95: #{tpu_custom_call.1} parent=1 // pred_check_branch
      %295 = sbr.rel (0) target = $region97
    $region96: #{tpu_custom_call.1} parent=1 // pred_region
      _
    $region97: #{tpu_custom_call.1} parent=1 // pred_fallthru
      _
    // Predicated region
    $region98: #{tpu_custom_call.1} parent=1 // pred_check
      _
    $region99: #{tpu_custom_call.1} parent=1 // pred_check_branch
      %297 = sbr.rel (0) target = $region101
    $region100: #{tpu_custom_call.1} parent=1 // pred_region
      _
    $region101: #{tpu_custom_call.1} parent=1 // pred_fallthru
      _
    // Predicated region
    $region102: #{tpu_custom_call.1} parent=1 // pred_check
      _
    $region103: #{tpu_custom_call.1} parent=1 // pred_check_branch
      %299 = sbr.rel (0) target = $region105
    $region104: #{tpu_custom_call.1} parent=1 // pred_region
      %s301 = ssub.s32 1024, 1024
      %302 = vsyncadd [#allocation31], %s301
      %s303 = sshll.u32 [#allocation32], 4
      %s304 = int_to_ptr.vmem [resolvable:$true] %s303
      %309 = dma.hbm_to_vmem [thread:$0]  %s51, 1024, %s304, [#allocation31], 64, 64, 4
    $region105: #{tpu_custom_call.1} parent=1 // pred_fallthru
      _
    // Predicated region
    $region106: #{tpu_custom_call.1} parent=1 // pred_check
      _
    $region107: #{tpu_custom_call.1} parent=1 // pred_check_branch
      %311 = sbr.rel (0) target = $region109
    $region108: #{tpu_custom_call.1} parent=1 // pred_region
      _
    $region109: #{tpu_custom_call.1} parent=1 // pred_fallthru
      _
    // Predicated region
    $region110: #{tpu_custom_call.1} parent=1 // pred_check
      _
    $region111: #{tpu_custom_call.1} parent=1 // pred_check_branch
      %313 = sbr.rel (0) target = $region113
    $region112: #{tpu_custom_call.1} parent=1 // pred_region
      %s315 = ssub.s32 1024, 1024
      %316 = vsyncadd [#allocation34], %s315
      %s317 = sshll.u32 [#allocation33], 4
      %s318 = int_to_ptr.vmem [resolvable:$true] %s317
      %323 = dma.hbm_to_vmem [thread:$0]  %s55, 1024, %s318, [#allocation34], 64, 64, 4
    $region113: #{tpu_custom_call.1} parent=1 // pred_fallthru
      _
    // Predicated region
    $region114: #{tpu_custom_call.1} parent=1 // pred_check
      _
    $region115: #{tpu_custom_call.1} parent=1 // pred_check_branch
      %325 = sbr.rel (0) target = $region117
    $region116: #{tpu_custom_call.1} parent=1 // pred_region
      _
    $region117: #{tpu_custom_call.1} parent=1 // pred_fallthru
      _
    // Predicated region
    $region118: #{tpu_custom_call.1} parent=1 // pred_check
      _
    $region119: #{tpu_custom_call.1} parent=1 // pred_check_branch
      %327 = sbr.rel (0) target = $region121
    $region120: #{tpu_custom_call.1} parent=1 // pred_region
      %328 = dma.done [#allocation4], 128
    $region121: #{tpu_custom_call.1} parent=1 // pred_fallthru
      _
    // Predicated region
    $region122: #{tpu_custom_call.1} parent=1 // pred_check
      _
    $region123: #{tpu_custom_call.1} parent=1 // pred_check_branch
      %330 = sbr.rel (0) target = $region125
    $region124: #{tpu_custom_call.1} parent=1 // pred_region
      %331 = dma.done [#allocation7], 128
    $region125: #{tpu_custom_call.1} parent=1 // pred_fallthru
      _
    // Predicated region
    $region126: #{tpu_custom_call.1} parent=1 // pred_check
      _
    $region127: #{tpu_custom_call.1} parent=1 // pred_check_branch
      %333 = sbr.rel (0) target = $region129
    $region128: #{tpu_custom_call.1} parent=1 // pred_region
      %334 = dma.done [#allocation7], 16
    $region129: #{tpu_custom_call.1} parent=1 // pred_fallthru
      _
    // Predicated region
    $region130: #{tpu_custom_call.1} parent=1 // pred_check
      _
    $region131: #{tpu_custom_call.1} parent=1 // pred_check_branch
      %336 = sbr.rel (0) target = $region133
    $region132: #{tpu_custom_call.1} parent=1 // pred_region
      %337 = dma.done [#allocation10], 16
    $region133: #{tpu_custom_call.1} parent=1 // pred_fallthru
      _
    // Predicated region
    $region134: #{tpu_custom_call.1} parent=1 // pred_check
      _
    $region135: #{tpu_custom_call.1} parent=1 // pred_check_branch
      %339 = sbr.rel (0) target = $region137
    $region136: #{tpu_custom_call.1} parent=1 // pred_region
      %340 = dma.done [#allocation10], 3072
    $region137: #{tpu_custom_call.1} parent=1 // pred_fallthru
      _
    // Predicated region
    $region138: #{tpu_custom_call.1} parent=1 // pred_check
      _
    $region139: #{tpu_custom_call.1} parent=1 // pred_check_branch
      %342 = sbr.rel (0) target = $region141
    $region140: #{tpu_custom_call.1} parent=1 // pred_region
      %343 = dma.done [#allocation13], 48
    $region141: #{tpu_custom_call.1} parent=1 // pred_fallthru
      _
    // Predicated region
    $region142: #{tpu_custom_call.1} parent=1 // pred_check
      _
    $region143: #{tpu_custom_call.1} parent=1 // pred_check_branch
      %345 = sbr.rel (0) target = $region145
    $region144: #{tpu_custom_call.1} parent=1 // pred_region
      %346 = dma.done [#allocation13], 3072
    $region145: #{tpu_custom_call.1} parent=1 // pred_fallthru
      _
    // Predicated region
    $region146: #{tpu_custom_call.1} parent=1 // pred_check
      _
    $region147: #{tpu_custom_call.1} parent=1 // pred_check_branch
      %348 = sbr.rel (0) target = $region149
    $region148: #{tpu_custom_call.1} parent=1 // pred_region
      %349 = dma.done [#allocation16], 3072
    $region149: #{tpu_custom_call.1} parent=1 // pred_fallthru
      _
    // Predicated region
    $region150: #{tpu_custom_call.1} parent=1 // pred_check
      _
    $region151: #{tpu_custom_call.1} parent=1 // pred_check_branch
      %351 = sbr.rel (0) target = $region153
    $region152: #{tpu_custom_call.1} parent=1 // pred_region
      %352 = dma.done [#allocation16], 192
    $region153: #{tpu_custom_call.1} parent=1 // pred_fallthru
      _
    // Predicated region
    $region154: #{tpu_custom_call.1} parent=1 // pred_check
      _
    $region155: #{tpu_custom_call.1} parent=1 // pred_check_branch
      %354 = sbr.rel (0) target = $region157
    $region156: #{tpu_custom_call.1} parent=1 // pred_region
      %355 = dma.done [#allocation19], 48
    $region157: #{tpu_custom_call.1} parent=1 // pred_fallthru
      _
    // Predicated region
    $region158: #{tpu_custom_call.1} parent=1 // pred_check
      _
    $region159: #{tpu_custom_call.1} parent=1 // pred_check_branch
      %357 = sbr.rel (0) target = $region161
    $region160: #{tpu_custom_call.1} parent=1 // pred_region
      %358 = dma.done [#allocation19], 48
    $region161: #{tpu_custom_call.1} parent=1 // pred_fallthru
      _
    // Predicated region
    $region162: #{tpu_custom_call.1} parent=1 // pred_check
      _
    $region163: #{tpu_custom_call.1} parent=1 // pred_check_branch
      %360 = sbr.rel (0) target = $region165
    $region164: #{tpu_custom_call.1} parent=1 // pred_region
      %361 = dma.done [#allocation22], 48
    $region165: #{tpu_custom_call.1} parent=1 // pred_fallthru
      _
    // Predicated region
    $region166: #{tpu_custom_call.1} parent=1 // pred_check
      _
    $region167: #{tpu_custom_call.1} parent=1 // pred_check_branch
      %363 = sbr.rel (0) target = $region169
    $region168: #{tpu_custom_call.1} parent=1 // pred_region
      %364 = dma.done [#allocation22], 1024
    $region169: #{tpu_custom_call.1} parent=1 // pred_fallthru
      _
    // Predicated region
    $region170: #{tpu_custom_call.1} parent=1 // pred_check
      _
    $region171: #{tpu_custom_call.1} parent=1 // pred_check_branch
      %366 = sbr.rel (0) target = $region173
    $region172: #{tpu_custom_call.1} parent=1 // pred_region
      %367 = dma.done [#allocation25], 16
    $region173: #{tpu_custom_call.1} parent=1 // pred_fallthru
      _
    // Predicated region
    $region174: #{tpu_custom_call.1} parent=1 // pred_check
      _
    $region175: #{tpu_custom_call.1} parent=1 // pred_check_branch
      %369 = sbr.rel (0) target = $region177
    $region176: #{tpu_custom_call.1} parent=1 // pred_region
      %370 = dma.done [#allocation25], 1024
    $region177: #{tpu_custom_call.1} parent=1 // pred_fallthru
      _
    // Predicated region
    $region178: #{tpu_custom_call.1} parent=1 // pred_check
      _
    $region179: #{tpu_custom_call.1} parent=1 // pred_check_branch
      %372 = sbr.rel (0) target = $region181
    $region180: #{tpu_custom_call.1} parent=1 // pred_region
      %373 = dma.done [#allocation28], 16
    $region181: #{tpu_custom_call.1} parent=1 // pred_fallthru
      _
    // Predicated region
    $region182: #{tpu_custom_call.1} parent=1 // pred_check
      _
    $region183: #{tpu_custom_call.1} parent=1 // pred_check_branch
      %375 = sbr.rel (0) target = $region185
    $region184: #{tpu_custom_call.1} parent=1 // pred_region
      %376 = dma.done [#allocation28], 1024
    $region185: #{tpu_custom_call.1} parent=1 // pred_fallthru
      _
    // Predicated region
    $region186: #{tpu_custom_call.1} parent=1 // pred_check
      _
    $region187: #{tpu_custom_call.1} parent=1 // pred_check_branch
      %378 = sbr.rel (0) target = $region189
    $region188: #{tpu_custom_call.1} parent=1 // pred_region
      %379 = dma.done [#allocation31], 16
    $region189: #{tpu_custom_call.1} parent=1 // pred_fallthru
      _
    // Predicated region
    $region190: #{tpu_custom_call.1} parent=1 // pred_check
      _
    $region191: #{tpu_custom_call.1} parent=1 // pred_check_branch
      %381 = sbr.rel (0) target = $region193
    $region192: #{tpu_custom_call.1} parent=1 // pred_region
      %382 = dma.done [#allocation31], 1024
    $region193: #{tpu_custom_call.1} parent=1 // pred_fallthru
      _
    // Predicated region
    $region194: #{tpu_custom_call.1} parent=1 // pred_check
      _
    $region195: #{tpu_custom_call.1} parent=1 // pred_check_branch
      %384 = sbr.rel (0) target = $region197
    $region196: #{tpu_custom_call.1} parent=1 // pred_region
      %385 = dma.done [#allocation34], 1024
    $region197: #{tpu_custom_call.1} parent=1 // pred_fallthru
      _
    %v387 = vld [vmem:[#allocation3] sm:$0xf]
    %v388 = vld [vmem:[#allocation3 + $0x4] sm:$0xf]
    %v389 = vld [vmem:[%s15] sm:$0xf]
    %v390 = vld [vmem:[%s15 + $0x4] sm:$0xf]
    %v391 = vld [vmem:[%s15 + $0x8] sm:$0xf]
    %v392 = vld [vmem:[%s15 + $0xc] sm:$0xf]
    %v393 = vld [vmem:[%s15 + $0x10] sm:$0xf]
    %v394 = vld [vmem:[%s15 + $0x14] sm:$0xf]
    %v395 = vld [vmem:[%s15 + $0x18] sm:$0xf]
    %v396 = vld [vmem:[%s15 + $0x1c] sm:$0xf]
    %v397 = vld [vmem:[%s15 + $0x20] sm:$0xf]
    %v398 = vld [vmem:[%s15 + $0x24] sm:$0xf]
    %v399 = vld [vmem:[%s15 + $0x28] sm:$0xf]
    %v400 = vld [vmem:[%s15 + $0x2c] sm:$0xf]
    %v401 = vld [vmem:[%s15 + $0x30] sm:$0xf]
    %v402 = vld [vmem:[%s15 + $0x34] sm:$0xf]
    %v403 = vld [vmem:[%s15 + $0x38] sm:$0xf]
    %v404 = vld [vmem:[%s15 + $0x3c] sm:$0xf]
    %v405 = vld [vmem:[#allocation9] sm:$0x1]
    %v407 = vlaneseq
    %v408 = vshrl.u32 %v407, 7
    %v409 = vsub.s32 0, %v408
    %v410 = vrot.slane %v405, %v409
    %v414 = vunpack.c.l.b16 %v387
    %v415 = vunpack.c.l.b16 %v388
    %v416 = vpack.c.b16 %v415, %v414
    %v434 = vunpack.c.l.b16 %v389
    %v435 = vunpack.c.l.b16 %v390
    %v436 = vunpack.c.l.b16 %v391
    %v437 = vunpack.c.l.b16 %v392
    %v438 = vunpack.c.l.b16 %v393
    %v439 = vunpack.c.l.b16 %v394
    %v440 = vunpack.c.l.b16 %v395
    %v441 = vunpack.c.l.b16 %v396
    %v442 = vunpack.c.l.b16 %v397
    %v443 = vunpack.c.l.b16 %v398
    %v444 = vunpack.c.l.b16 %v399
    %v445 = vunpack.c.l.b16 %v400
    %v446 = vunpack.c.l.b16 %v401
    %v447 = vunpack.c.l.b16 %v402
    %v448 = vunpack.c.l.b16 %v403
    %v449 = vunpack.c.l.b16 %v404
    %v450 = vpack.c.b16 %v435, %v434
    %v451 = vpack.c.b16 %v437, %v436
    %v452 = vpack.c.b16 %v439, %v438
    %v453 = vpack.c.b16 %v441, %v440
    %v454 = vpack.c.b16 %v443, %v442
    %v455 = vpack.c.b16 %v445, %v444
    %v456 = vpack.c.b16 %v447, %v446
    %v457 = vpack.c.b16 %v449, %v448
    %466 = vmatprep.subr.bf16.mxu0 0
    %467 = vmatpush1.bf16.msra.mxu0 %v457
    %468 = vmatprep.subr.bf16.mxu0 0
    %469 = vmatpush1.bf16.msra.mxu0 %v456
    %470 = vmatprep.subr.bf16.mxu0 0
    %471 = vmatpush1.bf16.msra.mxu0 %v455
    %472 = vmatprep.subr.bf16.mxu0 0
    %473 = vmatpush1.bf16.msra.mxu0 %v454
    %474 = vmatprep.subr.bf16.mxu0 0
    %475 = vmatpush1.bf16.msra.mxu0 %v453
    %476 = vmatprep.subr.bf16.mxu0 0
    %477 = vmatpush1.bf16.msra.mxu0 %v452
    %478 = vmatprep.subr.bf16.mxu0 0
    %479 = vmatpush1.bf16.msra.mxu0 %v451
    %480 = vmatprep.subr.bf16.mxu0 0
    %481 = vmatpush1.bf16.msra.mxu0 %v450
    %482 = vmatprep.subr.bf16.mxu0 0
    %483 = vmatpush2.bf16.msra.mxu0 0
    %484 = vmatprep.subr.bf16.mxu0 0
    %485 = vmatpush2.bf16.msra.mxu0 0
    %486 = vmatprep.subr.bf16.mxu0 0
    %487 = vmatpush2.bf16.msra.mxu0 0
    %488 = vmatprep.subr.bf16.mxu0 0
    %489 = vmatpush2.bf16.msra.mxu0 0
    %490 = vmatprep.subr.bf16.mxu0 0
    %491 = vmatpush2.bf16.msra.mxu0 0
    %492 = vmatprep.subr.bf16.mxu0 0
    %493 = vmatpush2.bf16.msra.mxu0 0
    %494 = vmatprep.subr.bf16.mxu0 0
    %495 = vmatpush2.bf16.msra.mxu0 0
    %496 = vmatprep.subr.bf16.mxu0 0
    %497 = vmatpush2.bf16.msra.mxu0 0
    %498 = vmatprep.mubr.bf16.mxu0 0
    %499 = vmatmul.mubr.bf16.gmra.mxu0 %v416
    %v500 = vpop.f32.mrf.mxu0
    %v501 = vadd.f32 %v410, %v500
    %v502 = vpop.f32.mrf.mxu0
    %v503 = vpop.f32.mrf.mxu0
    %v504 = vadd.f32 %v410, %v503
    %v505 = vpop.f32.mrf.mxu0
    %506 = vdwg.mxu0
    %v507 = vmax.f32 %v501, 0.0
    %v508 = vmax.f32 %v504, 0.0
    %v509 = vld [vmem:[%s3] sm:$0xf]
    %v510 = vld [vmem:[%s3 + $0x4] sm:$0xf]
    %v511 = vld [vmem:[%s3 + $0x8] sm:$0xf]
    %v512 = vld [vmem:[%s3 + $0xc] sm:$0xf]
    %v513 = vld [vmem:[%s3 + $0x10] sm:$0xf]
    %v514 = vld [vmem:[%s3 + $0x14] sm:$0xf]
    %v515 = vld [vmem:[#allocation6] sm:$0xf]
    %v516 = vld [vmem:[#allocation6 + $0x4] sm:$0xf]
    %v517 = vld [vmem:[%s7] sm:$0xff]
    %v518 = vld [vmem:[%s7 + $0x8] sm:$0xff]
    %v519 = vld [vmem:[%s9] sm:$0xf]
    %v520 = vld [vmem:[%s9 + $0x4] sm:$0xf]
    %v521 = vld [vmem:[%s9 + $0x8] sm:$0xf]
    %v522 = vld [vmem:[%s9 + $0xc] sm:$0xf]
    %v523 = vld [vmem:[%s9 + $0x10] sm:$0xf]
    %v524 = vld [vmem:[%s9 + $0x14] sm:$0xf]
    %v525 = vld [vmem:[#allocation17] sm:$0xff]
    %v526 = vld [vmem:[#allocation17 + $0x8] sm:$0xf]
    %v533 = vunpack.c.l.b16 %v519
    %v534 = vunpack.c.l.b16 %v520
    %v535 = vunpack.c.l.b16 %v521
    %v536 = vunpack.c.l.b16 %v522
    %v537 = vunpack.c.l.b16 %v523
    %v538 = vunpack.c.l.b16 %v524
    %v539 = vpack.c.b16 %v534, %v533
    %v540 = vpack.c.b16 %v536, %v535
    %v541 = vpack.c.b16 %v538, %v537
    %v544 = vunpack.c.l.b16 %v525
    %v545 = vunpack.c.h.b16 %v525
    %v546 = vunpack.c.l.b16 %v526
    %v547 = vpack.c.b16 %v544, %v544
    %v548 = vpack.c.b16 %v545, %v545
    %v549 = vpack.c.b16 %v546, %v546
    %vm550 = vcmask 64512
    %v552 = vsel %vm550, %v539, 0
    %v555 = vsel %vm550, %v540, 0
    %v558 = vsel %vm550, %v541, 0
    %vm560 = vcmask 1043456
    %v562 = vsel %vm560, %v547, 0
    %v565 = vsel %vm560, %v548, 0
    %v568 = vsel %vm560, %v549, 0
    %570 = vmatprep.subr.bf16.mxu0 0
    %571 = vmatpush1.bf16.msra.mxu0 0
    %572 = vmatprep.subr.bf16.mxu0 0
    %573 = vmatpush1.bf16.msra.mxu0 0
    %574 = vmatprep.subr.bf16.mxu0 0
    %575 = vmatpush1.bf16.msra.mxu0 0
    %576 = vmatprep.subr.bf16.mxu0 0
    %577 = vmatpush1.bf16.msra.mxu0 0
    %578 = vmatprep.subr.bf16.mxu0 0
    %579 = vmatpush1.bf16.msra.mxu0 0
    %580 = vmatprep.subr.bf16.mxu0 0
    %581 = vmatpush1.bf16.msra.mxu0 0
    %582 = vmatprep.subr.bf16.mxu0 0
    %583 = vmatpush1.bf16.msra.mxu0 0
    %584 = vmatprep.subr.bf16.mxu0 %v565
    %585 = vmatpush1.bf16.msra.mxu0 %v562
    %586 = vmatprep.subr.bf16.mxu0 0
    %587 = vmatpush2.bf16.msra.mxu0 0
    %588 = vmatprep.subr.bf16.mxu0 0
    %589 = vmatpush2.bf16.msra.mxu0 0
    %590 = vmatprep.subr.bf16.mxu0 0
    %591 = vmatpush2.bf16.msra.mxu0 0
    %592 = vmatprep.subr.bf16.mxu0 0
    %593 = vmatpush2.bf16.msra.mxu0 0
    %594 = vmatprep.subr.bf16.mxu0 0
    %595 = vmatpush2.bf16.msra.mxu0 0
    %596 = vmatprep.subr.bf16.mxu0 0
    %597 = vmatpush2.bf16.msra.mxu0 0
    %598 = vmatprep.subr.bf16.mxu0 0
    %599 = vmatpush2.bf16.msra.mxu0 0
    %600 = vmatprep.subr.bf16.mxu0 0
    %601 = vmatpush2.bf16.msra.mxu0 0
    %602 = vmatprep.mubr.bf16.mxu0 0
    %603 = vmatmul.mubr.bf16.gmra.mxu0 %v552
    %v604 = vpop.f32.mrf.mxu0
    %v605 = vadd.f32 0.0, %v604
    %v606 = vpop.f32.mrf.mxu0
    %v607 = vadd.f32 0.0, %v606
    %v608 = vpop.f32.mrf.mxu0
    %v609 = vadd.f32 0.0, %v608
    %v610 = vpop.f32.mrf.mxu0
    %v611 = vadd.f32 0.0, %v610
    %612 = vmatprep.mubr.bf16.mxu0 0
    %613 = vmatmul.mubr.bf16.gmra.mxu0 %v555
    %v614 = vpop.f32.mrf.mxu0
    %v615 = vadd.f32 0.0, %v614
    %v616 = vpop.f32.mrf.mxu0
    %v617 = vadd.f32 0.0, %v616
    %v618 = vpop.f32.mrf.mxu0
    %v619 = vadd.f32 0.0, %v618
    %v620 = vpop.f32.mrf.mxu0
    %v621 = vadd.f32 0.0, %v620
    %622 = vmatprep.mubr.bf16.mxu0 0
    %623 = vmatmul.mubr.bf16.gmra.mxu0 %v558
    %v624 = vpop.f32.mrf.mxu0
    %v625 = vadd.f32 0.0, %v624
    %v626 = vpop.f32.mrf.mxu0
    %v627 = vadd.f32 0.0, %v626
    %v628 = vpop.f32.mrf.mxu0
    %v629 = vadd.f32 0.0, %v628
    %v630 = vpop.f32.mrf.mxu0
    %v631 = vadd.f32 0.0, %v630
    %632 = vdwg.mxu0
    %633 = vmatprep.subr.bf16.mxu0 0
    %634 = vmatpush1.bf16.msra.mxu0 0
    %635 = vmatprep.subr.bf16.mxu0 0
    %636 = vmatpush1.bf16.msra.mxu0 0
    %637 = vmatprep.subr.bf16.mxu0 0
    %638 = vmatpush1.bf16.msra.mxu0 0
    %639 = vmatprep.subr.bf16.mxu0 0
    %640 = vmatpush1.bf16.msra.mxu0 0
    %641 = vmatprep.subr.bf16.mxu0 0
    %642 = vmatpush1.bf16.msra.mxu0 0
    %643 = vmatprep.subr.bf16.mxu0 0
    %644 = vmatpush1.bf16.msra.mxu0 0
    %645 = vmatprep.subr.bf16.mxu0 0
    %646 = vmatpush1.bf16.msra.mxu0 0
    %647 = vmatprep.subr.bf16.mxu0 0
    %648 = vmatpush1.bf16.msra.mxu0 %v568
    %649 = vmatprep.subr.bf16.mxu0 0
    %650 = vmatpush2.bf16.msra.mxu0 0
    %651 = vmatprep.subr.bf16.mxu0 0
    %652 = vmatpush2.bf16.msra.mxu0 0
    %653 = vmatprep.subr.bf16.mxu0 0
    %654 = vmatpush2.bf16.msra.mxu0 0
    %655 = vmatprep.subr.bf16.mxu0 0
    %656 = vmatpush2.bf16.msra.mxu0 0
    %657 = vmatprep.subr.bf16.mxu0 0
    %658 = vmatpush2.bf16.msra.mxu0 0
    %659 = vmatprep.subr.bf16.mxu0 0
    %660 = vmatpush2.bf16.msra.mxu0 0
    %661 = vmatprep.subr.bf16.mxu0 0
    %662 = vmatpush2.bf16.msra.mxu0 0
    %663 = vmatprep.subr.bf16.mxu0 0
    %664 = vmatpush2.bf16.msra.mxu0 0
    %665 = vmatprep.mubr.bf16.mxu0 0
    %666 = vmatmul.mubr.bf16.gmra.mxu0 %v552
    %v667 = vpop.f32.mrf.mxu0
    %v668 = vadd.f32 0.0, %v667
    %v669 = vpop.f32.mrf.mxu0
    %v670 = vpop.f32.mrf.mxu0
    %v671 = vadd.f32 0.0, %v670
    %v672 = vpop.f32.mrf.mxu0
    %673 = vmatprep.mubr.bf16.mxu0 0
    %674 = vmatmul.mubr.bf16.gmra.mxu0 %v555
    %v675 = vpop.f32.mrf.mxu0
    %v676 = vadd.f32 0.0, %v675
    %v677 = vpop.f32.mrf.mxu0
    %v678 = vpop.f32.mrf.mxu0
    %v679 = vadd.f32 0.0, %v678
    %v680 = vpop.f32.mrf.mxu0
    %681 = vmatprep.mubr.bf16.mxu0 0
    %682 = vmatmul.mubr.bf16.gmra.mxu0 %v558
    %v683 = vpop.f32.mrf.mxu0
    %v684 = vadd.f32 0.0, %v683
    %v685 = vpop.f32.mrf.mxu0
    %v686 = vpop.f32.mrf.mxu0
    %v687 = vadd.f32 0.0, %v686
    %v688 = vpop.f32.mrf.mxu0
    %689 = vdwg.mxu0
    %v690 = vld [vmem:[#allocation11] sm:$0xf]
    %v691 = vld [vmem:[#allocation11 + $0x4] sm:$0xf]
    %v692 = vld [vmem:[#allocation11 + $0x8] sm:$0xf]
    %v693 = vld [vmem:[#allocation11 + $0xc] sm:$0xf]
    %v694 = vld [vmem:[#allocation11 + $0x10] sm:$0xf]
    %v695 = vld [vmem:[#allocation11 + $0x14] sm:$0xf]
    %v696 = vld [vmem:[#allocation11 + $0x18] sm:$0xf]
    %v697 = vld [vmem:[#allocation11 + $0x1c] sm:$0xf]
    %v698 = vld [vmem:[#allocation11 + $0x20] sm:$0xf]
    %v699 = vld [vmem:[#allocation11 + $0x24] sm:$0xf]
    %v700 = vld [vmem:[#allocation11 + $0x28] sm:$0xf]
    %v701 = vld [vmem:[#allocation11 + $0x2c] sm:$0xf]
    %v702 = vld [vmem:[#allocation11 + $0x30] sm:$0xf]
    %v703 = vld [vmem:[#allocation11 + $0x34] sm:$0xf]
    %v704 = vld [vmem:[#allocation11 + $0x38] sm:$0xf]
    %v705 = vld [vmem:[#allocation11 + $0x3c] sm:$0xf]
    %v706 = vpack.c.bf16 %v508, %v507
    %v707 = vld [vmem:[#allocation12] sm:$0x1]
    %v709 = vlaneseq
    %v710 = vshrl.u32 %v709, 7
    %v711 = vsub.s32 0, %v710
    %v712 = vrot.slane %v707, %v711
    %v730 = vunpack.c.l.b16 %v690
    %v731 = vunpack.c.l.b16 %v691
    %v732 = vunpack.c.l.b16 %v692
    %v733 = vunpack.c.l.b16 %v693
    %v734 = vunpack.c.l.b16 %v694
    %v735 = vunpack.c.l.b16 %v695
    %v736 = vunpack.c.l.b16 %v696
    %v737 = vunpack.c.l.b16 %v697
    %v738 = vunpack.c.l.b16 %v698
    %v739 = vunpack.c.l.b16 %v699
    %v740 = vunpack.c.l.b16 %v700
    %v741 = vunpack.c.l.b16 %v701
    %v742 = vunpack.c.l.b16 %v702
    %v743 = vunpack.c.l.b16 %v703
    %v744 = vunpack.c.l.b16 %v704
    %v745 = vunpack.c.l.b16 %v705
    %v746 = vpack.c.b16 %v731, %v730
    %v747 = vpack.c.b16 %v733, %v732
    %v748 = vpack.c.b16 %v735, %v734
    %v749 = vpack.c.b16 %v737, %v736
    %v750 = vpack.c.b16 %v739, %v738
    %v751 = vpack.c.b16 %v741, %v740
    %v752 = vpack.c.b16 %v743, %v742
    %v753 = vpack.c.b16 %v745, %v744
    %762 = vmatprep.subr.bf16.mxu0 0
    %763 = vmatpush1.bf16.msra.mxu0 %v753
    %764 = vmatprep.subr.bf16.mxu0 0
    %765 = vmatpush1.bf16.msra.mxu0 %v752
    %766 = vmatprep.subr.bf16.mxu0 0
    %767 = vmatpush1.bf16.msra.mxu0 %v751
    %768 = vmatprep.subr.bf16.mxu0 0
    %769 = vmatpush1.bf16.msra.mxu0 %v750
    %770 = vmatprep.subr.bf16.mxu0 0
    %771 = vmatpush1.bf16.msra.mxu0 %v749
    %772 = vmatprep.subr.bf16.mxu0 0
    %773 = vmatpush1.bf16.msra.mxu0 %v748
    %774 = vmatprep.subr.bf16.mxu0 0
    %775 = vmatpush1.bf16.msra.mxu0 %v747
    %776 = vmatprep.subr.bf16.mxu0 0
    %777 = vmatpush1.bf16.msra.mxu0 %v746
    %778 = vmatprep.subr.bf16.mxu0 0
    %779 = vmatpush2.bf16.msra.mxu0 0
    %780 = vmatprep.subr.bf16.mxu0 0
    %781 = vmatpush2.bf16.msra.mxu0 0
    %782 = vmatprep.subr.bf16.mxu0 0
    %783 = vmatpush2.bf16.msra.mxu0 0
    %784 = vmatprep.subr.bf16.mxu0 0
    %785 = vmatpush2.bf16.msra.mxu0 0
    %786 = vmatprep.subr.bf16.mxu0 0
    %787 = vmatpush2.bf16.msra.mxu0 0
    %788 = vmatprep.subr.bf16.mxu0 0
    %789 = vmatpush2.bf16.msra.mxu0 0
    %790 = vmatprep.subr.bf16.mxu0 0
    %791 = vmatpush2.bf16.msra.mxu0 0
    %792 = vmatprep.subr.bf16.mxu0 0
    %793 = vmatpush2.bf16.msra.mxu0 0
    %794 = vmatprep.mubr.bf16.mxu0 0
    %795 = vmatmul.mubr.bf16.gmra.mxu0 %v706
    %v796 = vpop.f32.mrf.mxu0
    %v797 = vadd.f32 %v712, %v796
    %v798 = vpop.f32.mrf.mxu0
    %v799 = vpop.f32.mrf.mxu0
    %v800 = vadd.f32 %v712, %v799
    %v801 = vpop.f32.mrf.mxu0
    %802 = vdwg.mxu0
    %v803 = vpack.c.bf16 %v800, %v797
    %v804 = vld [vmem:[#allocation14] sm:$0xf]
    %v805 = vld [vmem:[#allocation14 + $0x4] sm:$0xf]
    %v806 = vld [vmem:[#allocation14 + $0x8] sm:$0xf]
    %v807 = vld [vmem:[#allocation14 + $0xc] sm:$0xf]
    %v808 = vld [vmem:[#allocation14 + $0x10] sm:$0xf]
    %v809 = vld [vmem:[#allocation14 + $0x14] sm:$0xf]
    %v810 = vld [vmem:[#allocation14 + $0x18] sm:$0xf]
    %v811 = vld [vmem:[#allocation14 + $0x1c] sm:$0xf]
    %v812 = vld [vmem:[#allocation14 + $0x20] sm:$0xf]
    %v813 = vld [vmem:[#allocation14 + $0x24] sm:$0xf]
    %v814 = vld [vmem:[#allocation14 + $0x28] sm:$0xf]
    %v815 = vld [vmem:[#allocation14 + $0x2c] sm:$0xf]
    %v816 = vld [vmem:[#allocation14 + $0x30] sm:$0xf]
    %v817 = vld [vmem:[#allocation14 + $0x34] sm:$0xf]
    %v818 = vld [vmem:[#allocation14 + $0x38] sm:$0xf]
    %v819 = vld [vmem:[#allocation14 + $0x3c] sm:$0xf]
    %v836 = vunpack.c.l.b16 %v804
    %v837 = vunpack.c.l.b16 %v805
    %v838 = vunpack.c.l.b16 %v806
    %v839 = vunpack.c.l.b16 %v807
    %v840 = vunpack.c.l.b16 %v808
    %v841 = vunpack.c.l.b16 %v809
    %v842 = vunpack.c.l.b16 %v810
    %v843 = vunpack.c.l.b16 %v811
    %v844 = vunpack.c.l.b16 %v812
    %v845 = vunpack.c.l.b16 %v813
    %v846 = vunpack.c.l.b16 %v814
    %v847 = vunpack.c.l.b16 %v815
    %v848 = vunpack.c.l.b16 %v816
    %v849 = vunpack.c.l.b16 %v817
    %v850 = vunpack.c.l.b16 %v818
    %v851 = vunpack.c.l.b16 %v819
    %v852 = vpack.c.b16 %v837, %v836
    %v853 = vpack.c.b16 %v839, %v838
    %v854 = vpack.c.b16 %v841, %v840
    %v855 = vpack.c.b16 %v843, %v842
    %v856 = vpack.c.b16 %v845, %v844
    %v857 = vpack.c.b16 %v847, %v846
    %v858 = vpack.c.b16 %v849, %v848
    %v859 = vpack.c.b16 %v851, %v850
    %868 = vmatprep.subr.bf16.mxu0 0
    %869 = vmatpush1.bf16.msra.mxu0 %v859
    %870 = vmatprep.subr.bf16.mxu0 0
    %871 = vmatpush1.bf16.msra.mxu0 %v858
    %872 = vmatprep.subr.bf16.mxu0 0
    %873 = vmatpush1.bf16.msra.mxu0 %v857
    %874 = vmatprep.subr.bf16.mxu0 0
    %875 = vmatpush1.bf16.msra.mxu0 %v856
    %876 = vmatprep.subr.bf16.mxu0 0
    %877 = vmatpush1.bf16.msra.mxu0 %v855
    %878 = vmatprep.subr.bf16.mxu0 0
    %879 = vmatpush1.bf16.msra.mxu0 %v854
    %880 = vmatprep.subr.bf16.mxu0 0
    %881 = vmatpush1.bf16.msra.mxu0 %v853
    %882 = vmatprep.subr.bf16.mxu0 0
    %883 = vmatpush1.bf16.msra.mxu0 %v852
    %884 = vmatprep.subr.bf16.mxu0 0
    %885 = vmatpush2.bf16.msra.mxu0 0
    %886 = vmatprep.subr.bf16.mxu0 0
    %887 = vmatpush2.bf16.msra.mxu0 0
    %888 = vmatprep.subr.bf16.mxu0 0
    %889 = vmatpush2.bf16.msra.mxu0 0
    %890 = vmatprep.subr.bf16.mxu0 0
    %891 = vmatpush2.bf16.msra.mxu0 0
    %892 = vmatprep.subr.bf16.mxu0 0
    %893 = vmatpush2.bf16.msra.mxu0 0
    %894 = vmatprep.subr.bf16.mxu0 0
    %895 = vmatpush2.bf16.msra.mxu0 0
    %896 = vmatprep.subr.bf16.mxu0 0
    %897 = vmatpush2.bf16.msra.mxu0 0
    %898 = vmatprep.subr.bf16.mxu0 0
    %899 = vmatpush2.bf16.msra.mxu0 0
    %900 = vmatprep.mubr.bf16.mxu0 0
    %901 = vmatmul.mubr.bf16.gmra.mxu0 %v803
    %v902 = vpop.f32.mrf.mxu0
    %v903 = vadd.f32 0.0, %v902
    %v904 = vpop.f32.mrf.mxu0
    %v905 = vpop.f32.mrf.mxu0
    %v906 = vadd.f32 0.0, %v905
    %v907 = vpop.f32.mrf.mxu0
    %908 = vdwg.mxu0
    %v909 = vld [vmem:[#allocation15] sm:$0xf]
    %v910 = vld [vmem:[#allocation15 + $0x4] sm:$0xf]
    %v911 = vld [vmem:[#allocation15 + $0x8] sm:$0xf]
    %v912 = vld [vmem:[#allocation15 + $0xc] sm:$0xf]
    %v913 = vld [vmem:[#allocation15 + $0x10] sm:$0xf]
    %v914 = vld [vmem:[#allocation15 + $0x14] sm:$0xf]
    %v915 = vld [vmem:[#allocation15 + $0x18] sm:$0xf]
    %v916 = vld [vmem:[#allocation15 + $0x1c] sm:$0xf]
    %v917 = vld [vmem:[#allocation15 + $0x20] sm:$0xf]
    %v918 = vld [vmem:[#allocation15 + $0x24] sm:$0xf]
    %v919 = vld [vmem:[#allocation15 + $0x28] sm:$0xf]
    %v920 = vld [vmem:[#allocation15 + $0x2c] sm:$0xf]
    %v921 = vld [vmem:[#allocation15 + $0x30] sm:$0xf]
    %v922 = vld [vmem:[#allocation15 + $0x34] sm:$0xf]
    %v923 = vld [vmem:[#allocation15 + $0x38] sm:$0xf]
    %v924 = vld [vmem:[#allocation15 + $0x3c] sm:$0xf]
    %v941 = vunpack.c.l.b16 %v909
    %v942 = vunpack.c.l.b16 %v910
    %v943 = vunpack.c.l.b16 %v911
    %v944 = vunpack.c.l.b16 %v912
    %v945 = vunpack.c.l.b16 %v913
    %v946 = vunpack.c.l.b16 %v914
    %v947 = vunpack.c.l.b16 %v915
    %v948 = vunpack.c.l.b16 %v916
    %v949 = vunpack.c.l.b16 %v917
    %v950 = vunpack.c.l.b16 %v918
    %v951 = vunpack.c.l.b16 %v919
    %v952 = vunpack.c.l.b16 %v920
    %v953 = vunpack.c.l.b16 %v921
    %v954 = vunpack.c.l.b16 %v922
    %v955 = vunpack.c.l.b16 %v923
    %v956 = vunpack.c.l.b16 %v924
    %v957 = vpack.c.b16 %v942, %v941
    %v958 = vpack.c.b16 %v944, %v943
    %v959 = vpack.c.b16 %v946, %v945
    %v960 = vpack.c.b16 %v948, %v947
    %v961 = vpack.c.b16 %v950, %v949
    %v962 = vpack.c.b16 %v952, %v951
    %v963 = vpack.c.b16 %v954, %v953
    %v964 = vpack.c.b16 %v956, %v955
    %973 = vmatprep.subr.bf16.mxu0 0
    %974 = vmatpush1.bf16.msra.mxu0 %v964
    %975 = vmatprep.subr.bf16.mxu0 0
    %976 = vmatpush1.bf16.msra.mxu0 %v963
    %977 = vmatprep.subr.bf16.mxu0 0
    %978 = vmatpush1.bf16.msra.mxu0 %v962
    %979 = vmatprep.subr.bf16.mxu0 0
    %980 = vmatpush1.bf16.msra.mxu0 %v961
    %981 = vmatprep.subr.bf16.mxu0 0
    %982 = vmatpush1.bf16.msra.mxu0 %v960
    %983 = vmatprep.subr.bf16.mxu0 0
    %984 = vmatpush1.bf16.msra.mxu0 %v959
    %985 = vmatprep.subr.bf16.mxu0 0
    %986 = vmatpush1.bf16.msra.mxu0 %v958
    %987 = vmatprep.subr.bf16.mxu0 0
    %988 = vmatpush1.bf16.msra.mxu0 %v957
    %989 = vmatprep.subr.bf16.mxu0 0
    %990 = vmatpush2.bf16.msra.mxu0 0
    %991 = vmatprep.subr.bf16.mxu0 0
    %992 = vmatpush2.bf16.msra.mxu0 0
    %993 = vmatprep.subr.bf16.mxu0 0
    %994 = vmatpush2.bf16.msra.mxu0 0
    %995 = vmatprep.subr.bf16.mxu0 0
    %996 = vmatpush2.bf16.msra.mxu0 0
    %997 = vmatprep.subr.bf16.mxu0 0
    %998 = vmatpush2.bf16.msra.mxu0 0
    %999 = vmatprep.subr.bf16.mxu0 0
    %1000 = vmatpush2.bf16.msra.mxu0 0
    %1001 = vmatprep.subr.bf16.mxu0 0
    %1002 = vmatpush2.bf16.msra.mxu0 0
    %1003 = vmatprep.subr.bf16.mxu0 0
    %1004 = vmatpush2.bf16.msra.mxu0 0
    %1005 = vmatprep.mubr.bf16.mxu0 0
    %1006 = vmatmul.mubr.bf16.gmra.mxu0 %v803
    %v1007 = vpop.f32.mrf.mxu0
    %v1008 = vadd.f32 0.0, %v1007
    %v1009 = vpop.f32.mrf.mxu0
    %v1010 = vpop.f32.mrf.mxu0
    %v1011 = vadd.f32 0.0, %v1010
    %v1012 = vpop.f32.mrf.mxu0
    %1013 = vdwg.mxu0
    %v1014 = vpack.c.bf16 %v906, %v903
    %v1016 = vunpack.c.l.b16 %v1014
    %v1017 = vunpack.c.h.b16 %v1014
    %v1018 = vpack.c.b16 %v1016, %v1016
    %v1019 = vpack.c.b16 %v1017, %v1017
    %1022 = vst [vmem:[#allocation2] sm:$0xf] %v1018
    %1023 = vst [vmem:[#allocation2 + $0x4] sm:$0xf] %v1019
    %v1024 = vpack.c.bf16 %v1011, %v1008
    %v1026 = vunpack.c.l.b16 %v1024
    %v1027 = vunpack.c.h.b16 %v1024
    %v1028 = vpack.c.b16 %v1026, %v1026
    %v1029 = vpack.c.b16 %v1027, %v1027
    %1032 = vst [vmem:[#allocation2 + $0x8] sm:$0xf] %v1028
    %1033 = vst [vmem:[#allocation2 + $0xc] sm:$0xf] %v1029
    %v1034 = vld [vmem:[#allocation2] sm:$0xf]
    %v1035 = vld [vmem:[#allocation2 + $0x4] sm:$0xf]
    %v1036 = vld [vmem:[#allocation2 + $0x8] sm:$0xf]
    %v1037 = vld [vmem:[#allocation2 + $0xc] sm:$0xf]
    %v1044 = vunpack.c.l.b16 %v509
    %v1045 = vunpack.c.l.b16 %v510
    %v1046 = vunpack.c.l.b16 %v511
    %v1047 = vunpack.c.l.b16 %v512
    %v1048 = vunpack.c.l.b16 %v513
    %v1049 = vunpack.c.l.b16 %v514
    %v1050 = vpack.c.b16 %v1045, %v1044
    %v1051 = vpack.c.b16 %v1047, %v1046
    %v1052 = vpack.c.b16 %v1049, %v1048
    %v1057 = vunpack.c.l.b16 %v1034
    %v1058 = vunpack.c.l.b16 %v1035
    %v1059 = vunpack.c.l.b16 %v1036
    %v1060 = vunpack.c.l.b16 %v1037
    %v1061 = vpack.c.b16 %v1058, %v1057
    %v1062 = vpack.c.b16 %v1060, %v1059
    %vm1065 = vcmask 261120
    %v1067 = vsel %vm1065, %v1050, 0
    %v1070 = vsel %vm1065, %v1051, 0
    %v1073 = vsel %vm1065, %v1052, 0
    %1075 = vmatprep.subr.bf16.mxu0 0
    %1076 = vmatpush1.bf16.msra.mxu0 0
    %1077 = vmatprep.subr.bf16.mxu0 0
    %1078 = vmatpush1.bf16.msra.mxu0 0
    %1079 = vmatprep.subr.bf16.mxu0 0
    %1080 = vmatpush1.bf16.msra.mxu0 0
    %1081 = vmatprep.subr.bf16.mxu0 0
    %1082 = vmatpush1.bf16.msra.mxu0 0
    %1083 = vmatprep.subr.bf16.mxu0 0
    %1084 = vmatpush1.bf16.msra.mxu0 0
    %1085 = vmatprep.subr.bf16.mxu0 0
    %1086 = vmatpush1.bf16.msra.mxu0 0
    %1087 = vmatprep.subr.bf16.mxu0 0
    %1088 = vmatpush1.bf16.msra.mxu0 %v1062
    %1089 = vmatprep.subr.bf16.mxu0 0
    %1090 = vmatpush1.bf16.msra.mxu0 %v1061
    %1091 = vmatprep.subr.bf16.mxu0 0
    %1092 = vmatpush2.bf16.msra.mxu0 0
    %1093 = vmatprep.subr.bf16.mxu0 0
    %1094 = vmatpush2.bf16.msra.mxu0 0
    %1095 = vmatprep.subr.bf16.mxu0 0
    %1096 = vmatpush2.bf16.msra.mxu0 0
    %1097 = vmatprep.subr.bf16.mxu0 0
    %1098 = vmatpush2.bf16.msra.mxu0 0
    %1099 = vmatprep.subr.bf16.mxu0 0
    %1100 = vmatpush2.bf16.msra.mxu0 0
    %1101 = vmatprep.subr.bf16.mxu0 0
    %1102 = vmatpush2.bf16.msra.mxu0 0
    %1103 = vmatprep.subr.bf16.mxu0 0
    %1104 = vmatpush2.bf16.msra.mxu0 0
    %1105 = vmatprep.subr.bf16.mxu0 0
    %1106 = vmatpush2.bf16.msra.mxu0 0
    %1107 = vmatprep.mubr.bf16.mxu0 0
    %1108 = vmatmul.mubr.bf16.gmra.mxu0 %v1067
    %v1109 = vpop.f32.mrf.mxu0
    %v1110 = vadd.f32 %v605, %v1109
    %v1111 = vpop.f32.mrf.mxu0
    %v1112 = vpop.f32.mrf.mxu0
    %v1113 = vadd.f32 %v609, %v1112
    %v1114 = vpop.f32.mrf.mxu0
    %1115 = vmatprep.mubr.bf16.mxu0 0
    %1116 = vmatmul.mubr.bf16.gmra.mxu0 %v1070
    %v1117 = vpop.f32.mrf.mxu0
    %v1118 = vadd.f32 %v615, %v1117
    %v1119 = vpop.f32.mrf.mxu0
    %v1120 = vpop.f32.mrf.mxu0
    %v1121 = vadd.f32 %v619, %v1120
    %v1122 = vpop.f32.mrf.mxu0
    %1123 = vmatprep.mubr.bf16.mxu0 0
    %1124 = vmatmul.mubr.bf16.gmra.mxu0 %v1073
    %v1125 = vpop.f32.mrf.mxu0
    %v1126 = vadd.f32 %v625, %v1125
    %v1127 = vpop.f32.mrf.mxu0
    %v1128 = vpop.f32.mrf.mxu0
    %v1129 = vadd.f32 %v629, %v1128
    %v1130 = vpop.f32.mrf.mxu0
    %1131 = vdwg.mxu0
    %v1132 = vld [vmem:[#allocation18] sm:$0x1]
    %v1134 = vlaneseq
    %v1135 = vshrl.u32 %v1134, 7
    %v1136 = vsub.s32 0, %v1135
    %v1137 = vrot.slane %v1132, %v1136
    %v1139 = vadd.f32 %v1110, %v1137
    %v1140 = vadd.f32 %v1113, %v1137
    %v1141 = vadd.f32 %v1118, %v1137
    %v1142 = vadd.f32 %v1121, %v1137
    %v1143 = vadd.f32 %v1126, %v1137
    %v1144 = vadd.f32 %v1129, %v1137
    %v1145 = vmax.f32 %v1139, 0.0
    %v1146 = vmax.f32 %v1140, 0.0
    %v1147 = vmax.f32 %v1141, 0.0
    %v1148 = vmax.f32 %v1142, 0.0
    %v1149 = vmax.f32 %v1143, 0.0
    %v1150 = vmax.f32 %v1144, 0.0
    %v1151 = vpack.c.bf16 %v1146, %v1145
    %v1152 = vpack.c.bf16 %v1148, %v1147
    %v1153 = vpack.c.bf16 %v1150, %v1149
    %v1156 = vunpack.c.l.b16 %v515
    %v1157 = vunpack.c.l.b16 %v516
    %v1158 = vpack.c.b16 %v1157, %v1156
    %vm1159 = vcmask 392192
    %v1161 = vsel %vm1159, %v1158, 0
    %1163 = vmatprep.subr.bf16.mxu0 0
    %1164 = vmatpush1.bf16.msra.mxu0 0
    %1165 = vmatprep.subr.bf16.mxu0 0
    %1166 = vmatpush1.bf16.msra.mxu0 0
    %1167 = vmatprep.subr.bf16.mxu0 0
    %1168 = vmatpush1.bf16.msra.mxu0 0
    %1169 = vmatprep.subr.bf16.mxu0 0
    %1170 = vmatpush1.bf16.msra.mxu0 0
    %1171 = vmatprep.subr.bf16.mxu0 0
    %1172 = vmatpush1.bf16.msra.mxu0 0
    %1173 = vmatprep.subr.bf16.mxu0 0
    %1174 = vmatpush1.bf16.msra.mxu0 %v1153
    %1175 = vmatprep.subr.bf16.mxu0 0
    %1176 = vmatpush1.bf16.msra.mxu0 %v1152
    %1177 = vmatprep.subr.bf16.mxu0 0
    %1178 = vmatpush1.bf16.msra.mxu0 %v1151
    %1179 = vmatprep.subr.bf16.mxu0 0
    %1180 = vmatpush2.bf16.msra.mxu0 0
    %1181 = vmatprep.subr.bf16.mxu0 0
    %1182 = vmatpush2.bf16.msra.mxu0 0
    %1183 = vmatprep.subr.bf16.mxu0 0
    %1184 = vmatpush2.bf16.msra.mxu0 0
    %1185 = vmatprep.subr.bf16.mxu0 0
    %1186 = vmatpush2.bf16.msra.mxu0 0
    %1187 = vmatprep.subr.bf16.mxu0 0
    %1188 = vmatpush2.bf16.msra.mxu0 0
    %1189 = vmatprep.subr.bf16.mxu0 0
    %1190 = vmatpush2.bf16.msra.mxu0 0
    %1191 = vmatprep.subr.bf16.mxu0 0
    %1192 = vmatpush2.bf16.msra.mxu0 0
    %1193 = vmatprep.subr.bf16.mxu0 0
    %1194 = vmatpush2.bf16.msra.mxu0 0
    %1195 = vmatprep.mubr.bf16.mxu0 0
    %1196 = vmatmul.mubr.bf16.gmra.mxu0 %v1161
    %v1197 = vpop.f32.mrf.mxu0
    %v1198 = vadd.f32 0.0, %v1197
    %v1199 = vpop.f32.mrf.mxu0
    %v1200 = vpop.f32.mrf.mxu0
    %v1201 = vadd.f32 0.0, %v1200
    %v1202 = vpop.f32.mrf.mxu0
    %1203 = vdwg.mxu0
    %1205 = vset.pattern.permute.xlu0 0
    %1206 = vperm.xlu0 %1205, %v517
    %v1207 = vpop.permute.xlu0 %1206
    %1210 = vset.pattern.permute.xlu0 0
    %1211 = vperm.xlu0 %1210, %v518
    %v1212 = vpop.permute.xlu0 %1211
    %v1214 = vmul.f32 %v1198, %v1207
    %v1215 = vmul.f32 %v1201, %v1212
    %v1216 = vadd.f32 %v1214, %v797
    %v1217 = vadd.f32 %v1215, %v800
    %1218 = vadd.xlane.f32.xlu0 %v1216
    %v1219 = vpop.xlane.xlu0 %1218
    %1220 = vadd.xlane.f32.xlu0 %v1217
    %v1221 = vpop.xlane.xlu0 %1220
    %v1222 = vrcp.pop 128.0
    %v1223 = vmul.f32 %v1219, %v1222
    %v1224 = vmul.f32 %v1221, %v1222
    %v1225 = vsub.f32 %v1216, %v1223
    %v1226 = vsub.f32 %v1217, %v1224
    %v1227 = vmul.f32 %v1225, %v1225
    %v1228 = vmul.f32 %v1226, %v1226
    %1229 = vadd.xlane.f32.xlu0 %v1227
    %v1230 = vpop.xlane.xlu0 %1229
    %1231 = vadd.xlane.f32.xlu0 %v1228
    %v1232 = vpop.xlane.xlu0 %1231
    %v1233 = vmul.f32 %v1230, %v1222
    %v1234 = vmul.f32 %v1232, %v1222
    %v1235 = vadd.f32 %v1233, 1e-05
    %v1236 = vadd.f32 %v1234, 1e-05
    %v1237 = vrsqrt.pop %v1235
    %v1238 = vrsqrt.pop %v1236
    %v1239 = vmul.f32 %v1225, %v1237
    %v1240 = vmul.f32 %v1226, %v1238
    %v1241 = vld [vmem:[#allocation20] sm:$0x1]
    %v1243 = vlaneseq
    %v1244 = vshrl.u32 %v1243, 7
    %v1245 = vsub.s32 0, %v1244
    %v1246 = vrot.slane %v1241, %v1245
    %v1248 = vmul.f32 %v1239, %v1246
    %v1249 = vmul.f32 %v1240, %v1246
    %v1250 = vld [vmem:[#allocation21] sm:$0x1]
    %v1252 = vlaneseq
    %v1253 = vshrl.u32 %v1252, 7
    %v1254 = vsub.s32 0, %v1253
    %v1255 = vrot.slane %v1250, %v1254
    %v1257 = vadd.f32 %v1248, %v1255
    %v1258 = vadd.f32 %v1249, %v1255
    %s1259 = scalar_lea.vmem [#allocation11], 64
    %v1260 = vld [vmem:[%s1259] sm:$0xf]
    %v1261 = vld [vmem:[%s1259 + $0x4] sm:$0xf]
    %v1262 = vld [vmem:[%s1259 + $0x8] sm:$0xf]
    %v1263 = vld [vmem:[%s1259 + $0xc] sm:$0xf]
    %v1264 = vld [vmem:[%s1259 + $0x10] sm:$0xf]
    %v1265 = vld [vmem:[%s1259 + $0x14] sm:$0xf]
    %v1266 = vld [vmem:[%s1259 + $0x18] sm:$0xf]
    %v1267 = vld [vmem:[%s1259 + $0x1c] sm:$0xf]
    %v1268 = vld [vmem:[%s1259 + $0x20] sm:$0xf]
    %v1269 = vld [vmem:[%s1259 + $0x24] sm:$0xf]
    %v1270 = vld [vmem:[%s1259 + $0x28] sm:$0xf]
    %v1271 = vld [vmem:[%s1259 + $0x2c] sm:$0xf]
    %v1272 = vld [vmem:[%s1259 + $0x30] sm:$0xf]
    %v1273 = vld [vmem:[%s1259 + $0x34] sm:$0xf]
    %v1274 = vld [vmem:[%s1259 + $0x38] sm:$0xf]
    %v1275 = vld [vmem:[%s1259 + $0x3c] sm:$0xf]
    %v1276 = vpack.c.bf16 %v1258, %v1257
    %s1277 = scalar_lea.vmem [#allocation12], 1
    %v1278 = vld [vmem:[%s1277] sm:$0x1]
    %v1280 = vlaneseq
    %v1281 = vshrl.u32 %v1280, 7
    %v1282 = vsub.s32 0, %v1281
    %v1283 = vrot.slane %v1278, %v1282
    %v1301 = vunpack.c.l.b16 %v1260
    %v1302 = vunpack.c.l.b16 %v1261
    %v1303 = vunpack.c.l.b16 %v1262
    %v1304 = vunpack.c.l.b16 %v1263
    %v1305 = vunpack.c.l.b16 %v1264
    %v1306 = vunpack.c.l.b16 %v1265
    %v1307 = vunpack.c.l.b16 %v1266
    %v1308 = vunpack.c.l.b16 %v1267
    %v1309 = vunpack.c.l.b16 %v1268
    %v1310 = vunpack.c.l.b16 %v1269
    %v1311 = vunpack.c.l.b16 %v1270
    %v1312 = vunpack.c.l.b16 %v1271
    %v1313 = vunpack.c.l.b16 %v1272
    %v1314 = vunpack.c.l.b16 %v1273
    %v1315 = vunpack.c.l.b16 %v1274
    %v1316 = vunpack.c.l.b16 %v1275
    %v1317 = vpack.c.b16 %v1302, %v1301
    %v1318 = vpack.c.b16 %v1304, %v1303
    %v1319 = vpack.c.b16 %v1306, %v1305
    %v1320 = vpack.c.b16 %v1308, %v1307
    %v1321 = vpack.c.b16 %v1310, %v1309
    %v1322 = vpack.c.b16 %v1312, %v1311
    %v1323 = vpack.c.b16 %v1314, %v1313
    %v1324 = vpack.c.b16 %v1316, %v1315
    %1333 = vmatprep.subr.bf16.mxu0 0
    %1334 = vmatpush1.bf16.msra.mxu0 %v1324
    %1335 = vmatprep.subr.bf16.mxu0 0
    %1336 = vmatpush1.bf16.msra.mxu0 %v1323
    %1337 = vmatprep.subr.bf16.mxu0 0
    %1338 = vmatpush1.bf16.msra.mxu0 %v1322
    %1339 = vmatprep.subr.bf16.mxu0 0
    %1340 = vmatpush1.bf16.msra.mxu0 %v1321
    %1341 = vmatprep.subr.bf16.mxu0 0
    %1342 = vmatpush1.bf16.msra.mxu0 %v1320
    %1343 = vmatprep.subr.bf16.mxu0 0
    %1344 = vmatpush1.bf16.msra.mxu0 %v1319
    %1345 = vmatprep.subr.bf16.mxu0 0
    %1346 = vmatpush1.bf16.msra.mxu0 %v1318
    %1347 = vmatprep.subr.bf16.mxu0 0
    %1348 = vmatpush1.bf16.msra.mxu0 %v1317
    %1349 = vmatprep.subr.bf16.mxu0 0
    %1350 = vmatpush2.bf16.msra.mxu0 0
    %1351 = vmatprep.subr.bf16.mxu0 0
    %1352 = vmatpush2.bf16.msra.mxu0 0
    %1353 = vmatprep.subr.bf16.mxu0 0
    %1354 = vmatpush2.bf16.msra.mxu0 0
    %1355 = vmatprep.subr.bf16.mxu0 0
    %1356 = vmatpush2.bf16.msra.mxu0 0
    %1357 = vmatprep.subr.bf16.mxu0 0
    %1358 = vmatpush2.bf16.msra.mxu0 0
    %1359 = vmatprep.subr.bf16.mxu0 0
    %1360 = vmatpush2.bf16.msra.mxu0 0
    %1361 = vmatprep.subr.bf16.mxu0 0
    %1362 = vmatpush2.bf16.msra.mxu0 0
    %1363 = vmatprep.subr.bf16.mxu0 0
    %1364 = vmatpush2.bf16.msra.mxu0 0
    %1365 = vmatprep.mubr.bf16.mxu0 0
    %1366 = vmatmul.mubr.bf16.gmra.mxu0 %v1276
    %v1367 = vpop.f32.mrf.mxu0
    %v1368 = vadd.f32 %v1283, %v1367
    %v1369 = vpop.f32.mrf.mxu0
    %v1370 = vpop.f32.mrf.mxu0
    %v1371 = vadd.f32 %v1283, %v1370
    %v1372 = vpop.f32.mrf.mxu0
    %1373 = vdwg.mxu0
    %v1374 = vpack.c.bf16 %v1371, %v1368
    %s1375 = scalar_lea.vmem [#allocation14], 64
    %v1376 = vld [vmem:[%s1375] sm:$0xf]
    %v1377 = vld [vmem:[%s1375 + $0x4] sm:$0xf]
    %v1378 = vld [vmem:[%s1375 + $0x8] sm:$0xf]
    %v1379 = vld [vmem:[%s1375 + $0xc] sm:$0xf]
    %v1380 = vld [vmem:[%s1375 + $0x10] sm:$0xf]
    %v1381 = vld [vmem:[%s1375 + $0x14] sm:$0xf]
    %v1382 = vld [vmem:[%s1375 + $0x18] sm:$0xf]
    %v1383 = vld [vmem:[%s1375 + $0x1c] sm:$0xf]
    %v1384 = vld [vmem:[%s1375 + $0x20] sm:$0xf]
    %v1385 = vld [vmem:[%s1375 + $0x24] sm:$0xf]
    %v1386 = vld [vmem:[%s1375 + $0x28] sm:$0xf]
    %v1387 = vld [vmem:[%s1375 + $0x2c] sm:$0xf]
    %v1388 = vld [vmem:[%s1375 + $0x30] sm:$0xf]
    %v1389 = vld [vmem:[%s1375 + $0x34] sm:$0xf]
    %v1390 = vld [vmem:[%s1375 + $0x38] sm:$0xf]
    %v1391 = vld [vmem:[%s1375 + $0x3c] sm:$0xf]
    %v1408 = vunpack.c.l.b16 %v1376
    %v1409 = vunpack.c.l.b16 %v1377
    %v1410 = vunpack.c.l.b16 %v1378
    %v1411 = vunpack.c.l.b16 %v1379
    %v1412 = vunpack.c.l.b16 %v1380
    %v1413 = vunpack.c.l.b16 %v1381
    %v1414 = vunpack.c.l.b16 %v1382
    %v1415 = vunpack.c.l.b16 %v1383
    %v1416 = vunpack.c.l.b16 %v1384
    %v1417 = vunpack.c.l.b16 %v1385
    %v1418 = vunpack.c.l.b16 %v1386
    %v1419 = vunpack.c.l.b16 %v1387
    %v1420 = vunpack.c.l.b16 %v1388
    %v1421 = vunpack.c.l.b16 %v1389
    %v1422 = vunpack.c.l.b16 %v1390
    %v1423 = vunpack.c.l.b16 %v1391
    %v1424 = vpack.c.b16 %v1409, %v1408
    %v1425 = vpack.c.b16 %v1411, %v1410
    %v1426 = vpack.c.b16 %v1413, %v1412
    %v1427 = vpack.c.b16 %v1415, %v1414
    %v1428 = vpack.c.b16 %v1417, %v1416
    %v1429 = vpack.c.b16 %v1419, %v1418
    %v1430 = vpack.c.b16 %v1421, %v1420
    %v1431 = vpack.c.b16 %v1423, %v1422
    %1440 = vmatprep.subr.bf16.mxu0 0
    %1441 = vmatpush1.bf16.msra.mxu0 %v1431
    %1442 = vmatprep.subr.bf16.mxu0 0
    %1443 = vmatpush1.bf16.msra.mxu0 %v1430
    %1444 = vmatprep.subr.bf16.mxu0 0
    %1445 = vmatpush1.bf16.msra.mxu0 %v1429
    %1446 = vmatprep.subr.bf16.mxu0 0
    %1447 = vmatpush1.bf16.msra.mxu0 %v1428
    %1448 = vmatprep.subr.bf16.mxu0 0
    %1449 = vmatpush1.bf16.msra.mxu0 %v1427
    %1450 = vmatprep.subr.bf16.mxu0 0
    %1451 = vmatpush1.bf16.msra.mxu0 %v1426
    %1452 = vmatprep.subr.bf16.mxu0 0
    %1453 = vmatpush1.bf16.msra.mxu0 %v1425
    %1454 = vmatprep.subr.bf16.mxu0 0
    %1455 = vmatpush1.bf16.msra.mxu0 %v1424
    %1456 = vmatprep.subr.bf16.mxu0 0
    %1457 = vmatpush2.bf16.msra.mxu0 0
    %1458 = vmatprep.subr.bf16.mxu0 0
    %1459 = vmatpush2.bf16.msra.mxu0 0
    %1460 = vmatprep.subr.bf16.mxu0 0
    %1461 = vmatpush2.bf16.msra.mxu0 0
    %1462 = vmatprep.subr.bf16.mxu0 0
    %1463 = vmatpush2.bf16.msra.mxu0 0
    %1464 = vmatprep.subr.bf16.mxu0 0
    %1465 = vmatpush2.bf16.msra.mxu0 0
    %1466 = vmatprep.subr.bf16.mxu0 0
    %1467 = vmatpush2.bf16.msra.mxu0 0
    %1468 = vmatprep.subr.bf16.mxu0 0
    %1469 = vmatpush2.bf16.msra.mxu0 0
    %1470 = vmatprep.subr.bf16.mxu0 0
    %1471 = vmatpush2.bf16.msra.mxu0 0
    %1472 = vmatprep.mubr.bf16.mxu0 0
    %1473 = vmatmul.mubr.bf16.gmra.mxu0 %v1374
    %v1474 = vpop.f32.mrf.mxu0
    %v1475 = vadd.f32 0.0, %v1474
    %v1476 = vpop.f32.mrf.mxu0
    %v1477 = vpop.f32.mrf.mxu0
    %v1478 = vadd.f32 0.0, %v1477
    %v1479 = vpop.f32.mrf.mxu0
    %1480 = vdwg.mxu0
    %s1481 = scalar_lea.vmem [#allocation15], 64
    %v1482 = vld [vmem:[%s1481] sm:$0xf]
    %v1483 = vld [vmem:[%s1481 + $0x4] sm:$0xf]
    %v1484 = vld [vmem:[%s1481 + $0x8] sm:$0xf]
    %v1485 = vld [vmem:[%s1481 + $0xc] sm:$0xf]
    %v1486 = vld [vmem:[%s1481 + $0x10] sm:$0xf]
    %v1487 = vld [vmem:[%s1481 + $0x14] sm:$0xf]
    %v1488 = vld [vmem:[%s1481 + $0x18] sm:$0xf]
    %v1489 = vld [vmem:[%s1481 + $0x1c] sm:$0xf]
    %v1490 = vld [vmem:[%s1481 + $0x20] sm:$0xf]
    %v1491 = vld [vmem:[%s1481 + $0x24] sm:$0xf]
    %v1492 = vld [vmem:[%s1481 + $0x28] sm:$0xf]
    %v1493 = vld [vmem:[%s1481 + $0x2c] sm:$0xf]
    %v1494 = vld [vmem:[%s1481 + $0x30] sm:$0xf]
    %v1495 = vld [vmem:[%s1481 + $0x34] sm:$0xf]
    %v1496 = vld [vmem:[%s1481 + $0x38] sm:$0xf]
    %v1497 = vld [vmem:[%s1481 + $0x3c] sm:$0xf]
    %v1514 = vunpack.c.l.b16 %v1482
    %v1515 = vunpack.c.l.b16 %v1483
    %v1516 = vunpack.c.l.b16 %v1484
    %v1517 = vunpack.c.l.b16 %v1485
    %v1518 = vunpack.c.l.b16 %v1486
    %v1519 = vunpack.c.l.b16 %v1487
    %v1520 = vunpack.c.l.b16 %v1488
    %v1521 = vunpack.c.l.b16 %v1489
    %v1522 = vunpack.c.l.b16 %v1490
    %v1523 = vunpack.c.l.b16 %v1491
    %v1524 = vunpack.c.l.b16 %v1492
    %v1525 = vunpack.c.l.b16 %v1493
    %v1526 = vunpack.c.l.b16 %v1494
    %v1527 = vunpack.c.l.b16 %v1495
    %v1528 = vunpack.c.l.b16 %v1496
    %v1529 = vunpack.c.l.b16 %v1497
    %v1530 = vpack.c.b16 %v1515, %v1514
    %v1531 = vpack.c.b16 %v1517, %v1516
    %v1532 = vpack.c.b16 %v1519, %v1518
    %v1533 = vpack.c.b16 %v1521, %v1520
    %v1534 = vpack.c.b16 %v1523, %v1522
    %v1535 = vpack.c.b16 %v1525, %v1524
    %v1536 = vpack.c.b16 %v1527, %v1526
    %v1537 = vpack.c.b16 %v1529, %v1528
    %1546 = vmatprep.subr.bf16.mxu0 0
    %1547 = vmatpush1.bf16.msra.mxu0 %v1537
    %1548 = vmatprep.subr.bf16.mxu0 0
    %1549 = vmatpush1.bf16.msra.mxu0 %v1536
    %1550 = vmatprep.subr.bf16.mxu0 0
    %1551 = vmatpush1.bf16.msra.mxu0 %v1535
    %1552 = vmatprep.subr.bf16.mxu0 0
    %1553 = vmatpush1.bf16.msra.mxu0 %v1534
    %1554 = vmatprep.subr.bf16.mxu0 0
    %1555 = vmatpush1.bf16.msra.mxu0 %v1533
    %1556 = vmatprep.subr.bf16.mxu0 0
    %1557 = vmatpush1.bf16.msra.mxu0 %v1532
    %1558 = vmatprep.subr.bf16.mxu0 0
    %1559 = vmatpush1.bf16.msra.mxu0 %v1531
    %1560 = vmatprep.subr.bf16.mxu0 0
    %1561 = vmatpush1.bf16.msra.mxu0 %v1530
    %1562 = vmatprep.subr.bf16.mxu0 0
    %1563 = vmatpush2.bf16.msra.mxu0 0
    %1564 = vmatprep.subr.bf16.mxu0 0
    %1565 = vmatpush2.bf16.msra.mxu0 0
    %1566 = vmatprep.subr.bf16.mxu0 0
    %1567 = vmatpush2.bf16.msra.mxu0 0
    %1568 = vmatprep.subr.bf16.mxu0 0
    %1569 = vmatpush2.bf16.msra.mxu0 0
    %1570 = vmatprep.subr.bf16.mxu0 0
    %1571 = vmatpush2.bf16.msra.mxu0 0
    %1572 = vmatprep.subr.bf16.mxu0 0
    %1573 = vmatpush2.bf16.msra.mxu0 0
    %1574 = vmatprep.subr.bf16.mxu0 0
    %1575 = vmatpush2.bf16.msra.mxu0 0
    %1576 = vmatprep.subr.bf16.mxu0 0
    %1577 = vmatpush2.bf16.msra.mxu0 0
    %1578 = vmatprep.mubr.bf16.mxu0 0
    %1579 = vmatmul.mubr.bf16.gmra.mxu0 %v1374
    %v1580 = vpop.f32.mrf.mxu0
    %v1581 = vadd.f32 0.0, %v1580
    %v1582 = vpop.f32.mrf.mxu0
    %v1583 = vpop.f32.mrf.mxu0
    %v1584 = vadd.f32 0.0, %v1583
    %v1585 = vpop.f32.mrf.mxu0
    %1586 = vdwg.mxu0
    %v1587 = vpack.c.bf16 %v1478, %v1475
    %v1589 = vunpack.c.l.b16 %v1587
    %v1590 = vunpack.c.h.b16 %v1587
    %v1591 = vpack.c.b16 %v1589, %v1589
    %v1592 = vpack.c.b16 %v1590, %v1590
    %1595 = vst [vmem:[#allocation2] sm:$0xf] %v1591
    %1596 = vst [vmem:[#allocation2 + $0x4] sm:$0xf] %v1592
    %v1597 = vpack.c.bf16 %v1584, %v1581
    %v1599 = vunpack.c.l.b16 %v1597
    %v1600 = vunpack.c.h.b16 %v1597
    %v1601 = vpack.c.b16 %v1599, %v1599
    %v1602 = vpack.c.b16 %v1600, %v1600
    %1605 = vst [vmem:[#allocation2 + $0x8] sm:$0xf] %v1601
    %1606 = vst [vmem:[#allocation2 + $0xc] sm:$0xf] %v1602
    %v1607 = vld [vmem:[#allocation2] sm:$0xf]
    %v1608 = vld [vmem:[#allocation2 + $0x4] sm:$0xf]
    %v1609 = vld [vmem:[#allocation2 + $0x8] sm:$0xf]
    %v1610 = vld [vmem:[#allocation2 + $0xc] sm:$0xf]
    %v1615 = vunpack.c.l.b16 %v1607
    %v1616 = vunpack.c.l.b16 %v1608
    %v1617 = vunpack.c.l.b16 %v1609
    %v1618 = vunpack.c.l.b16 %v1610
    %v1619 = vpack.c.b16 %v1616, %v1615
    %v1620 = vpack.c.b16 %v1618, %v1617
    %1623 = vmatprep.subr.bf16.mxu0 0
    %1624 = vmatpush1.bf16.msra.mxu0 0
    %1625 = vmatprep.subr.bf16.mxu0 0
    %1626 = vmatpush1.bf16.msra.mxu0 0
    %1627 = vmatprep.subr.bf16.mxu0 0
    %1628 = vmatpush1.bf16.msra.mxu0 0
    %1629 = vmatprep.subr.bf16.mxu0 0
    %1630 = vmatpush1.bf16.msra.mxu0 0
    %1631 = vmatprep.subr.bf16.mxu0 0
    %1632 = vmatpush1.bf16.msra.mxu0 0
    %1633 = vmatprep.subr.bf16.mxu0 0
    %1634 = vmatpush1.bf16.msra.mxu0 0
    %1635 = vmatprep.subr.bf16.mxu0 0
    %1636 = vmatpush1.bf16.msra.mxu0 %v1620
    %1637 = vmatprep.subr.bf16.mxu0 0
    %1638 = vmatpush1.bf16.msra.mxu0 %v1619
    %1639 = vmatprep.subr.bf16.mxu0 0
    %1640 = vmatpush2.bf16.msra.mxu0 0
    %1641 = vmatprep.subr.bf16.mxu0 0
    %1642 = vmatpush2.bf16.msra.mxu0 0
    %1643 = vmatprep.subr.bf16.mxu0 0
    %1644 = vmatpush2.bf16.msra.mxu0 0
    %1645 = vmatprep.subr.bf16.mxu0 0
    %1646 = vmatpush2.bf16.msra.mxu0 0
    %1647 = vmatprep.subr.bf16.mxu0 0
    %1648 = vmatpush2.bf16.msra.mxu0 0
    %1649 = vmatprep.subr.bf16.mxu0 0
    %1650 = vmatpush2.bf16.msra.mxu0 0
    %1651 = vmatprep.subr.bf16.mxu0 0
    %1652 = vmatpush2.bf16.msra.mxu0 0
    %1653 = vmatprep.subr.bf16.mxu0 0
    %1654 = vmatpush2.bf16.msra.mxu0 0
    %1655 = vmatprep.mubr.bf16.mxu0 0
    %1656 = vmatmul.mubr.bf16.gmra.mxu0 %v1067
    %v1657 = vpop.f32.mrf.mxu0
    %v1658 = vadd.f32 %v607, %v1657
    %v1659 = vpop.f32.mrf.mxu0
    %v1660 = vpop.f32.mrf.mxu0
    %v1661 = vadd.f32 %v611, %v1660
    %v1662 = vpop.f32.mrf.mxu0
    %1663 = vmatprep.mubr.bf16.mxu0 0
    %1664 = vmatmul.mubr.bf16.gmra.mxu0 %v1070
    %v1665 = vpop.f32.mrf.mxu0
    %v1666 = vadd.f32 %v617, %v1665
    %v1667 = vpop.f32.mrf.mxu0
    %v1668 = vpop.f32.mrf.mxu0
    %v1669 = vadd.f32 %v621, %v1668
    %v1670 = vpop.f32.mrf.mxu0
    %1671 = vmatprep.mubr.bf16.mxu0 0
    %1672 = vmatmul.mubr.bf16.gmra.mxu0 %v1073
    %v1673 = vpop.f32.mrf.mxu0
    %v1674 = vadd.f32 %v627, %v1673
    %v1675 = vpop.f32.mrf.mxu0
    %v1676 = vpop.f32.mrf.mxu0
    %v1677 = vadd.f32 %v631, %v1676
    %v1678 = vpop.f32.mrf.mxu0
    %1679 = vdwg.mxu0
    %s1680 = scalar_lea.vmem [#allocation18], 1
    %v1681 = vld [vmem:[%s1680] sm:$0x1]
    %v1683 = vlaneseq
    %v1684 = vshrl.u32 %v1683, 7
    %v1685 = vsub.s32 0, %v1684
    %v1686 = vrot.slane %v1681, %v1685
    %v1688 = vadd.f32 %v1658, %v1686
    %v1689 = vadd.f32 %v1661, %v1686
    %v1690 = vadd.f32 %v1666, %v1686
    %v1691 = vadd.f32 %v1669, %v1686
    %v1692 = vadd.f32 %v1674, %v1686
    %v1693 = vadd.f32 %v1677, %v1686
    %v1694 = vmax.f32 %v1688, 0.0
    %v1695 = vmax.f32 %v1689, 0.0
    %v1696 = vmax.f32 %v1690, 0.0
    %v1697 = vmax.f32 %v1691, 0.0
    %v1698 = vmax.f32 %v1692, 0.0
    %v1699 = vmax.f32 %v1693, 0.0
    %v1700 = vpack.c.bf16 %v1695, %v1694
    %v1701 = vpack.c.bf16 %v1697, %v1696
    %v1702 = vpack.c.bf16 %v1699, %v1698
    %1703 = vmatprep.subr.bf16.mxu0 0
    %1704 = vmatpush1.bf16.msra.mxu0 0
    %1705 = vmatprep.subr.bf16.mxu0 0
    %1706 = vmatpush1.bf16.msra.mxu0 0
    %1707 = vmatprep.subr.bf16.mxu0 0
    %1708 = vmatpush1.bf16.msra.mxu0 0
    %1709 = vmatprep.subr.bf16.mxu0 0
    %1710 = vmatpush1.bf16.msra.mxu0 0
    %1711 = vmatprep.subr.bf16.mxu0 0
    %1712 = vmatpush1.bf16.msra.mxu0 0
    %1713 = vmatprep.subr.bf16.mxu0 0
    %1714 = vmatpush1.bf16.msra.mxu0 %v1702
    %1715 = vmatprep.subr.bf16.mxu0 0
    %1716 = vmatpush1.bf16.msra.mxu0 %v1701
    %1717 = vmatprep.subr.bf16.mxu0 0
    %1718 = vmatpush1.bf16.msra.mxu0 %v1700
    %1719 = vmatprep.subr.bf16.mxu0 0
    %1720 = vmatpush2.bf16.msra.mxu0 0
    %1721 = vmatprep.subr.bf16.mxu0 0
    %1722 = vmatpush2.bf16.msra.mxu0 0
    %1723 = vmatprep.subr.bf16.mxu0 0
    %1724 = vmatpush2.bf16.msra.mxu0 0
    %1725 = vmatprep.subr.bf16.mxu0 0
    %1726 = vmatpush2.bf16.msra.mxu0 0
    %1727 = vmatprep.subr.bf16.mxu0 0
    %1728 = vmatpush2.bf16.msra.mxu0 0
    %1729 = vmatprep.subr.bf16.mxu0 0
    %1730 = vmatpush2.bf16.msra.mxu0 0
    %1731 = vmatprep.subr.bf16.mxu0 0
    %1732 = vmatpush2.bf16.msra.mxu0 0
    %1733 = vmatprep.subr.bf16.mxu0 0
    %1734 = vmatpush2.bf16.msra.mxu0 0
    %1735 = vmatprep.mubr.bf16.mxu0 0
    %1736 = vmatmul.mubr.bf16.gmra.mxu0 %v1161
    %v1737 = vpop.f32.mrf.mxu0
    %v1738 = vadd.f32 0.0, %v1737
    %v1739 = vpop.f32.mrf.mxu0
    %v1740 = vpop.f32.mrf.mxu0
    %v1741 = vadd.f32 0.0, %v1740
    %v1742 = vpop.f32.mrf.mxu0
    %1743 = vdwg.mxu0
    %v1744 = vmul.f32 %v1738, %v1207
    %v1745 = vmul.f32 %v1741, %v1212
    %v1746 = vadd.f32 %v1744, %v1368
    %v1747 = vadd.f32 %v1745, %v1371
    %1748 = vadd.xlane.f32.xlu0 %v1746
    %v1749 = vpop.xlane.xlu0 %1748
    %1750 = vadd.xlane.f32.xlu0 %v1747
    %v1751 = vpop.xlane.xlu0 %1750
    %v1752 = vmul.f32 %v1749, %v1222
    %v1753 = vmul.f32 %v1751, %v1222
    %v1754 = vsub.f32 %v1746, %v1752
    %v1755 = vsub.f32 %v1747, %v1753
    %v1756 = vmul.f32 %v1754, %v1754
    %v1757 = vmul.f32 %v1755, %v1755
    %1758 = vadd.xlane.f32.xlu0 %v1756
    %v1759 = vpop.xlane.xlu0 %1758
    %1760 = vadd.xlane.f32.xlu0 %v1757
    %v1761 = vpop.xlane.xlu0 %1760
    %v1762 = vmul.f32 %v1759, %v1222
    %v1763 = vmul.f32 %v1761, %v1222
    %v1764 = vadd.f32 %v1762, 1e-05
    %v1765 = vadd.f32 %v1763, 1e-05
    %v1766 = vrsqrt.pop %v1764
    %v1767 = vrsqrt.pop %v1765
    %v1768 = vmul.f32 %v1754, %v1766
    %v1769 = vmul.f32 %v1755, %v1767
    %s1770 = scalar_lea.vmem [#allocation20], 1
    %v1771 = vld [vmem:[%s1770] sm:$0x1]
    %v1773 = vlaneseq
    %v1774 = vshrl.u32 %v1773, 7
    %v1775 = vsub.s32 0, %v1774
    %v1776 = vrot.slane %v1771, %v1775
    %v1778 = vmul.f32 %v1768, %v1776
    %v1779 = vmul.f32 %v1769, %v1776
    %s1780 = scalar_lea.vmem [#allocation21], 1
    %v1781 = vld [vmem:[%s1780] sm:$0x1]
    %v1783 = vlaneseq
    %v1784 = vshrl.u32 %v1783, 7
    %v1785 = vsub.s32 0, %v1784
    %v1786 = vrot.slane %v1781, %v1785
    %v1788 = vadd.f32 %v1778, %v1786
    %v1789 = vadd.f32 %v1779, %v1786
    %s1790 = scalar_lea.vmem [#allocation11], 128
    %v1791 = vld [vmem:[%s1790] sm:$0xf]
    %v1792 = vld [vmem:[%s1790 + $0x4] sm:$0xf]
    %v1793 = vld [vmem:[%s1790 + $0x8] sm:$0xf]
    %v1794 = vld [vmem:[%s1790 + $0xc] sm:$0xf]
    %v1795 = vld [vmem:[%s1790 + $0x10] sm:$0xf]
    %v1796 = vld [vmem:[%s1790 + $0x14] sm:$0xf]
    %v1797 = vld [vmem:[%s1790 + $0x18] sm:$0xf]
    %v1798 = vld [vmem:[%s1790 + $0x1c] sm:$0xf]
    %v1799 = vld [vmem:[%s1790 + $0x20] sm:$0xf]
    %v1800 = vld [vmem:[%s1790 + $0x24] sm:$0xf]
    %v1801 = vld [vmem:[%s1790 + $0x28] sm:$0xf]
    %v1802 = vld [vmem:[%s1790 + $0x2c] sm:$0xf]
    %v1803 = vld [vmem:[%s1790 + $0x30] sm:$0xf]
    %v1804 = vld [vmem:[%s1790 + $0x34] sm:$0xf]
    %v1805 = vld [vmem:[%s1790 + $0x38] sm:$0xf]
    %v1806 = vld [vmem:[%s1790 + $0x3c] sm:$0xf]
    %v1807 = vpack.c.bf16 %v1789, %v1788
    %s1808 = scalar_lea.vmem [#allocation12], 2
    %v1809 = vld [vmem:[%s1808] sm:$0x1]
    %v1811 = vlaneseq
    %v1812 = vshrl.u32 %v1811, 7
    %v1813 = vsub.s32 0, %v1812
    %v1814 = vrot.slane %v1809, %v1813
    %v1832 = vunpack.c.l.b16 %v1791
    %v1833 = vunpack.c.l.b16 %v1792
    %v1834 = vunpack.c.l.b16 %v1793
    %v1835 = vunpack.c.l.b16 %v1794
    %v1836 = vunpack.c.l.b16 %v1795
    %v1837 = vunpack.c.l.b16 %v1796
    %v1838 = vunpack.c.l.b16 %v1797
    %v1839 = vunpack.c.l.b16 %v1798
    %v1840 = vunpack.c.l.b16 %v1799
    %v1841 = vunpack.c.l.b16 %v1800
    %v1842 = vunpack.c.l.b16 %v1801
    %v1843 = vunpack.c.l.b16 %v1802
    %v1844 = vunpack.c.l.b16 %v1803
    %v1845 = vunpack.c.l.b16 %v1804
    %v1846 = vunpack.c.l.b16 %v1805
    %v1847 = vunpack.c.l.b16 %v1806
    %v1848 = vpack.c.b16 %v1833, %v1832
    %v1849 = vpack.c.b16 %v1835, %v1834
    %v1850 = vpack.c.b16 %v1837, %v1836
    %v1851 = vpack.c.b16 %v1839, %v1838
    %v1852 = vpack.c.b16 %v1841, %v1840
    %v1853 = vpack.c.b16 %v1843, %v1842
    %v1854 = vpack.c.b16 %v1845, %v1844
    %v1855 = vpack.c.b16 %v1847, %v1846
    %1864 = vmatprep.subr.bf16.mxu0 0
    %1865 = vmatpush1.bf16.msra.mxu0 %v1855
    %1866 = vmatprep.subr.bf16.mxu0 0
    %1867 = vmatpush1.bf16.msra.mxu0 %v1854
    %1868 = vmatprep.subr.bf16.mxu0 0
    %1869 = vmatpush1.bf16.msra.mxu0 %v1853
    %1870 = vmatprep.subr.bf16.mxu0 0
    %1871 = vmatpush1.bf16.msra.mxu0 %v1852
    %1872 = vmatprep.subr.bf16.mxu0 0
    %1873 = vmatpush1.bf16.msra.mxu0 %v1851
    %1874 = vmatprep.subr.bf16.mxu0 0
    %1875 = vmatpush1.bf16.msra.mxu0 %v1850
    %1876 = vmatprep.subr.bf16.mxu0 0
    %1877 = vmatpush1.bf16.msra.mxu0 %v1849
    %1878 = vmatprep.subr.bf16.mxu0 0
    %1879 = vmatpush1.bf16.msra.mxu0 %v1848
    %1880 = vmatprep.subr.bf16.mxu0 0
    %1881 = vmatpush2.bf16.msra.mxu0 0
    %1882 = vmatprep.subr.bf16.mxu0 0
    %1883 = vmatpush2.bf16.msra.mxu0 0
    %1884 = vmatprep.subr.bf16.mxu0 0
    %1885 = vmatpush2.bf16.msra.mxu0 0
    %1886 = vmatprep.subr.bf16.mxu0 0
    %1887 = vmatpush2.bf16.msra.mxu0 0
    %1888 = vmatprep.subr.bf16.mxu0 0
    %1889 = vmatpush2.bf16.msra.mxu0 0
    %1890 = vmatprep.subr.bf16.mxu0 0
    %1891 = vmatpush2.bf16.msra.mxu0 0
    %1892 = vmatprep.subr.bf16.mxu0 0
    %1893 = vmatpush2.bf16.msra.mxu0 0
    %1894 = vmatprep.subr.bf16.mxu0 0
    %1895 = vmatpush2.bf16.msra.mxu0 0
    %1896 = vmatprep.mubr.bf16.mxu0 0
    %1897 = vmatmul.mubr.bf16.gmra.mxu0 %v1807
    %v1898 = vpop.f32.mrf.mxu0
    %v1899 = vadd.f32 %v1814, %v1898
    %v1900 = vpop.f32.mrf.mxu0
    %v1901 = vpop.f32.mrf.mxu0
    %v1902 = vadd.f32 %v1814, %v1901
    %v1903 = vpop.f32.mrf.mxu0
    %1904 = vdwg.mxu0
    %v1905 = vpack.c.bf16 %v1902, %v1899
    %s1906 = scalar_lea.vmem [#allocation14], 128
    %v1907 = vld [vmem:[%s1906] sm:$0xf]
    %v1908 = vld [vmem:[%s1906 + $0x4] sm:$0xf]
    %v1909 = vld [vmem:[%s1906 + $0x8] sm:$0xf]
    %v1910 = vld [vmem:[%s1906 + $0xc] sm:$0xf]
    %v1911 = vld [vmem:[%s1906 + $0x10] sm:$0xf]
    %v1912 = vld [vmem:[%s1906 + $0x14] sm:$0xf]
    %v1913 = vld [vmem:[%s1906 + $0x18] sm:$0xf]
    %v1914 = vld [vmem:[%s1906 + $0x1c] sm:$0xf]
    %v1915 = vld [vmem:[%s1906 + $0x20] sm:$0xf]
    %v1916 = vld [vmem:[%s1906 + $0x24] sm:$0xf]
    %v1917 = vld [vmem:[%s1906 + $0x28] sm:$0xf]
    %v1918 = vld [vmem:[%s1906 + $0x2c] sm:$0xf]
    %v1919 = vld [vmem:[%s1906 + $0x30] sm:$0xf]
    %v1920 = vld [vmem:[%s1906 + $0x34] sm:$0xf]
    %v1921 = vld [vmem:[%s1906 + $0x38] sm:$0xf]
    %v1922 = vld [vmem:[%s1906 + $0x3c] sm:$0xf]
    %v1939 = vunpack.c.l.b16 %v1907
    %v1940 = vunpack.c.l.b16 %v1908
    %v1941 = vunpack.c.l.b16 %v1909
    %v1942 = vunpack.c.l.b16 %v1910
    %v1943 = vunpack.c.l.b16 %v1911
    %v1944 = vunpack.c.l.b16 %v1912
    %v1945 = vunpack.c.l.b16 %v1913
    %v1946 = vunpack.c.l.b16 %v1914
    %v1947 = vunpack.c.l.b16 %v1915
    %v1948 = vunpack.c.l.b16 %v1916
    %v1949 = vunpack.c.l.b16 %v1917
    %v1950 = vunpack.c.l.b16 %v1918
    %v1951 = vunpack.c.l.b16 %v1919
    %v1952 = vunpack.c.l.b16 %v1920
    %v1953 = vunpack.c.l.b16 %v1921
    %v1954 = vunpack.c.l.b16 %v1922
    %v1955 = vpack.c.b16 %v1940, %v1939
    %v1956 = vpack.c.b16 %v1942, %v1941
    %v1957 = vpack.c.b16 %v1944, %v1943
    %v1958 = vpack.c.b16 %v1946, %v1945
    %v1959 = vpack.c.b16 %v1948, %v1947
    %v1960 = vpack.c.b16 %v1950, %v1949
    %v1961 = vpack.c.b16 %v1952, %v1951
    %v1962 = vpack.c.b16 %v1954, %v1953
    %1971 = vmatprep.subr.bf16.mxu0 0
    %1972 = vmatpush1.bf16.msra.mxu0 %v1962
    %1973 = vmatprep.subr.bf16.mxu0 0
    %1974 = vmatpush1.bf16.msra.mxu0 %v1961
    %1975 = vmatprep.subr.bf16.mxu0 0
    %1976 = vmatpush1.bf16.msra.mxu0 %v1960
    %1977 = vmatprep.subr.bf16.mxu0 0
    %1978 = vmatpush1.bf16.msra.mxu0 %v1959
    %1979 = vmatprep.subr.bf16.mxu0 0
    %1980 = vmatpush1.bf16.msra.mxu0 %v1958
    %1981 = vmatprep.subr.bf16.mxu0 0
    %1982 = vmatpush1.bf16.msra.mxu0 %v1957
    %1983 = vmatprep.subr.bf16.mxu0 0
    %1984 = vmatpush1.bf16.msra.mxu0 %v1956
    %1985 = vmatprep.subr.bf16.mxu0 0
    %1986 = vmatpush1.bf16.msra.mxu0 %v1955
    %1987 = vmatprep.subr.bf16.mxu0 0
    %1988 = vmatpush2.bf16.msra.mxu0 0
    %1989 = vmatprep.subr.bf16.mxu0 0
    %1990 = vmatpush2.bf16.msra.mxu0 0
    %1991 = vmatprep.subr.bf16.mxu0 0
    %1992 = vmatpush2.bf16.msra.mxu0 0
    %1993 = vmatprep.subr.bf16.mxu0 0
    %1994 = vmatpush2.bf16.msra.mxu0 0
    %1995 = vmatprep.subr.bf16.mxu0 0
    %1996 = vmatpush2.bf16.msra.mxu0 0
    %1997 = vmatprep.subr.bf16.mxu0 0
    %1998 = vmatpush2.bf16.msra.mxu0 0
    %1999 = vmatprep.subr.bf16.mxu0 0
    %2000 = vmatpush2.bf16.msra.mxu0 0
    %2001 = vmatprep.subr.bf16.mxu0 0
    %2002 = vmatpush2.bf16.msra.mxu0 0
    %2003 = vmatprep.mubr.bf16.mxu0 0
    %2004 = vmatmul.mubr.bf16.gmra.mxu0 %v1905
    %v2005 = vpop.f32.mrf.mxu0
    %v2006 = vadd.f32 0.0, %v2005
    %v2007 = vpop.f32.mrf.mxu0
    %v2008 = vpop.f32.mrf.mxu0
    %v2009 = vadd.f32 0.0, %v2008
    %v2010 = vpop.f32.mrf.mxu0
    %2011 = vdwg.mxu0
    %s2012 = scalar_lea.vmem [#allocation15], 128
    %v2013 = vld [vmem:[%s2012] sm:$0xf]
    %v2014 = vld [vmem:[%s2012 + $0x4] sm:$0xf]
    %v2015 = vld [vmem:[%s2012 + $0x8] sm:$0xf]
    %v2016 = vld [vmem:[%s2012 + $0xc] sm:$0xf]
    %v2017 = vld [vmem:[%s2012 + $0x10] sm:$0xf]
    %v2018 = vld [vmem:[%s2012 + $0x14] sm:$0xf]
    %v2019 = vld [vmem:[%s2012 + $0x18] sm:$0xf]
    %v2020 = vld [vmem:[%s2012 + $0x1c] sm:$0xf]
    %v2021 = vld [vmem:[%s2012 + $0x20] sm:$0xf]
    %v2022 = vld [vmem:[%s2012 + $0x24] sm:$0xf]
    %v2023 = vld [vmem:[%s2012 + $0x28] sm:$0xf]
    %v2024 = vld [vmem:[%s2012 + $0x2c] sm:$0xf]
    %v2025 = vld [vmem:[%s2012 + $0x30] sm:$0xf]
    %v2026 = vld [vmem:[%s2012 + $0x34] sm:$0xf]
    %v2027 = vld [vmem:[%s2012 + $0x38] sm:$0xf]
    %v2028 = vld [vmem:[%s2012 + $0x3c] sm:$0xf]
    %v2045 = vunpack.c.l.b16 %v2013
    %v2046 = vunpack.c.l.b16 %v2014
    %v2047 = vunpack.c.l.b16 %v2015
    %v2048 = vunpack.c.l.b16 %v2016
    %v2049 = vunpack.c.l.b16 %v2017
    %v2050 = vunpack.c.l.b16 %v2018
    %v2051 = vunpack.c.l.b16 %v2019
    %v2052 = vunpack.c.l.b16 %v2020
    %v2053 = vunpack.c.l.b16 %v2021
    %v2054 = vunpack.c.l.b16 %v2022
    %v2055 = vunpack.c.l.b16 %v2023
    %v2056 = vunpack.c.l.b16 %v2024
    %v2057 = vunpack.c.l.b16 %v2025
    %v2058 = vunpack.c.l.b16 %v2026
    %v2059 = vunpack.c.l.b16 %v2027
    %v2060 = vunpack.c.l.b16 %v2028
    %v2061 = vpack.c.b16 %v2046, %v2045
    %v2062 = vpack.c.b16 %v2048, %v2047
    %v2063 = vpack.c.b16 %v2050, %v2049
    %v2064 = vpack.c.b16 %v2052, %v2051
    %v2065 = vpack.c.b16 %v2054, %v2053
    %v2066 = vpack.c.b16 %v2056, %v2055
    %v2067 = vpack.c.b16 %v2058, %v2057
    %v2068 = vpack.c.b16 %v2060, %v2059
    %2077 = vmatprep.subr.bf16.mxu0 0
    %2078 = vmatpush1.bf16.msra.mxu0 %v2068
    %2079 = vmatprep.subr.bf16.mxu0 0
    %2080 = vmatpush1.bf16.msra.mxu0 %v2067
    %2081 = vmatprep.subr.bf16.mxu0 0
    %2082 = vmatpush1.bf16.msra.mxu0 %v2066
    %2083 = vmatprep.subr.bf16.mxu0 0
    %2084 = vmatpush1.bf16.msra.mxu0 %v2065
    %2085 = vmatprep.subr.bf16.mxu0 0
    %2086 = vmatpush1.bf16.msra.mxu0 %v2064
    %2087 = vmatprep.subr.bf16.mxu0 0
    %2088 = vmatpush1.bf16.msra.mxu0 %v2063
    %2089 = vmatprep.subr.bf16.mxu0 0
    %2090 = vmatpush1.bf16.msra.mxu0 %v2062
    %2091 = vmatprep.subr.bf16.mxu0 0
    %2092 = vmatpush1.bf16.msra.mxu0 %v2061
    %2093 = vmatprep.subr.bf16.mxu0 0
    %2094 = vmatpush2.bf16.msra.mxu0 0
    %2095 = vmatprep.subr.bf16.mxu0 0
    %2096 = vmatpush2.bf16.msra.mxu0 0
    %2097 = vmatprep.subr.bf16.mxu0 0
    %2098 = vmatpush2.bf16.msra.mxu0 0
    %2099 = vmatprep.subr.bf16.mxu0 0
    %2100 = vmatpush2.bf16.msra.mxu0 0
    %2101 = vmatprep.subr.bf16.mxu0 0
    %2102 = vmatpush2.bf16.msra.mxu0 0
    %2103 = vmatprep.subr.bf16.mxu0 0
    %2104 = vmatpush2.bf16.msra.mxu0 0
    %2105 = vmatprep.subr.bf16.mxu0 0
    %2106 = vmatpush2.bf16.msra.mxu0 0
    %2107 = vmatprep.subr.bf16.mxu0 0
    %2108 = vmatpush2.bf16.msra.mxu0 0
    %2109 = vmatprep.mubr.bf16.mxu0 0
    %2110 = vmatmul.mubr.bf16.gmra.mxu0 %v1905
    %v2111 = vpop.f32.mrf.mxu0
    %v2112 = vadd.f32 0.0, %v2111
    %v2113 = vpop.f32.mrf.mxu0
    %v2114 = vpop.f32.mrf.mxu0
    %v2115 = vadd.f32 0.0, %v2114
    %v2116 = vpop.f32.mrf.mxu0
    %2117 = vdwg.mxu0
    %v2118 = vpack.c.bf16 %v2009, %v2006
    %v2120 = vunpack.c.l.b16 %v2118
    %v2121 = vunpack.c.h.b16 %v2118
    %v2122 = vpack.c.b16 %v2120, %v2120
    %v2123 = vpack.c.b16 %v2121, %v2121
    %2126 = vst [vmem:[#allocation2] sm:$0xf] %v2122
    %2127 = vst [vmem:[#allocation2 + $0x4] sm:$0xf] %v2123
    %v2128 = vpack.c.bf16 %v2115, %v2112
    %v2130 = vunpack.c.l.b16 %v2128
    %v2131 = vunpack.c.h.b16 %v2128
    %v2132 = vpack.c.b16 %v2130, %v2130
    %v2133 = vpack.c.b16 %v2131, %v2131
    %2136 = vst [vmem:[#allocation2 + $0x8] sm:$0xf] %v2132
    %2137 = vst [vmem:[#allocation2 + $0xc] sm:$0xf] %v2133
    %v2138 = vld [vmem:[#allocation2] sm:$0xf]
    %v2139 = vld [vmem:[#allocation2 + $0x4] sm:$0xf]
    %v2140 = vld [vmem:[#allocation2 + $0x8] sm:$0xf]
    %v2141 = vld [vmem:[#allocation2 + $0xc] sm:$0xf]
    %v2146 = vunpack.c.l.b16 %v2138
    %v2147 = vunpack.c.l.b16 %v2139
    %v2148 = vunpack.c.l.b16 %v2140
    %v2149 = vunpack.c.l.b16 %v2141
    %v2150 = vpack.c.b16 %v2147, %v2146
    %v2151 = vpack.c.b16 %v2149, %v2148
    %2154 = vmatprep.subr.bf16.mxu0 0
    %2155 = vmatpush1.bf16.msra.mxu0 0
    %2156 = vmatprep.subr.bf16.mxu0 0
    %2157 = vmatpush1.bf16.msra.mxu0 0
    %2158 = vmatprep.subr.bf16.mxu0 0
    %2159 = vmatpush1.bf16.msra.mxu0 0
    %2160 = vmatprep.subr.bf16.mxu0 0
    %2161 = vmatpush1.bf16.msra.mxu0 0
    %2162 = vmatprep.subr.bf16.mxu0 0
    %2163 = vmatpush1.bf16.msra.mxu0 0
    %2164 = vmatprep.subr.bf16.mxu0 0
    %2165 = vmatpush1.bf16.msra.mxu0 0
    %2166 = vmatprep.subr.bf16.mxu0 0
    %2167 = vmatpush1.bf16.msra.mxu0 %v2151
    %2168 = vmatprep.subr.bf16.mxu0 0
    %2169 = vmatpush1.bf16.msra.mxu0 %v2150
    %2170 = vmatprep.subr.bf16.mxu0 0
    %2171 = vmatpush2.bf16.msra.mxu0 0
    %2172 = vmatprep.subr.bf16.mxu0 0
    %2173 = vmatpush2.bf16.msra.mxu0 0
    %2174 = vmatprep.subr.bf16.mxu0 0
    %2175 = vmatpush2.bf16.msra.mxu0 0
    %2176 = vmatprep.subr.bf16.mxu0 0
    %2177 = vmatpush2.bf16.msra.mxu0 0
    %2178 = vmatprep.subr.bf16.mxu0 0
    %2179 = vmatpush2.bf16.msra.mxu0 0
    %2180 = vmatprep.subr.bf16.mxu0 0
    %2181 = vmatpush2.bf16.msra.mxu0 0
    %2182 = vmatprep.subr.bf16.mxu0 0
    %2183 = vmatpush2.bf16.msra.mxu0 0
    %2184 = vmatprep.subr.bf16.mxu0 0
    %2185 = vmatpush2.bf16.msra.mxu0 0
    %2186 = vmatprep.mubr.bf16.mxu0 0
    %2187 = vmatmul.mubr.bf16.gmra.mxu0 %v1067
    %v2188 = vpop.f32.mrf.mxu0
    %v2189 = vadd.f32 %v668, %v2188
    %v2190 = vpop.f32.mrf.mxu0
    %v2191 = vpop.f32.mrf.mxu0
    %v2192 = vadd.f32 %v671, %v2191
    %v2193 = vpop.f32.mrf.mxu0
    %2194 = vmatprep.mubr.bf16.mxu0 0
    %2195 = vmatmul.mubr.bf16.gmra.mxu0 %v1070
    %v2196 = vpop.f32.mrf.mxu0
    %v2197 = vadd.f32 %v676, %v2196
    %v2198 = vpop.f32.mrf.mxu0
    %v2199 = vpop.f32.mrf.mxu0
    %v2200 = vadd.f32 %v679, %v2199
    %v2201 = vpop.f32.mrf.mxu0
    %2202 = vmatprep.mubr.bf16.mxu0 0
    %2203 = vmatmul.mubr.bf16.gmra.mxu0 %v1073
    %v2204 = vpop.f32.mrf.mxu0
    %v2205 = vadd.f32 %v684, %v2204
    %v2206 = vpop.f32.mrf.mxu0
    %v2207 = vpop.f32.mrf.mxu0
    %v2208 = vadd.f32 %v687, %v2207
    %v2209 = vpop.f32.mrf.mxu0
    %2210 = vdwg.mxu0
    %s2211 = scalar_lea.vmem [#allocation18], 2
    %v2212 = vld [vmem:[%s2211] sm:$0x1]
    %v2214 = vlaneseq
    %v2215 = vshrl.u32 %v2214, 7
    %v2216 = vsub.s32 0, %v2215
    %v2217 = vrot.slane %v2212, %v2216
    %v2219 = vadd.f32 %v2189, %v2217
    %v2220 = vadd.f32 %v2192, %v2217
    %v2221 = vadd.f32 %v2197, %v2217
    %v2222 = vadd.f32 %v2200, %v2217
    %v2223 = vadd.f32 %v2205, %v2217
    %v2224 = vadd.f32 %v2208, %v2217
    %v2225 = vmax.f32 %v2219, 0.0
    %v2226 = vmax.f32 %v2220, 0.0
    %v2227 = vmax.f32 %v2221, 0.0
    %v2228 = vmax.f32 %v2222, 0.0
    %v2229 = vmax.f32 %v2223, 0.0
    %v2230 = vmax.f32 %v2224, 0.0
    %v2231 = vpack.c.bf16 %v2226, %v2225
    %v2232 = vpack.c.bf16 %v2228, %v2227
    %v2233 = vpack.c.bf16 %v2230, %v2229
    %2234 = vmatprep.subr.bf16.mxu0 0
    %2235 = vmatpush1.bf16.msra.mxu0 0
    %2236 = vmatprep.subr.bf16.mxu0 0
    %2237 = vmatpush1.bf16.msra.mxu0 0
    %2238 = vmatprep.subr.bf16.mxu0 0
    %2239 = vmatpush1.bf16.msra.mxu0 0
    %2240 = vmatprep.subr.bf16.mxu0 0
    %2241 = vmatpush1.bf16.msra.mxu0 0
    %2242 = vmatprep.subr.bf16.mxu0 0
    %2243 = vmatpush1.bf16.msra.mxu0 0
    %2244 = vmatprep.subr.bf16.mxu0 0
    %2245 = vmatpush1.bf16.msra.mxu0 %v2233
    %2246 = vmatprep.subr.bf16.mxu0 0
    %2247 = vmatpush1.bf16.msra.mxu0 %v2232
    %2248 = vmatprep.subr.bf16.mxu0 0
    %2249 = vmatpush1.bf16.msra.mxu0 %v2231
    %2250 = vmatprep.subr.bf16.mxu0 0
    %2251 = vmatpush2.bf16.msra.mxu0 0
    %2252 = vmatprep.subr.bf16.mxu0 0
    %2253 = vmatpush2.bf16.msra.mxu0 0
    %2254 = vmatprep.subr.bf16.mxu0 0
    %2255 = vmatpush2.bf16.msra.mxu0 0
    %2256 = vmatprep.subr.bf16.mxu0 0
    %2257 = vmatpush2.bf16.msra.mxu0 0
    %2258 = vmatprep.subr.bf16.mxu0 0
    %2259 = vmatpush2.bf16.msra.mxu0 0
    %2260 = vmatprep.subr.bf16.mxu0 0
    %2261 = vmatpush2.bf16.msra.mxu0 0
    %2262 = vmatprep.subr.bf16.mxu0 0
    %2263 = vmatpush2.bf16.msra.mxu0 0
    %2264 = vmatprep.subr.bf16.mxu0 0
    %2265 = vmatpush2.bf16.msra.mxu0 0
    %2266 = vmatprep.mubr.bf16.mxu0 0
    %2267 = vmatmul.mubr.bf16.gmra.mxu0 %v1161
    %v2268 = vpop.f32.mrf.mxu0
    %v2269 = vadd.f32 0.0, %v2268
    %v2270 = vpop.f32.mrf.mxu0
    %v2271 = vpop.f32.mrf.mxu0
    %v2272 = vadd.f32 0.0, %v2271
    %v2273 = vpop.f32.mrf.mxu0
    %2274 = vdwg.mxu0
    %v2275 = vmul.f32 %v2269, %v1207
    %v2276 = vmul.f32 %v2272, %v1212
    %v2277 = vadd.f32 %v2275, %v1899
    %v2278 = vadd.f32 %v2276, %v1902
    %2279 = vadd.xlane.f32.xlu0 %v2277
    %v2280 = vpop.xlane.xlu0 %2279
    %2281 = vadd.xlane.f32.xlu0 %v2278
    %v2282 = vpop.xlane.xlu0 %2281
    %v2283 = vmul.f32 %v2280, %v1222
    %v2284 = vmul.f32 %v2282, %v1222
    %v2285 = vsub.f32 %v2277, %v2283
    %v2286 = vsub.f32 %v2278, %v2284
    %v2287 = vmul.f32 %v2285, %v2285
    %v2288 = vmul.f32 %v2286, %v2286
    %2289 = vadd.xlane.f32.xlu0 %v2287
    %v2290 = vpop.xlane.xlu0 %2289
    %2291 = vadd.xlane.f32.xlu0 %v2288
    %v2292 = vpop.xlane.xlu0 %2291
    %v2293 = vmul.f32 %v2290, %v1222
    %v2294 = vmul.f32 %v2292, %v1222
    %v2295 = vadd.f32 %v2293, 1e-05
    %v2296 = vadd.f32 %v2294, 1e-05
    %v2297 = vrsqrt.pop %v2295
    %v2298 = vrsqrt.pop %v2296
    %v2299 = vmul.f32 %v2285, %v2297
    %v2300 = vmul.f32 %v2286, %v2298
    %s2301 = scalar_lea.vmem [#allocation20], 2
    %v2302 = vld [vmem:[%s2301] sm:$0x1]
    %v2304 = vlaneseq
    %v2305 = vshrl.u32 %v2304, 7
    %v2306 = vsub.s32 0, %v2305
    %v2307 = vrot.slane %v2302, %v2306
    %v2309 = vmul.f32 %v2299, %v2307
    %v2310 = vmul.f32 %v2300, %v2307
    %s2311 = scalar_lea.vmem [#allocation21], 2
    %v2312 = vld [vmem:[%s2311] sm:$0x1]
    %v2314 = vlaneseq
    %v2315 = vshrl.u32 %v2314, 7
    %v2316 = vsub.s32 0, %v2315
    %v2317 = vrot.slane %v2312, %v2316
    %v2319 = vadd.f32 %v2309, %v2317
    %v2320 = vadd.f32 %v2310, %v2317
    %v2321 = vld [vmem:[#allocation23] sm:$0xf]
    %v2322 = vld [vmem:[#allocation23 + $0x4] sm:$0xf]
    %v2323 = vld [vmem:[#allocation23 + $0x8] sm:$0xf]
    %v2324 = vld [vmem:[#allocation23 + $0xc] sm:$0xf]
    %v2325 = vld [vmem:[#allocation23 + $0x10] sm:$0xf]
    %v2326 = vld [vmem:[#allocation23 + $0x14] sm:$0xf]
    %v2327 = vld [vmem:[#allocation23 + $0x18] sm:$0xf]
    %v2328 = vld [vmem:[#allocation23 + $0x1c] sm:$0xf]
    %v2329 = vld [vmem:[#allocation23 + $0x20] sm:$0xf]
    %v2330 = vld [vmem:[#allocation23 + $0x24] sm:$0xf]
    %v2331 = vld [vmem:[#allocation23 + $0x28] sm:$0xf]
    %v2332 = vld [vmem:[#allocation23 + $0x2c] sm:$0xf]
    %v2333 = vld [vmem:[#allocation23 + $0x30] sm:$0xf]
    %v2334 = vld [vmem:[#allocation23 + $0x34] sm:$0xf]
    %v2335 = vld [vmem:[#allocation23 + $0x38] sm:$0xf]
    %v2336 = vld [vmem:[#allocation23 + $0x3c] sm:$0xf]
    %v2337 = vpack.c.bf16 %v2320, %v2319
    %v2338 = vld [vmem:[#allocation24] sm:$0x1]
    %v2340 = vlaneseq
    %v2341 = vshrl.u32 %v2340, 7
    %v2342 = vsub.s32 0, %v2341
    %v2343 = vrot.slane %v2338, %v2342
    %v2361 = vunpack.c.l.b16 %v2321
    %v2362 = vunpack.c.l.b16 %v2322
    %v2363 = vunpack.c.l.b16 %v2323
    %v2364 = vunpack.c.l.b16 %v2324
    %v2365 = vunpack.c.l.b16 %v2325
    %v2366 = vunpack.c.l.b16 %v2326
    %v2367 = vunpack.c.l.b16 %v2327
    %v2368 = vunpack.c.l.b16 %v2328
    %v2369 = vunpack.c.l.b16 %v2329
    %v2370 = vunpack.c.l.b16 %v2330
    %v2371 = vunpack.c.l.b16 %v2331
    %v2372 = vunpack.c.l.b16 %v2332
    %v2373 = vunpack.c.l.b16 %v2333
    %v2374 = vunpack.c.l.b16 %v2334
    %v2375 = vunpack.c.l.b16 %v2335
    %v2376 = vunpack.c.l.b16 %v2336
    %v2377 = vpack.c.b16 %v2362, %v2361
    %v2378 = vpack.c.b16 %v2364, %v2363
    %v2379 = vpack.c.b16 %v2366, %v2365
    %v2380 = vpack.c.b16 %v2368, %v2367
    %v2381 = vpack.c.b16 %v2370, %v2369
    %v2382 = vpack.c.b16 %v2372, %v2371
    %v2383 = vpack.c.b16 %v2374, %v2373
    %v2384 = vpack.c.b16 %v2376, %v2375
    %2393 = vmatprep.subr.bf16.mxu0 0
    %2394 = vmatpush1.bf16.msra.mxu0 %v2384
    %2395 = vmatprep.subr.bf16.mxu0 0
    %2396 = vmatpush1.bf16.msra.mxu0 %v2383
    %2397 = vmatprep.subr.bf16.mxu0 0
    %2398 = vmatpush1.bf16.msra.mxu0 %v2382
    %2399 = vmatprep.subr.bf16.mxu0 0
    %2400 = vmatpush1.bf16.msra.mxu0 %v2381
    %2401 = vmatprep.subr.bf16.mxu0 0
    %2402 = vmatpush1.bf16.msra.mxu0 %v2380
    %2403 = vmatprep.subr.bf16.mxu0 0
    %2404 = vmatpush1.bf16.msra.mxu0 %v2379
    %2405 = vmatprep.subr.bf16.mxu0 0
    %2406 = vmatpush1.bf16.msra.mxu0 %v2378
    %2407 = vmatprep.subr.bf16.mxu0 0
    %2408 = vmatpush1.bf16.msra.mxu0 %v2377
    %2409 = vmatprep.subr.bf16.mxu0 0
    %2410 = vmatpush2.bf16.msra.mxu0 0
    %2411 = vmatprep.subr.bf16.mxu0 0
    %2412 = vmatpush2.bf16.msra.mxu0 0
    %2413 = vmatprep.subr.bf16.mxu0 0
    %2414 = vmatpush2.bf16.msra.mxu0 0
    %2415 = vmatprep.subr.bf16.mxu0 0
    %2416 = vmatpush2.bf16.msra.mxu0 0
    %2417 = vmatprep.subr.bf16.mxu0 0
    %2418 = vmatpush2.bf16.msra.mxu0 0
    %2419 = vmatprep.subr.bf16.mxu0 0
    %2420 = vmatpush2.bf16.msra.mxu0 0
    %2421 = vmatprep.subr.bf16.mxu0 0
    %2422 = vmatpush2.bf16.msra.mxu0 0
    %2423 = vmatprep.subr.bf16.mxu0 0
    %2424 = vmatpush2.bf16.msra.mxu0 0
    %2425 = vmatprep.mubr.bf16.mxu0 0
    %2426 = vmatmul.mubr.bf16.gmra.mxu0 %v2337
    %v2427 = vpop.f32.mrf.mxu0
    %v2428 = vadd.f32 %v2343, %v2427
    %v2429 = vpop.f32.mrf.mxu0
    %v2430 = vpop.f32.mrf.mxu0
    %v2431 = vadd.f32 %v2343, %v2430
    %v2432 = vpop.f32.mrf.mxu0
    %2433 = vdwg.mxu0
    %v2434 = vmax.f32 %v2428, 0.0
    %v2435 = vmax.f32 %v2431, 0.0
    %v2436 = vld [vmem:[#allocation26] sm:$0xf]
    %v2437 = vld [vmem:[#allocation26 + $0x4] sm:$0xf]
    %v2438 = vld [vmem:[#allocation26 + $0x8] sm:$0xf]
    %v2439 = vld [vmem:[#allocation26 + $0xc] sm:$0xf]
    %v2440 = vld [vmem:[#allocation26 + $0x10] sm:$0xf]
    %v2441 = vld [vmem:[#allocation26 + $0x14] sm:$0xf]
    %v2442 = vld [vmem:[#allocation26 + $0x18] sm:$0xf]
    %v2443 = vld [vmem:[#allocation26 + $0x1c] sm:$0xf]
    %v2444 = vld [vmem:[#allocation26 + $0x20] sm:$0xf]
    %v2445 = vld [vmem:[#allocation26 + $0x24] sm:$0xf]
    %v2446 = vld [vmem:[#allocation26 + $0x28] sm:$0xf]
    %v2447 = vld [vmem:[#allocation26 + $0x2c] sm:$0xf]
    %v2448 = vld [vmem:[#allocation26 + $0x30] sm:$0xf]
    %v2449 = vld [vmem:[#allocation26 + $0x34] sm:$0xf]
    %v2450 = vld [vmem:[#allocation26 + $0x38] sm:$0xf]
    %v2451 = vld [vmem:[#allocation26 + $0x3c] sm:$0xf]
    %v2452 = vpack.c.bf16 %v2435, %v2434
    %v2453 = vld [vmem:[#allocation27] sm:$0x1]
    %v2455 = vlaneseq
    %v2456 = vshrl.u32 %v2455, 7
    %v2457 = vsub.s32 0, %v2456
    %v2458 = vrot.slane %v2453, %v2457
    %v2476 = vunpack.c.l.b16 %v2436
    %v2477 = vunpack.c.l.b16 %v2437
    %v2478 = vunpack.c.l.b16 %v2438
    %v2479 = vunpack.c.l.b16 %v2439
    %v2480 = vunpack.c.l.b16 %v2440
    %v2481 = vunpack.c.l.b16 %v2441
    %v2482 = vunpack.c.l.b16 %v2442
    %v2483 = vunpack.c.l.b16 %v2443
    %v2484 = vunpack.c.l.b16 %v2444
    %v2485 = vunpack.c.l.b16 %v2445
    %v2486 = vunpack.c.l.b16 %v2446
    %v2487 = vunpack.c.l.b16 %v2447
    %v2488 = vunpack.c.l.b16 %v2448
    %v2489 = vunpack.c.l.b16 %v2449
    %v2490 = vunpack.c.l.b16 %v2450
    %v2491 = vunpack.c.l.b16 %v2451
    %v2492 = vpack.c.b16 %v2477, %v2476
    %v2493 = vpack.c.b16 %v2479, %v2478
    %v2494 = vpack.c.b16 %v2481, %v2480
    %v2495 = vpack.c.b16 %v2483, %v2482
    %v2496 = vpack.c.b16 %v2485, %v2484
    %v2497 = vpack.c.b16 %v2487, %v2486
    %v2498 = vpack.c.b16 %v2489, %v2488
    %v2499 = vpack.c.b16 %v2491, %v2490
    %2508 = vmatprep.subr.bf16.mxu0 0
    %2509 = vmatpush1.bf16.msra.mxu0 %v2499
    %2510 = vmatprep.subr.bf16.mxu0 0
    %2511 = vmatpush1.bf16.msra.mxu0 %v2498
    %2512 = vmatprep.subr.bf16.mxu0 0
    %2513 = vmatpush1.bf16.msra.mxu0 %v2497
    %2514 = vmatprep.subr.bf16.mxu0 0
    %2515 = vmatpush1.bf16.msra.mxu0 %v2496
    %2516 = vmatprep.subr.bf16.mxu0 0
    %2517 = vmatpush1.bf16.msra.mxu0 %v2495
    %2518 = vmatprep.subr.bf16.mxu0 0
    %2519 = vmatpush1.bf16.msra.mxu0 %v2494
    %2520 = vmatprep.subr.bf16.mxu0 0
    %2521 = vmatpush1.bf16.msra.mxu0 %v2493
    %2522 = vmatprep.subr.bf16.mxu0 0
    %2523 = vmatpush1.bf16.msra.mxu0 %v2492
    %2524 = vmatprep.subr.bf16.mxu0 0
    %2525 = vmatpush2.bf16.msra.mxu0 0
    %2526 = vmatprep.subr.bf16.mxu0 0
    %2527 = vmatpush2.bf16.msra.mxu0 0
    %2528 = vmatprep.subr.bf16.mxu0 0
    %2529 = vmatpush2.bf16.msra.mxu0 0
    %2530 = vmatprep.subr.bf16.mxu0 0
    %2531 = vmatpush2.bf16.msra.mxu0 0
    %2532 = vmatprep.subr.bf16.mxu0 0
    %2533 = vmatpush2.bf16.msra.mxu0 0
    %2534 = vmatprep.subr.bf16.mxu0 0
    %2535 = vmatpush2.bf16.msra.mxu0 0
    %2536 = vmatprep.subr.bf16.mxu0 0
    %2537 = vmatpush2.bf16.msra.mxu0 0
    %2538 = vmatprep.subr.bf16.mxu0 0
    %2539 = vmatpush2.bf16.msra.mxu0 0
    %2540 = vmatprep.mubr.bf16.mxu0 0
    %2541 = vmatmul.mubr.bf16.gmra.mxu0 %v2452
    %v2542 = vpop.f32.mrf.mxu0
    %v2543 = vadd.f32 %v2458, %v2542
    %v2544 = vpop.f32.mrf.mxu0
    %v2545 = vpop.f32.mrf.mxu0
    %v2546 = vadd.f32 %v2458, %v2545
    %v2547 = vpop.f32.mrf.mxu0
    %2548 = vdwg.mxu0
    %v2549 = vpack.c.bf16 %v2546, %v2543
    %v2550 = vld [vmem:[#allocation8] sm:$0x1]
    %vm2551 = vcmask 130048
    %v2553 = vsel %vm2551, %v2550, 0
    %2555 = vmatprep.subr.bf16.mxu0 0
    %2556 = vmatpush1.bf16.msra.mxu0 0
    %2557 = vmatprep.subr.bf16.mxu0 0
    %2558 = vmatpush1.bf16.msra.mxu0 0
    %2559 = vmatprep.subr.bf16.mxu0 0
    %2560 = vmatpush1.bf16.msra.mxu0 0
    %2561 = vmatprep.subr.bf16.mxu0 0
    %2562 = vmatpush1.bf16.msra.mxu0 0
    %2563 = vmatprep.subr.bf16.mxu0 0
    %2564 = vmatpush1.bf16.msra.mxu0 0
    %2565 = vmatprep.subr.bf16.mxu0 0
    %2566 = vmatpush1.bf16.msra.mxu0 0
    %2567 = vmatprep.subr.bf16.mxu0 0
    %2568 = vmatpush1.bf16.msra.mxu0 0
    %2569 = vmatprep.subr.bf16.mxu0 0
    %2570 = vmatpush1.bf16.msra.mxu0 %v2549
    %2571 = vmatprep.subr.bf16.mxu0 0
    %2572 = vmatpush2.bf16.msra.mxu0 0
    %2573 = vmatprep.subr.bf16.mxu0 0
    %2574 = vmatpush2.bf16.msra.mxu0 0
    %2575 = vmatprep.subr.bf16.mxu0 0
    %2576 = vmatpush2.bf16.msra.mxu0 0
    %2577 = vmatprep.subr.bf16.mxu0 0
    %2578 = vmatpush2.bf16.msra.mxu0 0
    %2579 = vmatprep.subr.bf16.mxu0 0
    %2580 = vmatpush2.bf16.msra.mxu0 0
    %2581 = vmatprep.subr.bf16.mxu0 0
    %2582 = vmatpush2.bf16.msra.mxu0 0
    %2583 = vmatprep.subr.bf16.mxu0 0
    %2584 = vmatpush2.bf16.msra.mxu0 0
    %2585 = vmatprep.subr.bf16.mxu0 0
    %2586 = vmatpush2.bf16.msra.mxu0 0
    %2587 = vmatprep.mubr.bf16.mxu0 0
    %2588 = vmatmul.mubr.bf16.gmra.mxu0 %v2553
    %v2589 = vpop.f32.mrf.mxu0
    %v2590 = vadd.f32 0.0, %v2589
    %v2591 = vpop.f32.mrf.mxu0
    %v2592 = vpop.f32.mrf.mxu0
    %v2593 = vpop.f32.mrf.mxu0
    %2594 = vdwg.mxu0
    %v2595 = vld [vmem:[%s13] sm:$0x3]
    %2597 = vset.pattern.permute.xlu0 0
    %2598 = vperm.xlu0 %2597, %v2595
    %v2599 = vpop.permute.xlu0 %2598
    %v2601 = vmul.f32 %v2590, %v2599
    %v2602 = vld [vmem:[#allocation29] sm:$0xf]
    %v2603 = vld [vmem:[#allocation29 + $0x4] sm:$0xf]
    %v2604 = vld [vmem:[#allocation29 + $0x8] sm:$0xf]
    %v2605 = vld [vmem:[#allocation29 + $0xc] sm:$0xf]
    %v2606 = vld [vmem:[#allocation29 + $0x10] sm:$0xf]
    %v2607 = vld [vmem:[#allocation29 + $0x14] sm:$0xf]
    %v2608 = vld [vmem:[#allocation29 + $0x18] sm:$0xf]
    %v2609 = vld [vmem:[#allocation29 + $0x1c] sm:$0xf]
    %v2610 = vld [vmem:[#allocation29 + $0x20] sm:$0xf]
    %v2611 = vld [vmem:[#allocation29 + $0x24] sm:$0xf]
    %v2612 = vld [vmem:[#allocation29 + $0x28] sm:$0xf]
    %v2613 = vld [vmem:[#allocation29 + $0x2c] sm:$0xf]
    %v2614 = vld [vmem:[#allocation29 + $0x30] sm:$0xf]
    %v2615 = vld [vmem:[#allocation29 + $0x34] sm:$0xf]
    %v2616 = vld [vmem:[#allocation29 + $0x38] sm:$0xf]
    %v2617 = vld [vmem:[#allocation29 + $0x3c] sm:$0xf]
    %v2618 = vpack.c.bf16 %v2601, %v2601
    %v2619 = vld [vmem:[#allocation30] sm:$0x1]
    %v2621 = vlaneseq
    %v2622 = vshrl.u32 %v2621, 7
    %v2623 = vsub.s32 0, %v2622
    %v2624 = vrot.slane %v2619, %v2623
    %v2642 = vunpack.c.l.b16 %v2602
    %v2643 = vunpack.c.l.b16 %v2603
    %v2644 = vunpack.c.l.b16 %v2604
    %v2645 = vunpack.c.l.b16 %v2605
    %v2646 = vunpack.c.l.b16 %v2606
    %v2647 = vunpack.c.l.b16 %v2607
    %v2648 = vunpack.c.l.b16 %v2608
    %v2649 = vunpack.c.l.b16 %v2609
    %v2650 = vunpack.c.l.b16 %v2610
    %v2651 = vunpack.c.l.b16 %v2611
    %v2652 = vunpack.c.l.b16 %v2612
    %v2653 = vunpack.c.l.b16 %v2613
    %v2654 = vunpack.c.l.b16 %v2614
    %v2655 = vunpack.c.l.b16 %v2615
    %v2656 = vunpack.c.l.b16 %v2616
    %v2657 = vunpack.c.l.b16 %v2617
    %v2658 = vpack.c.b16 %v2643, %v2642
    %v2659 = vpack.c.b16 %v2645, %v2644
    %v2660 = vpack.c.b16 %v2647, %v2646
    %v2661 = vpack.c.b16 %v2649, %v2648
    %v2662 = vpack.c.b16 %v2651, %v2650
    %v2663 = vpack.c.b16 %v2653, %v2652
    %v2664 = vpack.c.b16 %v2655, %v2654
    %v2665 = vpack.c.b16 %v2657, %v2656
    %2674 = vmatprep.subr.bf16.mxu0 0
    %2675 = vmatpush1.bf16.msra.mxu0 %v2665
    %2676 = vmatprep.subr.bf16.mxu0 0
    %2677 = vmatpush1.bf16.msra.mxu0 %v2664
    %2678 = vmatprep.subr.bf16.mxu0 0
    %2679 = vmatpush1.bf16.msra.mxu0 %v2663
    %2680 = vmatprep.subr.bf16.mxu0 0
    %2681 = vmatpush1.bf16.msra.mxu0 %v2662
    %2682 = vmatprep.subr.bf16.mxu0 0
    %2683 = vmatpush1.bf16.msra.mxu0 %v2661
    %2684 = vmatprep.subr.bf16.mxu0 0
    %2685 = vmatpush1.bf16.msra.mxu0 %v2660
    %2686 = vmatprep.subr.bf16.mxu0 0
    %2687 = vmatpush1.bf16.msra.mxu0 %v2659
    %2688 = vmatprep.subr.bf16.mxu0 0
    %2689 = vmatpush1.bf16.msra.mxu0 %v2658
    %2690 = vmatprep.subr.bf16.mxu0 0
    %2691 = vmatpush2.bf16.msra.mxu0 0
    %2692 = vmatprep.subr.bf16.mxu0 0
    %2693 = vmatpush2.bf16.msra.mxu0 0
    %2694 = vmatprep.subr.bf16.mxu0 0
    %2695 = vmatpush2.bf16.msra.mxu0 0
    %2696 = vmatprep.subr.bf16.mxu0 0
    %2697 = vmatpush2.bf16.msra.mxu0 0
    %2698 = vmatprep.subr.bf16.mxu0 0
    %2699 = vmatpush2.bf16.msra.mxu0 0
    %2700 = vmatprep.subr.bf16.mxu0 0
    %2701 = vmatpush2.bf16.msra.mxu0 0
    %2702 = vmatprep.subr.bf16.mxu0 0
    %2703 = vmatpush2.bf16.msra.mxu0 0
    %2704 = vmatprep.subr.bf16.mxu0 0
    %2705 = vmatpush2.bf16.msra.mxu0 0
    %2706 = vmatprep.mubr.bf16.mxu0 0
    %2707 = vmatmul.mubr.bf16.gmra.mxu0 %v2618
    %v2708 = vpop.f32.mrf.mxu0
    %v2709 = vadd.f32 %v2624, %v2708
    %v2710 = vpop.f32.mrf.mxu0
    %v2711 = vpop.f32.mrf.mxu0
    %v2712 = vpop.f32.mrf.mxu0
    %2713 = vdwg.mxu0
    %v2714 = vmax.f32 %v2709, 0.0
    %v2715 = vld [vmem:[%s47] sm:$0xf]
    %v2716 = vld [vmem:[%s47 + $0x4] sm:$0xf]
    %v2717 = vld [vmem:[%s47 + $0x8] sm:$0xf]
    %v2718 = vld [vmem:[%s47 + $0xc] sm:$0xf]
    %v2719 = vld [vmem:[%s47 + $0x10] sm:$0xf]
    %v2720 = vld [vmem:[%s47 + $0x14] sm:$0xf]
    %v2721 = vld [vmem:[%s47 + $0x18] sm:$0xf]
    %v2722 = vld [vmem:[%s47 + $0x1c] sm:$0xf]
    %v2723 = vld [vmem:[%s47 + $0x20] sm:$0xf]
    %v2724 = vld [vmem:[%s47 + $0x24] sm:$0xf]
    %v2725 = vld [vmem:[%s47 + $0x28] sm:$0xf]
    %v2726 = vld [vmem:[%s47 + $0x2c] sm:$0xf]
    %v2727 = vld [vmem:[%s47 + $0x30] sm:$0xf]
    %v2728 = vld [vmem:[%s47 + $0x34] sm:$0xf]
    %v2729 = vld [vmem:[%s47 + $0x38] sm:$0xf]
    %v2730 = vld [vmem:[%s47 + $0x3c] sm:$0xf]
    %v2731 = vpack.c.bf16 %v2714, %v2714
    %v2732 = vld [vmem:[%s49] sm:$0x1]
    %v2734 = vlaneseq
    %v2735 = vshrl.u32 %v2734, 7
    %v2736 = vsub.s32 0, %v2735
    %v2737 = vrot.slane %v2732, %v2736
    %v2755 = vunpack.c.l.b16 %v2715
    %v2756 = vunpack.c.l.b16 %v2716
    %v2757 = vunpack.c.l.b16 %v2717
    %v2758 = vunpack.c.l.b16 %v2718
    %v2759 = vunpack.c.l.b16 %v2719
    %v2760 = vunpack.c.l.b16 %v2720
    %v2761 = vunpack.c.l.b16 %v2721
    %v2762 = vunpack.c.l.b16 %v2722
    %v2763 = vunpack.c.l.b16 %v2723
    %v2764 = vunpack.c.l.b16 %v2724
    %v2765 = vunpack.c.l.b16 %v2725
    %v2766 = vunpack.c.l.b16 %v2726
    %v2767 = vunpack.c.l.b16 %v2727
    %v2768 = vunpack.c.l.b16 %v2728
    %v2769 = vunpack.c.l.b16 %v2729
    %v2770 = vunpack.c.l.b16 %v2730
    %v2771 = vpack.c.b16 %v2756, %v2755
    %v2772 = vpack.c.b16 %v2758, %v2757
    %v2773 = vpack.c.b16 %v2760, %v2759
    %v2774 = vpack.c.b16 %v2762, %v2761
    %v2775 = vpack.c.b16 %v2764, %v2763
    %v2776 = vpack.c.b16 %v2766, %v2765
    %v2777 = vpack.c.b16 %v2768, %v2767
    %v2778 = vpack.c.b16 %v2770, %v2769
    %2787 = vmatprep.subr.bf16.mxu0 0
    %2788 = vmatpush1.bf16.msra.mxu0 %v2778
    %2789 = vmatprep.subr.bf16.mxu0 0
    %2790 = vmatpush1.bf16.msra.mxu0 %v2777
    %2791 = vmatprep.subr.bf16.mxu0 0
    %2792 = vmatpush1.bf16.msra.mxu0 %v2776
    %2793 = vmatprep.subr.bf16.mxu0 0
    %2794 = vmatpush1.bf16.msra.mxu0 %v2775
    %2795 = vmatprep.subr.bf16.mxu0 0
    %2796 = vmatpush1.bf16.msra.mxu0 %v2774
    %2797 = vmatprep.subr.bf16.mxu0 0
    %2798 = vmatpush1.bf16.msra.mxu0 %v2773
    %2799 = vmatprep.subr.bf16.mxu0 0
    %2800 = vmatpush1.bf16.msra.mxu0 %v2772
    %2801 = vmatprep.subr.bf16.mxu0 0
    %2802 = vmatpush1.bf16.msra.mxu0 %v2771
    %2803 = vmatprep.subr.bf16.mxu0 0
    %2804 = vmatpush2.bf16.msra.mxu0 0
    %2805 = vmatprep.subr.bf16.mxu0 0
    %2806 = vmatpush2.bf16.msra.mxu0 0
    %2807 = vmatprep.subr.bf16.mxu0 0
    %2808 = vmatpush2.bf16.msra.mxu0 0
    %2809 = vmatprep.subr.bf16.mxu0 0
    %2810 = vmatpush2.bf16.msra.mxu0 0
    %2811 = vmatprep.subr.bf16.mxu0 0
    %2812 = vmatpush2.bf16.msra.mxu0 0
    %2813 = vmatprep.subr.bf16.mxu0 0
    %2814 = vmatpush2.bf16.msra.mxu0 0
    %2815 = vmatprep.subr.bf16.mxu0 0
    %2816 = vmatpush2.bf16.msra.mxu0 0
    %2817 = vmatprep.subr.bf16.mxu0 0
    %2818 = vmatpush2.bf16.msra.mxu0 0
    %2819 = vmatprep.mubr.bf16.mxu0 0
    %2820 = vmatmul.mubr.bf16.gmra.mxu0 %v2731
    %v2821 = vpop.f32.mrf.mxu0
    %v2822 = vadd.f32 %v2737, %v2821
    %v2823 = vpop.f32.mrf.mxu0
    %v2824 = vpop.f32.mrf.mxu0
    %v2825 = vpop.f32.mrf.mxu0
    %2826 = vdwg.mxu0
    %2827 = vst [vmem:[#allocation35] sm:$0x3] %v2822
    %v2828 = vld [vmem:[#allocation32] sm:$0xf]
    %v2829 = vld [vmem:[#allocation32 + $0x4] sm:$0xf]
    %v2830 = vld [vmem:[#allocation32 + $0x8] sm:$0xf]
    %v2831 = vld [vmem:[#allocation32 + $0xc] sm:$0xf]
    %v2832 = vld [vmem:[#allocation32 + $0x10] sm:$0xf]
    %v2833 = vld [vmem:[#allocation32 + $0x14] sm:$0xf]
    %v2834 = vld [vmem:[#allocation32 + $0x18] sm:$0xf]
    %v2835 = vld [vmem:[#allocation32 + $0x1c] sm:$0xf]
    %v2836 = vld [vmem:[#allocation32 + $0x20] sm:$0xf]
    %v2837 = vld [vmem:[#allocation32 + $0x24] sm:$0xf]
    %v2838 = vld [vmem:[#allocation32 + $0x28] sm:$0xf]
    %v2839 = vld [vmem:[#allocation32 + $0x2c] sm:$0xf]
    %v2840 = vld [vmem:[#allocation32 + $0x30] sm:$0xf]
    %v2841 = vld [vmem:[#allocation32 + $0x34] sm:$0xf]
    %v2842 = vld [vmem:[#allocation32 + $0x38] sm:$0xf]
    %v2843 = vld [vmem:[#allocation32 + $0x3c] sm:$0xf]
    %v2844 = vld [vmem:[%s53] sm:$0x1]
    %v2846 = vlaneseq
    %v2847 = vshrl.u32 %v2846, 7
    %v2848 = vsub.s32 0, %v2847
    %v2849 = vrot.slane %v2844, %v2848
    %v2867 = vunpack.c.l.b16 %v2828
    %v2868 = vunpack.c.l.b16 %v2829
    %v2869 = vunpack.c.l.b16 %v2830
    %v2870 = vunpack.c.l.b16 %v2831
    %v2871 = vunpack.c.l.b16 %v2832
    %v2872 = vunpack.c.l.b16 %v2833
    %v2873 = vunpack.c.l.b16 %v2834
    %v2874 = vunpack.c.l.b16 %v2835
    %v2875 = vunpack.c.l.b16 %v2836
    %v2876 = vunpack.c.l.b16 %v2837
    %v2877 = vunpack.c.l.b16 %v2838
    %v2878 = vunpack.c.l.b16 %v2839
    %v2879 = vunpack.c.l.b16 %v2840
    %v2880 = vunpack.c.l.b16 %v2841
    %v2881 = vunpack.c.l.b16 %v2842
    %v2882 = vunpack.c.l.b16 %v2843
    %v2883 = vpack.c.b16 %v2868, %v2867
    %v2884 = vpack.c.b16 %v2870, %v2869
    %v2885 = vpack.c.b16 %v2872, %v2871
    %v2886 = vpack.c.b16 %v2874, %v2873
    %v2887 = vpack.c.b16 %v2876, %v2875
    %v2888 = vpack.c.b16 %v2878, %v2877
    %v2889 = vpack.c.b16 %v2880, %v2879
    %v2890 = vpack.c.b16 %v2882, %v2881
    %2899 = vmatprep.subr.bf16.mxu0 0
    %2900 = vmatpush1.bf16.msra.mxu0 %v2890
    %2901 = vmatprep.subr.bf16.mxu0 0
    %2902 = vmatpush1.bf16.msra.mxu0 %v2889
    %2903 = vmatprep.subr.bf16.mxu0 0
    %2904 = vmatpush1.bf16.msra.mxu0 %v2888
    %2905 = vmatprep.subr.bf16.mxu0 0
    %2906 = vmatpush1.bf16.msra.mxu0 %v2887
    %2907 = vmatprep.subr.bf16.mxu0 0
    %2908 = vmatpush1.bf16.msra.mxu0 %v2886
    %2909 = vmatprep.subr.bf16.mxu0 0
    %2910 = vmatpush1.bf16.msra.mxu0 %v2885
    %2911 = vmatprep.subr.bf16.mxu0 0
    %2912 = vmatpush1.bf16.msra.mxu0 %v2884
    %2913 = vmatprep.subr.bf16.mxu0 0
    %2914 = vmatpush1.bf16.msra.mxu0 %v2883
    %2915 = vmatprep.subr.bf16.mxu0 0
    %2916 = vmatpush2.bf16.msra.mxu0 0
    %2917 = vmatprep.subr.bf16.mxu0 0
    %2918 = vmatpush2.bf16.msra.mxu0 0
    %2919 = vmatprep.subr.bf16.mxu0 0
    %2920 = vmatpush2.bf16.msra.mxu0 0
    %2921 = vmatprep.subr.bf16.mxu0 0
    %2922 = vmatpush2.bf16.msra.mxu0 0
    %2923 = vmatprep.subr.bf16.mxu0 0
    %2924 = vmatpush2.bf16.msra.mxu0 0
    %2925 = vmatprep.subr.bf16.mxu0 0
    %2926 = vmatpush2.bf16.msra.mxu0 0
    %2927 = vmatprep.subr.bf16.mxu0 0
    %2928 = vmatpush2.bf16.msra.mxu0 0
    %2929 = vmatprep.subr.bf16.mxu0 0
    %2930 = vmatpush2.bf16.msra.mxu0 0
    %2931 = vmatprep.mubr.bf16.mxu0 0
    %2932 = vmatmul.mubr.bf16.gmra.mxu0 %v2549
    %v2933 = vpop.f32.mrf.mxu0
    %v2934 = vadd.f32 %v2849, %v2933
    %v2935 = vpop.f32.mrf.mxu0
    %v2936 = vpop.f32.mrf.mxu0
    %v2937 = vadd.f32 %v2849, %v2936
    %v2938 = vpop.f32.mrf.mxu0
    %2939 = vdwg.mxu0
    %v2940 = vmax.f32 %v2934, 0.0
    %v2941 = vmax.f32 %v2937, 0.0
    %v2942 = vld [vmem:[#allocation33] sm:$0xf]
    %v2943 = vld [vmem:[#allocation33 + $0x4] sm:$0xf]
    %v2944 = vld [vmem:[#allocation33 + $0x8] sm:$0xf]
    %v2945 = vld [vmem:[#allocation33 + $0xc] sm:$0xf]
    %v2946 = vld [vmem:[#allocation33 + $0x10] sm:$0xf]
    %v2947 = vld [vmem:[#allocation33 + $0x14] sm:$0xf]
    %v2948 = vld [vmem:[#allocation33 + $0x18] sm:$0xf]
    %v2949 = vld [vmem:[#allocation33 + $0x1c] sm:$0xf]
    %v2950 = vld [vmem:[#allocation33 + $0x20] sm:$0xf]
    %v2951 = vld [vmem:[#allocation33 + $0x24] sm:$0xf]
    %v2952 = vld [vmem:[#allocation33 + $0x28] sm:$0xf]
    %v2953 = vld [vmem:[#allocation33 + $0x2c] sm:$0xf]
    %v2954 = vld [vmem:[#allocation33 + $0x30] sm:$0xf]
    %v2955 = vld [vmem:[#allocation33 + $0x34] sm:$0xf]
    %v2956 = vld [vmem:[#allocation33 + $0x38] sm:$0xf]
    %v2957 = vld [vmem:[#allocation33 + $0x3c] sm:$0xf]
    %v2958 = vpack.c.bf16 %v2941, %v2940
    %v2959 = vld [vmem:[%s57] sm:$0x1]
    %v2961 = vlaneseq
    %v2962 = vshrl.u32 %v2961, 7
    %v2963 = vsub.s32 0, %v2962
    %v2964 = vrot.slane %v2959, %v2963
    %v2982 = vunpack.c.l.b16 %v2942
    %v2983 = vunpack.c.l.b16 %v2943
    %v2984 = vunpack.c.l.b16 %v2944
    %v2985 = vunpack.c.l.b16 %v2945
    %v2986 = vunpack.c.l.b16 %v2946
    %v2987 = vunpack.c.l.b16 %v2947
    %v2988 = vunpack.c.l.b16 %v2948
    %v2989 = vunpack.c.l.b16 %v2949
    %v2990 = vunpack.c.l.b16 %v2950
    %v2991 = vunpack.c.l.b16 %v2951
    %v2992 = vunpack.c.l.b16 %v2952
    %v2993 = vunpack.c.l.b16 %v2953
    %v2994 = vunpack.c.l.b16 %v2954
    %v2995 = vunpack.c.l.b16 %v2955
    %v2996 = vunpack.c.l.b16 %v2956
    %v2997 = vunpack.c.l.b16 %v2957
    %v2998 = vpack.c.b16 %v2983, %v2982
    %v2999 = vpack.c.b16 %v2985, %v2984
    %v3000 = vpack.c.b16 %v2987, %v2986
    %v3001 = vpack.c.b16 %v2989, %v2988
    %v3002 = vpack.c.b16 %v2991, %v2990
    %v3003 = vpack.c.b16 %v2993, %v2992
    %v3004 = vpack.c.b16 %v2995, %v2994
    %v3005 = vpack.c.b16 %v2997, %v2996
    %3014 = vmatprep.subr.bf16.mxu0 0
    %3015 = vmatpush1.bf16.msra.mxu0 %v3005
    %3016 = vmatprep.subr.bf16.mxu0 0
    %3017 = vmatpush1.bf16.msra.mxu0 %v3004
    %3018 = vmatprep.subr.bf16.mxu0 0
    %3019 = vmatpush1.bf16.msra.mxu0 %v3003
    %3020 = vmatprep.subr.bf16.mxu0 0
    %3021 = vmatpush1.bf16.msra.mxu0 %v3002
    %3022 = vmatprep.subr.bf16.mxu0 0
    %3023 = vmatpush1.bf16.msra.mxu0 %v3001
    %3024 = vmatprep.subr.bf16.mxu0 0
    %3025 = vmatpush1.bf16.msra.mxu0 %v3000
    %3026 = vmatprep.subr.bf16.mxu0 0
    %3027 = vmatpush1.bf16.msra.mxu0 %v2999
    %3028 = vmatprep.subr.bf16.mxu0 0
    %3029 = vmatpush1.bf16.msra.mxu0 %v2998
    %3030 = vmatprep.subr.bf16.mxu0 0
    %3031 = vmatpush2.bf16.msra.mxu0 0
    %3032 = vmatprep.subr.bf16.mxu0 0
    %3033 = vmatpush2.bf16.msra.mxu0 0
    %3034 = vmatprep.subr.bf16.mxu0 0
    %3035 = vmatpush2.bf16.msra.mxu0 0
    %3036 = vmatprep.subr.bf16.mxu0 0
    %3037 = vmatpush2.bf16.msra.mxu0 0
    %3038 = vmatprep.subr.bf16.mxu0 0
    %3039 = vmatpush2.bf16.msra.mxu0 0
    %3040 = vmatprep.subr.bf16.mxu0 0
    %3041 = vmatpush2.bf16.msra.mxu0 0
    %3042 = vmatprep.subr.bf16.mxu0 0
    %3043 = vmatpush2.bf16.msra.mxu0 0
    %3044 = vmatprep.subr.bf16.mxu0 0
    %3045 = vmatpush2.bf16.msra.mxu0 0
    %3046 = vmatprep.mubr.bf16.mxu0 0
    %3047 = vmatmul.mubr.bf16.gmra.mxu0 %v2958
    %v3048 = vpop.f32.mrf.mxu0
    %v3049 = vadd.f32 %v2964, %v3048
    %v3050 = vpop.f32.mrf.mxu0
    %v3051 = vpop.f32.mrf.mxu0
    %v3052 = vadd.f32 %v2964, %v3051
    %v3053 = vpop.f32.mrf.mxu0
    %3054 = vdwg.mxu0
    %3055 = vst [vmem:[#allocation36] sm:$0xff] %v3049
    %3056 = vst [vmem:[#allocation36 + $0x8] sm:$0xff] %v3052
    // Predicated region
    $region198: #{tpu_custom_call.1} parent=1 // pred_check
      _
    $region199: #{tpu_custom_call.1} parent=1 // pred_check_branch
      %3058 = sbr.rel (0) target = $region201
    $region200: #{tpu_custom_call.1} parent=1 // pred_region
      %s3060 = ssub.s32 32, 32
      %3061 = vsyncadd [#allocation5], %s3060
      %s3063 = sshll.u32 [#allocation35], 4
      %s3064 = int_to_ptr.vmem [resolvable:$true] %s3063
      %3066 = dma.vmem_to_hbm [thread:$0]  %s3064, 32, %s59, [#allocation5]
    $region201: #{tpu_custom_call.1} parent=1 // pred_fallthru
      _
    // Predicated region
    $region202: #{tpu_custom_call.1} parent=1 // pred_check
      _
    $region203: #{tpu_custom_call.1} parent=1 // pred_check_branch
      %3068 = sbr.rel (0) target = $region205
    $region204: #{tpu_custom_call.1} parent=1 // pred_region
      %s3070 = ssub.s32 256, 256
      %3071 = vsyncadd [#allocation37], %s3070
      %s3072 = sshll.u32 [#allocation36], 4
      %s3073 = int_to_ptr.vmem [resolvable:$true] %s3072
      %3078 = dma.vmem_to_hbm [thread:$0]  %s3073, 256, %s61, [#allocation37], 128, 128, 8
    $region205: #{tpu_custom_call.1} parent=1 // pred_fallthru
      _
    // Predicated region
    $region206: #{tpu_custom_call.1} parent=1 // pred_check
      _
    $region207: #{tpu_custom_call.1} parent=1 // pred_check_branch
      %3080 = sbr.rel (0) target = $region209
    $region208: #{tpu_custom_call.1} parent=1 // pred_region
      %3081 = dma.done [#allocation5], 32
    $region209: #{tpu_custom_call.1} parent=1 // pred_fallthru
      _
    // Predicated region
    $region210: #{tpu_custom_call.1} parent=1 // pred_check
      _
    $region211: #{tpu_custom_call.1} parent=1 // pred_check_branch
      %3083 = sbr.rel (0) target = $region213
    $region212: #{tpu_custom_call.1} parent=1 // pred_region
      %3084 = dma.done [#allocation37], 256
    $region213: #{tpu_custom_call.1} parent=1 // pred_fallthru
      _
    %3085 = vsyncpa [#allocation4], 1
    %3086 = vsyncpa [#allocation7], 1
    %3087 = vsyncpa [#allocation10], 1
    %3088 = vsyncpa [#allocation13], 1
    %3089 = vsyncpa [#allocation16], 1
    %3090 = vsyncpa [#allocation19], 1
    %3091 = vsyncpa [#allocation22], 1
    %3092 = vsyncpa [#allocation25], 1
    %3093 = vsyncpa [#allocation28], 1
    %3094 = vsyncpa [#allocation31], 1
    %3095 = vsyncpa [#allocation34], 1
    %3096 = vsyncpa [#allocation5], 1
    %3097 = vsyncpa [#allocation37], 1

</llo_original>
